<compile_context>
chip_gen: v7x
topology: tpu7x:2x2x1
jax: 0.10.0
libtpu: 0.0.40
codegen_flags: <defaults>
</compile_context>

<pallas_src>
import functools

import jax
import jax.numpy as jnp
from jax import lax
from jax.experimental import pallas as pl
from jax.experimental.pallas import tpu as pltpu

LANE = 128  # channel lane padding so intermediate stores are lane-dense


# ----------------------------- Pallas kernels -------------------------------
def _conv_bias_act_kernel(p_ref, w_ref, b_ref, o_ref, *, act):
    # (TM, K) @ (K, N) on the MXU with bf16 operands, f32 accumulate.
    acc = jnp.dot(p_ref[...], w_ref[...], preferred_element_type=jnp.float32)
    y = acc + b_ref[...]
    if act == "lrelu":
        y = jnp.where(y > 0, y, 0.2 * y)
    elif act == "sigmoid":
        # numerically-stable sigmoid; divide goes to the EUP reciprocal slot
        z = jnp.exp(-jnp.abs(y))
        inv = pl.reciprocal(1.0 + z, approx=True)
        y = jnp.where(y >= 0, inv, z * inv)
    o_ref[...] = y.astype(o_ref.dtype)


def _conv_bn_lrelu_kernel(p_ref, w_ref, g_ref, b_ref, o_ref, *, eps):
    # Full (M, N) conv output is resident in VMEM (grid=(1,)), so the
    # training-mode BatchNorm batch statistics are computed right here.
    acc = jnp.dot(p_ref[...], w_ref[...], preferred_element_type=jnp.float32)
    mean = jnp.mean(acc, axis=0, keepdims=True)               # (1, N)
    var = jnp.mean((acc - mean) ** 2, axis=0, keepdims=True)  # biased, like torch
    scale = g_ref[...] * lax.rsqrt(var + eps)                 # gamma padded with 0
    shift = b_ref[...] - mean * scale
    y = acc * scale + shift
    o_ref[...] = jnp.where(y > 0, y, 0.2 * y).astype(o_ref.dtype)


# ----------------------------- pallas_call wrappers --------------------------
def conv_bias_act(patches, w_mat, bias, act, out_dtype):
    """act((patches @ w_mat) + bias). patches (M,K) bf16, w_mat (K,N=128) bf16."""
    M, K = patches.shape
    N = w_mat.shape[1]
    tm = min(M, 256)
    if M % tm:
        tm = M  # full-extent fallback (exempt from the (8,128) rule)
    return pl.pallas_call(
        functools.partial(_conv_bias_act_kernel, act=act),
        out_shape=jax.ShapeDtypeStruct((M, N), out_dtype),
        grid=(M // tm,),
        in_specs=[
            pl.BlockSpec((tm, K), lambda i: (i, 0)),
            pl.BlockSpec((K, N), lambda i: (0, 0)),
            pl.BlockSpec((1, N), lambda i: (0, 0)),
        ],
        out_specs=pl.BlockSpec((tm, N), lambda i: (i, 0)),
        compiler_params=pltpu.CompilerParams(
            dimension_semantics=("parallel",),
            vmem_limit_bytes=32 * 1024 * 1024,
        ),
    )(patches, w_mat, bias)


def conv_bn_lrelu(patches, w_mat, gamma, beta, out_dtype, eps=1e-5):
    """lrelu(BN(patches @ w_mat)) with batch stats computed inside the kernel."""
    M, K = patches.shape
    N = w_mat.shape[1]
    return pl.pallas_call(
        functools.partial(_conv_bn_lrelu_kernel, eps=eps),
        out_shape=jax.ShapeDtypeStruct((M, N), out_dtype),
        grid=(1,),
        in_specs=[
            pl.BlockSpec((M, K), lambda i: (0, 0)),
            pl.BlockSpec((K, N), lambda i: (0, 0)),
            pl.BlockSpec((1, N), lambda i: (0, 0)),
            pl.BlockSpec((1, N), lambda i: (0, 0)),
        ],
        out_specs=pl.BlockSpec((M, N), lambda i: (0, 0)),
        compiler_params=pltpu.CompilerParams(
            dimension_semantics=("arbitrary",),
            vmem_limit_bytes=32 * 1024 * 1024,
        ),
    )(patches, w_mat, gamma, beta)


# ------------------------------- JAX glue ------------------------------------
def im2col_nhwc(x, k, s, p):
    """Conv patches: (N*oh*ow, C*k*k) with feature order (C, kh, kw) (= OIHW flat)."""
    x = jnp.pad(x, ((0, 0), (p, p), (p, p), (0, 0)))
    n, h, w, c = x.shape
    oh = (h - k) // s + 1
    ow = (w - k) // s + 1
    rows = []
    for ki in range(k):
        cols = []
        for kj in range(k):
            cols.append(x[:, ki : ki + s * oh : s, kj : kj + s * ow : s, :])
        rows.append(jnp.stack(cols, axis=-1))      # (n, oh, ow, c, kw)
    patches = jnp.stack(rows, axis=-2)             # (n, oh, ow, c, kh, kw)
    return patches.reshape(n * oh * ow, c * k * k), (n, oh, ow)


def prep_weight(w_oihw, c_pad, n_pad):
    """OIHW weight -> (K = c_pad*kh*kw, N = n_pad) bf16, zero-padded I and O."""
    o, i, kh, kw = w_oihw.shape
    w = jnp.zeros((n_pad, c_pad, kh, kw), w_oihw.dtype).at[:o, :i].set(w_oihw)
    return w.reshape(n_pad, c_pad * kh * kw).T.astype(jnp.bfloat16)


def prep_vec(v, n_pad):
    """Per-channel vector -> (1, n_pad) f32, zero-padded (keeps padded chans 0)."""
    return jnp.zeros((1, n_pad), jnp.float32).at[0, : v.shape[0]].set(v)


def discriminator_forward(params, x_nchw, label, image_size=32):
    # label embedding lookup (gather) kept in JAX glue
    emb = params["emb"][label].reshape(-1, 1, image_size, image_size)
    x = jnp.concatenate([x_nchw, emb], axis=1)                 # NCHW, C = channels+1
    x = jnp.transpose(x, (0, 2, 3, 1)).astype(jnp.bfloat16)    # NHWC bf16
    batch = x.shape[0]
    cin1 = x.shape[-1]

    # conv1 (bias) + LeakyReLU
    p, (n, oh, ow) = im2col_nhwc(x, 4, 2, 1)
    h = conv_bias_act(p, prep_weight(params["w1"], cin1, LANE),
                      prep_vec(params["b1"], LANE), "lrelu", jnp.bfloat16)
    h = h.reshape(n, oh, ow, LANE)

    # conv2 (no bias) + BN + LeakyReLU (fully fused)
    p, (n, oh, ow) = im2col_nhwc(h, 4, 2, 1)
    h = conv_bn_lrelu(p, prep_weight(params["w2"], LANE, LANE),
                      prep_vec(params["g2"], LANE), prep_vec(params["be2"], LANE),
                      jnp.bfloat16)
    h = h.reshape(n, oh, ow, LANE)

    # conv3 (no bias) + BN + LeakyReLU (fully fused)
    p, (n, oh, ow) = im2col_nhwc(h, 4, 2, 1)
    h = conv_bn_lrelu(p, prep_weight(params["w3"], LANE, LANE),
                      prep_vec(params["g3"], LANE), prep_vec(params["be3"], LANE),
                      jnp.bfloat16)
    h = h.reshape(n, oh, ow, LANE)

    # conv4 (bias) + Sigmoid
    p, _ = im2col_nhwc(h, 4, 1, 0)
    out = conv_bias_act(p, prep_weight(params["w4"], LANE, LANE),
                        prep_vec(params["b4"], LANE), "sigmoid", jnp.float32)
    # real output is channel 0; torch .squeeze() on (B,1,1,1) -> (B,)
    return out[:, 0].reshape(batch)


# ---------------------- deterministic parameter init ------------------------
def init_params(key, num_classes=10, channels=3, conv_dim=16, image_size=32):
    ks = jax.random.split(key, 7)

    def nrm(k, shape, s=0.05):
        return (s * jax.random.normal(k, shape)).astype(jnp.float32)

    return {
        "emb": nrm(ks[0], (num_classes, image_size * image_size), 1.0),
        "w1": nrm(ks[1], (conv_dim, channels + 1, 4, 4)),
        "b1": nrm(ks[2], (conv_dim,)),
        "w2": nrm(ks[3], (conv_dim * 2, conv_dim, 4, 4)),
        "g2": jnp.ones((conv_dim * 2,), jnp.float32),
        "be2": jnp.zeros((conv_dim * 2,), jnp.float32),
        "w3": nrm(ks[4], (conv_dim * 4, conv_dim * 2, 4, 4)),
        "g3": jnp.ones((conv_dim * 4,), jnp.float32),
        "be3": jnp.zeros((conv_dim * 4,), jnp.float32),
        "w4": nrm(ks[5], (1, conv_dim * 4, 4, 4)),
        "b4": nrm(ks[6], (1,)),
    }


# ---------------------- pure-JAX f32 reference for validation ---------------
def _conv_ref(x, w, b, s, p):
    out = lax.conv_general_dilated(
        x, w, (s, s), [(p, p), (p, p)],
        dimension_numbers=("NCHW", "OIHW", "NCHW"),
        precision=lax.Precision.HIGHEST)
    if b is not None:
        out = out + b.reshape(1, -1, 1, 1)
    return out


def _bn_ref(x, gamma, beta, eps=1e-5):
    mean = jnp.mean(x, axis=(0, 2, 3), keepdims=True)
    var = jnp.mean((x - mean) ** 2, axis=(0, 2, 3), keepdims=True)
    return (x - mean) / jnp.sqrt(var + eps) * gamma.reshape(1, -1, 1, 1) \
        + beta.reshape(1, -1, 1, 1)


def forward_ref(params, x, label, image_size=32):
    lrelu = lambda v: jnp.where(v > 0, v, 0.2 * v)
    emb = params["emb"][label].reshape(-1, 1, image_size, image_size)
    h = jnp.concatenate([x, emb], axis=1)
    h = lrelu(_conv_ref(h, params["w1"], params["b1"], 2, 1))
    h = lrelu(_bn_ref(_conv_ref(h, params["w2"], None, 2, 1), params["g2"], params["be2"]))
    h = lrelu(_bn_ref(_conv_ref(h, params["w3"], None, 2, 1), params["g3"], params["be3"]))
    h = jax.nn.sigmoid(_conv_ref(h, params["w4"], params["b4"], 1, 0))
    return h.reshape(h.shape[0])


# ------------------------------- main ---------------------------------------
if __name__ == "__main__":
    key = jax.random.PRNGKey(0)
    kp, kx, kl = jax.random.split(key, 3)

    B, C, S = 2, 3, 32  # image_size must be 32 for the 32->16->8->4->1 conv chain
    params = init_params(kp, num_classes=10, channels=C, conv_dim=16, image_size=S)
    x = jax.random.normal(kx, (B, C, S, S), jnp.float32)
    label = jax.random.randint(kl, (B,), 0, 10)

    fwd = jax.jit(functools.partial(discriminator_forward, image_size=S))
    out = jax.block_until_ready(fwd(params, x, label))
    ref = jax.block_until_ready(forward_ref(params, x, label, image_size=S))

    assert out.shape == (B,), out.shape
    assert bool(jnp.all(jnp.isfinite(out)))
    # tolerance accounts for bf16 MXU operands through 4 layers (f32 accumulate)
    assert bool(jnp.max(jnp.abs(out - ref)) < 5e-2), (out, ref)
    print("KERNEL_OK")
</pallas_src>

<mosaic_0001>
module attributes {stable_mosaic.version = 11 : i64} {
  func.func @_conv_bias_act_kernel(%arg0: i32, %arg1: memref<256x64xbf16, #tpu.memory_space<vmem>>, %arg2: memref<64x128xbf16, #tpu.memory_space<vmem>>, %arg3: memref<1x128xf32, #tpu.memory_space<vmem>>, %arg4: memref<256x128xbf16, #tpu.memory_space<vmem>>) attributes {dimension_semantics = [#tpu.dimension_semantics<parallel>], iteration_bounds = array<i64: 2>, scalar_prefetch = 0 : i64, scratch_operands = 0 : i64, tpu.core_type = #tpu.core_type<tc>, window_params = [{transform_indices = @transform_0, window_bounds = array<i64: 256, 64>}, {pipeline_mode = #tpu.pipeline_mode<synchronous>, transform_indices = @transform_1, window_bounds = array<i64: 64, 128>}, {pipeline_mode = #tpu.pipeline_mode<synchronous>, transform_indices = @transform_2, window_bounds = array<i64: 1, 128>}, {transform_indices = @transform_3, window_bounds = array<i64: 256, 128>}]} {
    %c0 = arith.constant 0 : index
    %c0_0 = arith.constant 0 : index
    %0 = vector.load %arg1[%c0, %c0_0] : memref<256x64xbf16, #tpu.memory_space<vmem>>, vector<256x64xbf16>
    %c0_1 = arith.constant 0 : index
    %c0_2 = arith.constant 0 : index
    %1 = vector.load %arg2[%c0_1, %c0_2] : memref<64x128xbf16, #tpu.memory_space<vmem>>, vector<64x128xbf16>
    %cst = arith.constant dense<0.000000e+00> : vector<256x128xf32>
    %2 = tpu.matmul %0, %1, %cst {dimension_numbers = #tpu.dot_dimension_numbers<[1], [0], [0], [1], [0, 0, 1, 1], [], []>} : vector<256x64xbf16>, vector<64x128xbf16>, vector<256x128xf32> -> vector<256x128xf32>
    %c0_3 = arith.constant 0 : index
    %c0_4 = arith.constant 0 : index
    %3 = vector.load %arg3[%c0_3, %c0_4] : memref<1x128xf32, #tpu.memory_space<vmem>>, vector<1x128xf32>
    %4 = vector.broadcast %3 : vector<1x128xf32> to vector<256x128xf32>
    %5 = arith.addf %2, %4 : vector<256x128xf32>
    %cst_5 = arith.constant 0.000000e+00 : f32
    %6 = vector.broadcast %cst_5 : f32 to vector<256x128xf32>
    %7 = arith.cmpf ogt, %5, %6 : vector<256x128xf32>
    %cst_6 = arith.constant 2.000000e-01 : f32
    %8 = vector.broadcast %cst_6 : f32 to vector<256x128xf32>
    %9 = arith.mulf %8, %5 : vector<256x128xf32>
    %10 = arith.select %7, %5, %9 : vector<256x128xi1>, vector<256x128xf32>
    %11 = arith.truncf %10 : vector<256x128xf32> to vector<256x128xbf16>
    %c0_7 = arith.constant 0 : index
    %c0_8 = arith.constant 0 : index
    %12 = vector.load %arg4[%c0_7, %c0_8] : memref<256x128xbf16, #tpu.memory_space<vmem>>, vector<256x128xbf16>
    tpu.vector_store %arg4[%c0_7, %c0_8], %11 {strides = array<i32>} : memref<256x128xbf16, #tpu.memory_space<vmem>>, vector<256x128xbf16>,
    return
  }
  func.func @transform_0(%arg0: i32) -> (i32, i32) {
    %c0_i32 = arith.constant 0 : i32
    %c0_i32_0 = arith.constant 0 : i32
    return %arg0, %c0_i32 : i32, i32
  }
  func.func @transform_1(%arg0: i32) -> (i32, i32) {
    %c0_i32 = arith.constant 0 : i32
    %c0_i32_0 = arith.constant 0 : i32
    %c0_i32_1 = arith.constant 0 : i32
    return %c0_i32, %c0_i32_0 : i32, i32
  }
  func.func @transform_2(%arg0: i32) -> (i32, i32) {
    %c0_i32 = arith.constant 0 : i32
    %c0_i32_0 = arith.constant 0 : i32
    %c0_i32_1 = arith.constant 0 : i32
    return %c0_i32, %c0_i32_0 : i32, i32
  }
  func.func @transform_3(%arg0: i32) -> (i32, i32) {
    %c0_i32 = arith.constant 0 : i32
    %c0_i32_0 = arith.constant 0 : i32
    return %arg0, %c0_i32 : i32, i32
  }
}

module attributes {stable_mosaic.version = 11 : i64} {
  func.func @_conv_bn_lrelu_kernel(%arg0: i32, %arg1: memref<128x2048xbf16, #tpu.memory_space<vmem>>, %arg2: memref<2048x128xbf16, #tpu.memory_space<vmem>>, %arg3: memref<1x128xf32, #tpu.memory_space<vmem>>, %arg4: memref<1x128xf32, #tpu.memory_space<vmem>>, %arg5: memref<128x128xbf16, #tpu.memory_space<vmem>>) attributes {dimension_semantics = [#tpu.dimension_semantics<arbitrary>], iteration_bounds = array<i64: 1>, scalar_prefetch = 0 : i64, scratch_operands = 0 : i64, tpu.core_type = #tpu.core_type<tc>, window_params = [{pipeline_mode = #tpu.pipeline_mode<synchronous>, transform_indices = @transform_0, window_bounds = array<i64: 128, 2048>}, {pipeline_mode = #tpu.pipeline_mode<synchronous>, transform_indices = @transform_1, window_bounds = array<i64: 2048, 128>}, {pipeline_mode = #tpu.pipeline_mode<synchronous>, transform_indices = @transform_2, window_bounds = array<i64: 1, 128>}, {pipeline_mode = #tpu.pipeline_mode<synchronous>, transform_indices = @transform_3, window_bounds = array<i64: 1, 128>}, {pipeline_mode = #tpu.pipeline_mode<synchronous>, transform_indices = @transform_4, window_bounds = array<i64: 128, 128>}]} {
    %c0 = arith.constant 0 : index
    %c0_0 = arith.constant 0 : index
    %0 = vector.load %arg1[%c0, %c0_0] : memref<128x2048xbf16, #tpu.memory_space<vmem>>, vector<128x2048xbf16>
    %c0_1 = arith.constant 0 : index
    %c0_2 = arith.constant 0 : index
    %1 = vector.load %arg2[%c0_1, %c0_2] : memref<2048x128xbf16, #tpu.memory_space<vmem>>, vector<2048x128xbf16>
    %cst = arith.constant dense<0.000000e+00> : vector<128x128xf32>
    %2 = tpu.matmul %0, %1, %cst {dimension_numbers = #tpu.dot_dimension_numbers<[1], [0], [0], [1], [0, 0, 1, 1], [], []>} : vector<128x2048xbf16>, vector<2048x128xbf16>, vector<128x128xf32> -> vector<128x128xf32>
    %cst_3 = arith.constant dense<0.000000e+00> : vector<128xf32>
    %3 = vector.multi_reduction <add>, %2, %cst_3 [0] : vector<128x128xf32> to vector<128xf32>
    %4 = vector.shape_cast %3 : vector<128xf32> to vector<1x128xf32>
    %cst_4 = arith.constant 1.280000e+02 : f32
    %5 = vector.broadcast %cst_4 : f32 to vector<1x128xf32>
    %6 = arith.divf %4, %5 : vector<1x128xf32>
    %7 = vector.broadcast %6 : vector<1x128xf32> to vector<128x128xf32>
    %8 = arith.subf %2, %7 : vector<128x128xf32>
    %9 = arith.mulf %8, %8 : vector<128x128xf32>
    %cst_5 = arith.constant dense<0.000000e+00> : vector<128xf32>
    %10 = vector.multi_reduction <add>, %9, %cst_5 [0] : vector<128x128xf32> to vector<128xf32>
    %11 = vector.shape_cast %10 : vector<128xf32> to vector<1x128xf32>
    %cst_6 = arith.constant 1.280000e+02 : f32
    %12 = vector.broadcast %cst_6 : f32 to vector<1x128xf32>
    %13 = arith.divf %11, %12 : vector<1x128xf32>
    %c0_7 = arith.constant 0 : index
    %c0_8 = arith.constant 0 : index
    %14 = vector.load %arg3[%c0_7, %c0_8] : memref<1x128xf32, #tpu.memory_space<vmem>>, vector<1x128xf32>
    %cst_9 = arith.constant 9.99999974E-6 : f32
    %15 = vector.broadcast %cst_9 : f32 to vector<1x128xf32>
    %16 = arith.addf %13, %15 : vector<1x128xf32>
    %17 = math.rsqrt %16 : vector<1x128xf32>
    %18 = arith.mulf %14, %17 : vector<1x128xf32>
    %c0_10 = arith.constant 0 : index
    %c0_11 = arith.constant 0 : index
    %19 = vector.load %arg4[%c0_10, %c0_11] : memref<1x128xf32, #tpu.memory_space<vmem>>, vector<1x128xf32>
    %20 = arith.mulf %6, %18 : vector<1x128xf32>
    %21 = arith.subf %19, %20 : vector<1x128xf32>
    %22 = vector.broadcast %18 : vector<1x128xf32> to vector<128x128xf32>
    %23 = arith.mulf %2, %22 : vector<128x128xf32>
    %24 = vector.broadcast %21 : vector<1x128xf32> to vector<128x128xf32>
    %25 = arith.addf %23, %24 : vector<128x128xf32>
    %cst_12 = arith.constant 0.000000e+00 : f32
    %26 = vector.broadcast %cst_12 : f32 to vector<128x128xf32>
    %27 = arith.cmpf ogt, %25, %26 : vector<128x128xf32>
    %cst_13 = arith.constant 2.000000e-01 : f32
    %28 = vector.broadcast %cst_13 : f32 to vector<128x128xf32>
    %29 = arith.mulf %28, %25 : vector<128x128xf32>
    %30 = arith.select %27, %25, %29 : vector<128x128xi1>, vector<128x128xf32>
    %31 = arith.truncf %30 : vector<128x128xf32> to vector<128x128xbf16>
    %c0_14 = arith.constant 0 : index
    %c0_15 = arith.constant 0 : index
    %32 = vector.load %arg5[%c0_14, %c0_15] : memref<128x128xbf16, #tpu.memory_space<vmem>>, vector<128x128xbf16>
    tpu.vector_store %arg5[%c0_14, %c0_15], %31 {strides = array<i32>} : memref<128x128xbf16, #tpu.memory_space<vmem>>, vector<128x128xbf16>,
    return
  }
  func.func @transform_0(%arg0: i32) -> (i32, i32) {
    %c0_i32 = arith.constant 0 : i32
    %c0_i32_0 = arith.constant 0 : i32
    %c0_i32_1 = arith.constant 0 : i32
    return %c0_i32, %c0_i32_0 : i32, i32
  }
  func.func @transform_1(%arg0: i32) -> (i32, i32) {
    %c0_i32 = arith.constant 0 : i32
    %c0_i32_0 = arith.constant 0 : i32
    %c0_i32_1 = arith.constant 0 : i32
    return %c0_i32, %c0_i32_0 : i32, i32
  }
  func.func @transform_2(%arg0: i32) -> (i32, i32) {
    %c0_i32 = arith.constant 0 : i32
    %c0_i32_0 = arith.constant 0 : i32
    %c0_i32_1 = arith.constant 0 : i32
    return %c0_i32, %c0_i32_0 : i32, i32
  }
  func.func @transform_3(%arg0: i32) -> (i32, i32) {
    %c0_i32 = arith.constant 0 : i32
    %c0_i32_0 = arith.constant 0 : i32
    %c0_i32_1 = arith.constant 0 : i32
    return %c0_i32, %c0_i32_0 : i32, i32
  }
  func.func @transform_4(%arg0: i32) -> (i32, i32) {
    %c0_i32 = arith.constant 0 : i32
    %c0_i32_0 = arith.constant 0 : i32
    %c0_i32_1 = arith.constant 0 : i32
    return %c0_i32, %c0_i32_0 : i32, i32
  }
}

module attributes {stable_mosaic.version = 11 : i64} {
  func.func @_conv_bn_lrelu_kernel(%arg0: i32, %arg1: memref<32x2048xbf16, #tpu.memory_space<vmem>>, %arg2: memref<2048x128xbf16, #tpu.memory_space<vmem>>, %arg3: memref<1x128xf32, #tpu.memory_space<vmem>>, %arg4: memref<1x128xf32, #tpu.memory_space<vmem>>, %arg5: memref<32x128xbf16, #tpu.memory_space<vmem>>) attributes {dimension_semantics = [#tpu.dimension_semantics<arbitrary>], iteration_bounds = array<i64: 1>, scalar_prefetch = 0 : i64, scratch_operands = 0 : i64, tpu.core_type = #tpu.core_type<tc>, window_params = [{pipeline_mode = #tpu.pipeline_mode<synchronous>, transform_indices = @transform_0, window_bounds = array<i64: 32, 2048>}, {pipeline_mode = #tpu.pipeline_mode<synchronous>, transform_indices = @transform_1, window_bounds = array<i64: 2048, 128>}, {pipeline_mode = #tpu.pipeline_mode<synchronous>, transform_indices = @transform_2, window_bounds = array<i64: 1, 128>}, {pipeline_mode = #tpu.pipeline_mode<synchronous>, transform_indices = @transform_3, window_bounds = array<i64: 1, 128>}, {pipeline_mode = #tpu.pipeline_mode<synchronous>, transform_indices = @transform_4, window_bounds = array<i64: 32, 128>}]} {
    %c0 = arith.constant 0 : index
    %c0_0 = arith.constant 0 : index
    %0 = vector.load %arg1[%c0, %c0_0] : memref<32x2048xbf16, #tpu.memory_space<vmem>>, vector<32x2048xbf16>
    %c0_1 = arith.constant 0 : index
    %c0_2 = arith.constant 0 : index
    %1 = vector.load %arg2[%c0_1, %c0_2] : memref<2048x128xbf16, #tpu.memory_space<vmem>>, vector<2048x128xbf16>
    %cst = arith.constant dense<0.000000e+00> : vector<32x128xf32>
    %2 = tpu.matmul %0, %1, %cst {dimension_numbers = #tpu.dot_dimension_numbers<[1], [0], [0], [1], [0, 0, 1, 1], [], []>} : vector<32x2048xbf16>, vector<2048x128xbf16>, vector<32x128xf32> -> vector<32x128xf32>
    %cst_3 = arith.constant dense<0.000000e+00> : vector<128xf32>
    %3 = vector.multi_reduction <add>, %2, %cst_3 [0] : vector<32x128xf32> to vector<128xf32>
    %4 = vector.shape_cast %3 : vector<128xf32> to vector<1x128xf32>
    %cst_4 = arith.constant 3.200000e+01 : f32
    %5 = vector.broadcast %cst_4 : f32 to vector<1x128xf32>
    %6 = arith.divf %4, %5 : vector<1x128xf32>
    %7 = vector.broadcast %6 : vector<1x128xf32> to vector<32x128xf32>
    %8 = arith.subf %2, %7 : vector<32x128xf32>
    %9 = arith.mulf %8, %8 : vector<32x128xf32>
    %cst_5 = arith.constant dense<0.000000e+00> : vector<128xf32>
    %10 = vector.multi_reduction <add>, %9, %cst_5 [0] : vector<32x128xf32> to vector<128xf32>
    %11 = vector.shape_cast %10 : vector<128xf32> to vector<1x128xf32>
    %cst_6 = arith.constant 3.200000e+01 : f32
    %12 = vector.broadcast %cst_6 : f32 to vector<1x128xf32>
    %13 = arith.divf %11, %12 : vector<1x128xf32>
    %c0_7 = arith.constant 0 : index
    %c0_8 = arith.constant 0 : index
    %14 = vector.load %arg3[%c0_7, %c0_8] : memref<1x128xf32, #tpu.memory_space<vmem>>, vector<1x128xf32>
    %cst_9 = arith.constant 9.99999974E-6 : f32
    %15 = vector.broadcast %cst_9 : f32 to vector<1x128xf32>
    %16 = arith.addf %13, %15 : vector<1x128xf32>
    %17 = math.rsqrt %16 : vector<1x128xf32>
    %18 = arith.mulf %14, %17 : vector<1x128xf32>
    %c0_10 = arith.constant 0 : index
    %c0_11 = arith.constant 0 : index
    %19 = vector.load %arg4[%c0_10, %c0_11] : memref<1x128xf32, #tpu.memory_space<vmem>>, vector<1x128xf32>
    %20 = arith.mulf %6, %18 : vector<1x128xf32>
    %21 = arith.subf %19, %20 : vector<1x128xf32>
    %22 = vector.broadcast %18 : vector<1x128xf32> to vector<32x128xf32>
    %23 = arith.mulf %2, %22 : vector<32x128xf32>
    %24 = vector.broadcast %21 : vector<1x128xf32> to vector<32x128xf32>
    %25 = arith.addf %23, %24 : vector<32x128xf32>
    %cst_12 = arith.constant 0.000000e+00 : f32
    %26 = vector.broadcast %cst_12 : f32 to vector<32x128xf32>
    %27 = arith.cmpf ogt, %25, %26 : vector<32x128xf32>
    %cst_13 = arith.constant 2.000000e-01 : f32
    %28 = vector.broadcast %cst_13 : f32 to vector<32x128xf32>
    %29 = arith.mulf %28, %25 : vector<32x128xf32>
    %30 = arith.select %27, %25, %29 : vector<32x128xi1>, vector<32x128xf32>
    %31 = arith.truncf %30 : vector<32x128xf32> to vector<32x128xbf16>
    %c0_14 = arith.constant 0 : index
    %c0_15 = arith.constant 0 : index
    %32 = vector.load %arg5[%c0_14, %c0_15] : memref<32x128xbf16, #tpu.memory_space<vmem>>, vector<32x128xbf16>
    tpu.vector_store %arg5[%c0_14, %c0_15], %31 {strides = array<i32>} : memref<32x128xbf16, #tpu.memory_space<vmem>>, vector<32x128xbf16>,
    return
  }
  func.func @transform_0(%arg0: i32) -> (i32, i32) {
    %c0_i32 = arith.constant 0 : i32
    %c0_i32_0 = arith.constant 0 : i32
    %c0_i32_1 = arith.constant 0 : i32
    return %c0_i32, %c0_i32_0 : i32, i32
  }
  func.func @transform_1(%arg0: i32) -> (i32, i32) {
    %c0_i32 = arith.constant 0 : i32
    %c0_i32_0 = arith.constant 0 : i32
    %c0_i32_1 = arith.constant 0 : i32
    return %c0_i32, %c0_i32_0 : i32, i32
  }
  func.func @transform_2(%arg0: i32) -> (i32, i32) {
    %c0_i32 = arith.constant 0 : i32
    %c0_i32_0 = arith.constant 0 : i32
    %c0_i32_1 = arith.constant 0 : i32
    return %c0_i32, %c0_i32_0 : i32, i32
  }
  func.func @transform_3(%arg0: i32) -> (i32, i32) {
    %c0_i32 = arith.constant 0 : i32
    %c0_i32_0 = arith.constant 0 : i32
    %c0_i32_1 = arith.constant 0 : i32
    return %c0_i32, %c0_i32_0 : i32, i32
  }
  func.func @transform_4(%arg0: i32) -> (i32, i32) {
    %c0_i32 = arith.constant 0 : i32
    %c0_i32_0 = arith.constant 0 : i32
    %c0_i32_1 = arith.constant 0 : i32
    return %c0_i32, %c0_i32_0 : i32, i32
  }
}

module attributes {stable_mosaic.version = 11 : i64} {
  func.func @_conv_bias_act_kernel(%arg0: i32, %arg1: memref<2x2048xbf16, #tpu.memory_space<vmem>>, %arg2: memref<2048x128xbf16, #tpu.memory_space<vmem>>, %arg3: memref<1x128xf32, #tpu.memory_space<vmem>>, %arg4: memref<2x128xf32, #tpu.memory_space<vmem>>) attributes {dimension_semantics = [#tpu.dimension_semantics<parallel>], iteration_bounds = array<i64: 1>, scalar_prefetch = 0 : i64, scratch_operands = 0 : i64, tpu.core_type = #tpu.core_type<tc>, window_params = [{transform_indices = @transform_0, window_bounds = array<i64: 2, 2048>}, {pipeline_mode = #tpu.pipeline_mode<synchronous>, transform_indices = @transform_1, window_bounds = array<i64: 2048, 128>}, {pipeline_mode = #tpu.pipeline_mode<synchronous>, transform_indices = @transform_2, window_bounds = array<i64: 1, 128>}, {transform_indices = @transform_3, window_bounds = array<i64: 2, 128>}]} {
    %c0 = arith.constant 0 : index
    %c0_0 = arith.constant 0 : index
    %0 = vector.load %arg1[%c0, %c0_0] : memref<2x2048xbf16, #tpu.memory_space<vmem>>, vector<2x2048xbf16>
    %c0_1 = arith.constant 0 : index
    %c0_2 = arith.constant 0 : index
    %1 = vector.load %arg2[%c0_1, %c0_2] : memref<2048x128xbf16, #tpu.memory_space<vmem>>, vector<2048x128xbf16>
    %cst = arith.constant dense<0.000000e+00> : vector<2x128xf32>
    %2 = tpu.matmul %0, %1, %cst {dimension_numbers = #tpu.dot_dimension_numbers<[1], [0], [0], [1], [0, 0, 1, 1], [], []>} : vector<2x2048xbf16>, vector<2048x128xbf16>, vector<2x128xf32> -> vector<2x128xf32>
    %c0_3 = arith.constant 0 : index
    %c0_4 = arith.constant 0 : index
    %3 = vector.load %arg3[%c0_3, %c0_4] : memref<1x128xf32, #tpu.memory_space<vmem>>, vector<1x128xf32>
    %4 = vector.broadcast %3 : vector<1x128xf32> to vector<2x128xf32>
    %5 = arith.addf %2, %4 : vector<2x128xf32>
    %6 = math.absf %5 : vector<2x128xf32>
    %cst_5 = arith.constant 0.000000e+00 : f32
    %7 = vector.broadcast %cst_5 : f32 to vector<2x128xf32>
    %8 = arith.subf %7, %6 : vector<2x128xf32>
    %9 = math.exp %8 : vector<2x128xf32>
    %cst_6 = arith.constant 1.000000e+00 : f32
    %10 = vector.broadcast %cst_6 : f32 to vector<2x128xf32>
    %11 = arith.addf %10, %9 : vector<2x128xf32>
    %12 = tpu.reciprocal %11 {approx = true} : vector<2x128xf32> -> vector<2x128xf32>
    %cst_7 = arith.constant 0.000000e+00 : f32
    %13 = vector.broadcast %cst_7 : f32 to vector<2x128xf32>
    %14 = arith.cmpf oge, %5, %13 : vector<2x128xf32>
    %15 = arith.mulf %9, %12 : vector<2x128xf32>
    %16 = arith.select %14, %12, %15 : vector<2x128xi1>, vector<2x128xf32>
    %c0_8 = arith.constant 0 : index
    %c0_9 = arith.constant 0 : index
    %17 = vector.load %arg4[%c0_8, %c0_9] : memref<2x128xf32, #tpu.memory_space<vmem>>, vector<2x128xf32>
    tpu.vector_store %arg4[%c0_8, %c0_9], %16 {strides = array<i32>} : memref<2x128xf32, #tpu.memory_space<vmem>>, vector<2x128xf32>,
    return
  }
  func.func @transform_0(%arg0: i32) -> (i32, i32) {
    %c0_i32 = arith.constant 0 : i32
    %c0_i32_0 = arith.constant 0 : i32
    return %arg0, %c0_i32 : i32, i32
  }
  func.func @transform_1(%arg0: i32) -> (i32, i32) {
    %c0_i32 = arith.constant 0 : i32
    %c0_i32_0 = arith.constant 0 : i32
    %c0_i32_1 = arith.constant 0 : i32
    return %c0_i32, %c0_i32_0 : i32, i32
  }
  func.func @transform_2(%arg0: i32) -> (i32, i32) {
    %c0_i32 = arith.constant 0 : i32
    %c0_i32_0 = arith.constant 0 : i32
    %c0_i32_1 = arith.constant 0 : i32
    return %c0_i32, %c0_i32_0 : i32, i32
  }
  func.func @transform_3(%arg0: i32) -> (i32, i32) {
    %c0_i32 = arith.constant 0 : i32
    %c0_i32_0 = arith.constant 0 : i32
    return %arg0, %c0_i32 : i32, i32
  }
}

</mosaic_0001>

<llo_original>
// kernel: discriminator_forward.4
$region0: #{discriminator_forward.4}
  #allocation0 [shape = 'u32[]', space=smem, size = 0x4, offset = 0x4, fixed_abs, tag = 'smem constant byte address 0x4 - core index']
  #allocation1 [shape = 'u32[144,128]{1,0:T(1,128)}', space=vmem, size = 0x12000, scoped, tag = 'internal scratch']
  %s0 = inlined_call_operand.vmem [shape: bf16[512,64], index: 0, kind: input, shape index: {}]
  %s1 = inlined_call_operand.vmem [shape: bf16[64,128], index: 1, kind: input, shape index: {}]
  %s2 = inlined_call_operand.vmem [shape: f32[1,128], index: 2, kind: input, shape index: {}]
  %s3 = inlined_call_operand.vmem [shape: bf16[512,128], index: 3, kind: output, shape index: {}]
  %s4 = sld [smem:[#allocation0]]
  $region45: #{discriminator_forward.4} parent=0
    _
  %s6 = ssub.s32 1, %s4
  %s7 = scalar_select 0, %s6, %s4
  loop: start=0, step=1, limit=4
  $region2: #{discriminator_forward.4} parent=0 // loop_pre_header
    _
  $region3: #{discriminator_forward.4} parent=0 // loop_header
    %s9 = sphi 0, %s13
    %p10 = scmp.ge.s32.totalorder %s9, 4
    %s19 = sphi 0, %s21
    %s22 = sphi 0, %s19
    %s23 = sphi 0, %s22
    %s39 = sphi 0, %s23
    %s43 = sphi 0, %s43
    %s45 = sphi 0, %s43
    %s46 = sphi 0, %s45
    %s60 = sphi 0, %s46
    %s64 = sphi 0, %s64
    %s66 = sphi 0, %s64
    %s67 = sphi 0, %s66
    %s81 = sphi 0, %s67
    %s87 = sphi 0, %s89
    %s90 = sphi 0, %s87
    %s91 = sphi 0, %s90
    %s107 = sphi 0, %s91
  $region4: #{discriminator_forward.4} parent=0 // loop_header_branch
    %12 = sbr.rel (%p10) target = $region8
  $region5: #{discriminator_forward.4} parent=0 // loop_body
    %s14 = ssub.s32 %s9, 1
    %s15 = ssub.s32 %s9, 2
    %s16 = sadd.s32 %s9, 1
    %s17 = ssub.s32 %s9, %s16
    %p18 = scmp.eq.s32.totalorder %s17, 0
    %s20 = sadd.s32 %s19, 1
    %s21 = scalar_select %p18, %s19, %s20
    %p24 = pneg %p18
    %p25 = scmp.eq.s32.totalorder %s9, 1
    %p26 = por %p24, %p25
    %p27 = scmp.ne.s32.totalorder %s19, %s22
    %p28 = scmp.eq.s32.totalorder %s9, 0
    %p29 = por %p27, %p28
    %p30 = scmp.ne.s32.totalorder %s19, %s22
    %p31 = scmp.eq.s32.totalorder %s14, 1
    %p32 = por %p30, %p31
    %p33 = scmp.ne.s32.totalorder %s22, %s23
    %p34 = scmp.eq.s32.totalorder %s14, 0
    %p35 = por %p33, %p34
    %p36 = scmp.ne.s32.totalorder %s22, %s23
    %p37 = scmp.eq.s32.totalorder %s15, 1
    %p38 = por %p36, %p37
    %p40 = scmp.ne.s32.totalorder %s23, %s39
    %p41 = scmp.eq.s32.totalorder %s15, 0
    %p42 = por %p40, %p41
    %s44 = sadd.s32 %s43, 1
    %p47 = scmp.eq.s32.totalorder %s9, 1
    %p48 = scmp.ne.s32.totalorder %s43, %s45
    %p49 = scmp.eq.s32.totalorder %s9, 0
    %p50 = por %p48, %p49
    %p51 = scmp.ne.s32.totalorder %s43, %s45
    %p52 = scmp.eq.s32.totalorder %s14, 1
    %p53 = por %p51, %p52
    %p54 = scmp.ne.s32.totalorder %s45, %s46
    %p55 = scmp.eq.s32.totalorder %s14, 0
    %p56 = por %p54, %p55
    %p57 = scmp.ne.s32.totalorder %s45, %s46
    %p58 = scmp.eq.s32.totalorder %s15, 1
    %p59 = por %p57, %p58
    %p61 = scmp.ne.s32.totalorder %s46, %s60
    %p62 = scmp.eq.s32.totalorder %s15, 0
    %p63 = por %p61, %p62
    %s65 = sadd.s32 %s64, 1
    %p68 = scmp.eq.s32.totalorder %s9, 1
    %p69 = scmp.ne.s32.totalorder %s64, %s66
    %p70 = scmp.eq.s32.totalorder %s9, 0
    %p71 = por %p69, %p70
    %p72 = scmp.ne.s32.totalorder %s64, %s66
    %p73 = scmp.eq.s32.totalorder %s14, 1
    %p74 = por %p72, %p73
    %p75 = scmp.ne.s32.totalorder %s66, %s67
    %p76 = scmp.eq.s32.totalorder %s14, 0
    %p77 = por %p75, %p76
    %p78 = scmp.ne.s32.totalorder %s66, %s67
    %p79 = scmp.eq.s32.totalorder %s15, 1
    %p80 = por %p78, %p79
    %p82 = scmp.ne.s32.totalorder %s67, %s81
    %p83 = scmp.eq.s32.totalorder %s15, 0
    %p84 = por %p82, %p83
    %s85 = ssub.s32 %s9, %s16
    %p86 = scmp.eq.s32.totalorder %s85, 0
    %s88 = sadd.s32 %s87, 1
    %s89 = scalar_select %p86, %s87, %s88
    %p92 = pneg %p86
    %p93 = scmp.eq.s32.totalorder %s9, 1
    %p94 = por %p92, %p93
    %p95 = scmp.ne.s32.totalorder %s87, %s90
    %p96 = scmp.eq.s32.totalorder %s9, 0
    %p97 = por %p95, %p96
    %p98 = scmp.ne.s32.totalorder %s87, %s90
    %p99 = scmp.eq.s32.totalorder %s14, 1
    %p100 = por %p98, %p99
    %p101 = scmp.ne.s32.totalorder %s90, %s91
    %p102 = scmp.eq.s32.totalorder %s14, 0
    %p103 = por %p101, %p102
    %p104 = scmp.ne.s32.totalorder %s90, %s91
    %p105 = scmp.eq.s32.totalorder %s15, 1
    %p106 = por %p104, %p105
    %p108 = scmp.ne.s32.totalorder %s91, %s107
    %p109 = scmp.eq.s32.totalorder %s15, 0
    %p110 = por %p108, %p109
    %p111 = scmp.le.s32.totalorder 1, %s9
    %p112 = scmp.lt.s32.totalorder %s9, 3
    %p113 = pnand %p111, %p112
    %p114 = pneg %p113
    // Predicated region
    $region9: #{discriminator_forward.4} parent=5 // pred_check
      _
    $region10: #{discriminator_forward.4} parent=5 // pred_check_branch
      %116 = sbr.rel (%p113) target = $region12
    $region11: #{discriminator_forward.4} parent=5 // pred_region
      %s117 = ssub.s32 %s9, 1
      // Predicated region
      $region13: #{discriminator_forward.4} parent=11 // pred_check
        %p118 = pneg %p56
      $region14: #{discriminator_forward.4} parent=11 // pred_check_branch
        %120 = sbr.rel (%p118) target = $region16
      $region15: #{discriminator_forward.4} parent=11 // pred_region
        _
      $region16: #{discriminator_forward.4} parent=11 // pred_fallthru
        _
      // Predicated region
      $region17: #{discriminator_forward.4} parent=11 // pred_check
        %p121 = pneg %p77
      $region18: #{discriminator_forward.4} parent=11 // pred_check_branch
        %123 = sbr.rel (%p121) target = $region20
      $region19: #{discriminator_forward.4} parent=11 // pred_region
        _
      $region20: #{discriminator_forward.4} parent=11 // pred_fallthru
        _
    $region12: #{discriminator_forward.4} parent=5 // pred_fallthru
      _
    %p124 = scmp.lt.s32.totalorder %s9, 2
    // Predicated region
    $region21: #{discriminator_forward.4} parent=5 // pred_check
      %p125 = pneg %p124
    $region22: #{discriminator_forward.4} parent=5 // pred_check_branch
      %127 = sbr.rel (%p125) target = $region24
    $region23: #{discriminator_forward.4} parent=5 // pred_region
      // Predicated region
      $region25: #{discriminator_forward.4} parent=23 // pred_check
        %p128 = pneg %p29
      $region26: #{discriminator_forward.4} parent=23 // pred_check_branch
        %130 = sbr.rel (%p128) target = $region28
      $region27: #{discriminator_forward.4} parent=23 // pred_region
        %s131 = smul.u32 32, %s9
        %p132 = scmp.lt.s32.totalorder %s131, 63
        %s133 = scalar_select %p132, %s131, 63
        %s134 = smul.addr %s133, 4
        %s135 = scalar_lea.vmem %s0, %s134
        %s136 = smul.u32 32, %s9
      $region28: #{discriminator_forward.4} parent=23 // pred_fallthru
        _
    $region24: #{discriminator_forward.4} parent=5 // pred_fallthru
      _
    %p137 = scmp.le.s32.totalorder 1, %s9
    %p138 = scmp.lt.s32.totalorder %s9, 3
    %p139 = pnand %p137, %p138
    %p140 = pneg %p139
    // Predicated region
    $region29: #{discriminator_forward.4} parent=5 // pred_check
      _
    $region30: #{discriminator_forward.4} parent=5 // pred_check_branch
      %142 = sbr.rel (%p139) target = $region32
    $region31: #{discriminator_forward.4} parent=5 // pred_region
      %s143 = ssub.s32 %s9, 1
      %s144 = smul.u32 32, %s14
      %p145 = scmp.lt.s32.totalorder %s144, 63
      %s146 = scalar_select %p145, %s144, 63
      %s147 = smul.addr %s146, 4
      %s148 = scalar_lea.vmem %s0, %s147
      %p149 = pneg %p35
      %p150 = pneg %p32
      %p151 = pneg %p56
      %p152 = pneg %p53
      %p153 = pneg %p77
      %p154 = pneg %p74
      %p155 = pneg %p103
      %p156 = pneg %p100
      %s157 = smul.u32 32, %s14
      %p158 = scmp.lt.s32.totalorder %s157, 63
      %s159 = scalar_select %p158, %s157, 63
      %s160 = smul.addr %s159, 4
      %s161 = scalar_lea.vmem %s3, %s160
      %s162 = smul.u32 32, %s14
      %p163 = scmp.lt.s32.totalorder %s162, 63
      %s164 = scalar_select %p163, %s162, 63
      %s165 = smul.addr %s164, 4
      %s166 = scalar_lea.vmem %s0, %s165
      %s167 = smul.u32 32, %s14
      %s168 = smul.u32 32, %s14
      %p169 = scmp.lt.s32.totalorder %s168, 63
      %s170 = scalar_select %p169, %s168, 63
      %s171 = smul.addr %s170, 4
      %s172 = scalar_lea.vmem %s3, %s171
      %s173 = smul.u32 32, %s14
      %v175 = vld [vmem:[%s166] sm:$0xf]
      %v176 = vld [vmem:[%s166 + $0x4] sm:$0xf]
      %v177 = vld [vmem:[%s166 + $0x8] sm:$0xf]
      %v178 = vld [vmem:[%s166 + $0xc] sm:$0xf]
      %v179 = vld [vmem:[%s166 + $0x10] sm:$0xf]
      %v180 = vld [vmem:[%s166 + $0x14] sm:$0xf]
      %v181 = vld [vmem:[%s166 + $0x18] sm:$0xf]
      %v182 = vld [vmem:[%s166 + $0x1c] sm:$0xf]
      %v183 = vld [vmem:[%s166 + $0x20] sm:$0xf]
      %v184 = vld [vmem:[%s166 + $0x24] sm:$0xf]
      %v185 = vld [vmem:[%s166 + $0x28] sm:$0xf]
      %v186 = vld [vmem:[%s166 + $0x2c] sm:$0xf]
      %v187 = vld [vmem:[%s166 + $0x30] sm:$0xf]
      %v188 = vld [vmem:[%s166 + $0x34] sm:$0xf]
      %v189 = vld [vmem:[%s166 + $0x38] sm:$0xf]
      %v190 = vld [vmem:[%s166 + $0x3c] sm:$0xf]
      %v191 = vld [vmem:[%s166 + $0x40] sm:$0xf]
      %v192 = vld [vmem:[%s166 + $0x44] sm:$0xf]
      %v193 = vld [vmem:[%s166 + $0x48] sm:$0xf]
      %v194 = vld [vmem:[%s166 + $0x4c] sm:$0xf]
      %v195 = vld [vmem:[%s166 + $0x50] sm:$0xf]
      %v196 = vld [vmem:[%s166 + $0x54] sm:$0xf]
      %v197 = vld [vmem:[%s166 + $0x58] sm:$0xf]
      %v198 = vld [vmem:[%s166 + $0x5c] sm:$0xf]
      %v199 = vld [vmem:[%s166 + $0x60] sm:$0xf]
      %v200 = vld [vmem:[%s166 + $0x64] sm:$0xf]
      %v201 = vld [vmem:[%s166 + $0x68] sm:$0xf]
      %v202 = vld [vmem:[%s166 + $0x6c] sm:$0xf]
      %v203 = vld [vmem:[%s166 + $0x70] sm:$0xf]
      %v204 = vld [vmem:[%s166 + $0x74] sm:$0xf]
      %v205 = vld [vmem:[%s166 + $0x78] sm:$0xf]
      %v206 = vld [vmem:[%s166 + $0x7c] sm:$0xf]
      %v207 = vld [vmem:[%s1] sm:$0xf]
      %v208 = vld [vmem:[%s1 + $0x4] sm:$0xf]
      %v209 = vld [vmem:[%s1 + $0x8] sm:$0xf]
      %v210 = vld [vmem:[%s1 + $0xc] sm:$0xf]
      %v211 = vld [vmem:[%s1 + $0x10] sm:$0xf]
      %v212 = vld [vmem:[%s1 + $0x14] sm:$0xf]
      %v213 = vld [vmem:[%s1 + $0x18] sm:$0xf]
      %v214 = vld [vmem:[%s1 + $0x1c] sm:$0xf]
      %v215 = vld [vmem:[%s2] sm:$0x1]
      %v217 = vlaneseq
      %v218 = vshrl.u32 %v217, 7
      %v219 = vsub.s32 0, %v218
      %v220 = vrot.slane %v215, %v219
      %v254 = vunpack.c.l.b16 %v175
      %v255 = vunpack.c.l.b16 %v176
      %v256 = vunpack.c.l.b16 %v177
      %v257 = vunpack.c.l.b16 %v178
      %v258 = vunpack.c.l.b16 %v179
      %v259 = vunpack.c.l.b16 %v180
      %v260 = vunpack.c.l.b16 %v181
      %v261 = vunpack.c.l.b16 %v182
      %v262 = vunpack.c.l.b16 %v183
      %v263 = vunpack.c.l.b16 %v184
      %v264 = vunpack.c.l.b16 %v185
      %v265 = vunpack.c.l.b16 %v186
      %v266 = vunpack.c.l.b16 %v187
      %v267 = vunpack.c.l.b16 %v188
      %v268 = vunpack.c.l.b16 %v189
      %v269 = vunpack.c.l.b16 %v190
      %v270 = vunpack.c.l.b16 %v191
      %v271 = vunpack.c.l.b16 %v192
      %v272 = vunpack.c.l.b16 %v193
      %v273 = vunpack.c.l.b16 %v194
      %v274 = vunpack.c.l.b16 %v195
      %v275 = vunpack.c.l.b16 %v196
      %v276 = vunpack.c.l.b16 %v197
      %v277 = vunpack.c.l.b16 %v198
      %v278 = vunpack.c.l.b16 %v199
      %v279 = vunpack.c.l.b16 %v200
      %v280 = vunpack.c.l.b16 %v201
      %v281 = vunpack.c.l.b16 %v202
      %v282 = vunpack.c.l.b16 %v203
      %v283 = vunpack.c.l.b16 %v204
      %v284 = vunpack.c.l.b16 %v205
      %v285 = vunpack.c.l.b16 %v206
      %v286 = vpack.c.b16 %v255, %v254
      %v287 = vpack.c.b16 %v257, %v256
      %v288 = vpack.c.b16 %v259, %v258
      %v289 = vpack.c.b16 %v261, %v260
      %v290 = vpack.c.b16 %v263, %v262
      %v291 = vpack.c.b16 %v265, %v264
      %v292 = vpack.c.b16 %v267, %v266
      %v293 = vpack.c.b16 %v269, %v268
      %v294 = vpack.c.b16 %v271, %v270
      %v295 = vpack.c.b16 %v273, %v272
      %v296 = vpack.c.b16 %v275, %v274
      %v297 = vpack.c.b16 %v277, %v276
      %v298 = vpack.c.b16 %v279, %v278
      %v299 = vpack.c.b16 %v281, %v280
      %v300 = vpack.c.b16 %v283, %v282
      %v301 = vpack.c.b16 %v285, %v284
      %v310 = vunpack.c.l.b16 %v207
      %v311 = vunpack.c.l.b16 %v208
      %v312 = vunpack.c.l.b16 %v209
      %v313 = vunpack.c.l.b16 %v210
      %v314 = vunpack.c.l.b16 %v211
      %v315 = vunpack.c.l.b16 %v212
      %v316 = vunpack.c.l.b16 %v213
      %v317 = vunpack.c.l.b16 %v214
      %v318 = vpack.c.b16 %v311, %v310
      %v319 = vpack.c.b16 %v313, %v312
      %v320 = vpack.c.b16 %v315, %v314
      %v321 = vpack.c.b16 %v317, %v316
      %vm326 = vcmask 523264
      %v328 = vsel %vm326, %v286, 0
      %v331 = vsel %vm326, %v287, 0
      %v334 = vsel %vm326, %v288, 0
      %v337 = vsel %vm326, %v289, 0
      %v340 = vsel %vm326, %v290, 0
      %v343 = vsel %vm326, %v291, 0
      %v346 = vsel %vm326, %v292, 0
      %v349 = vsel %vm326, %v293, 0
      %v352 = vsel %vm326, %v294, 0
      %v355 = vsel %vm326, %v295, 0
      %v358 = vsel %vm326, %v296, 0
      %v361 = vsel %vm326, %v297, 0
      %v364 = vsel %vm326, %v298, 0
      %v367 = vsel %vm326, %v299, 0
      %v370 = vsel %vm326, %v300, 0
      %v373 = vsel %vm326, %v301, 0
      %375 = vmatprep.subr.bf16.mxu0 0
      %376 = vmatpush1.bf16.msra.mxu0 %v318
      %377 = vmatprep.subr.bf16.mxu0 0
      %378 = vmatpush1.bf16.msra.mxu0 %v319
      %379 = vmatprep.subr.bf16.mxu0 0
      %380 = vmatpush1.bf16.msra.mxu0 %v320
      %381 = vmatprep.subr.bf16.mxu0 0
      %382 = vmatpush1.bf16.msra.mxu0 %v321
      %383 = vmatprep.subr.bf16.mxu0 0
      %384 = vmatpush1.bf16.msra.mxu0 0
      %385 = vmatprep.subr.bf16.mxu0 0
      %386 = vmatpush1.bf16.msra.mxu0 0
      %387 = vmatprep.subr.bf16.mxu0 0
      %388 = vmatpush1.bf16.msra.mxu0 0
      %389 = vmatprep.subr.bf16.mxu0 0
      %390 = vmatpush1.bf16.msra.mxu0 0
      %391 = vmatprep.subr.bf16.mxu0 0
      %392 = vmatpush1.bf16.msra.mxu0 0
      %393 = vmatprep.subr.bf16.mxu0 0
      %394 = vmatpush1.bf16.msra.mxu0 0
      %395 = vmatprep.subr.bf16.mxu0 0
      %396 = vmatpush1.bf16.msra.mxu0 0
      %397 = vmatprep.subr.bf16.mxu0 0
      %398 = vmatpush1.bf16.msra.mxu0 0
      %399 = vmatprep.subr.bf16.mxu0 0
      %400 = vmatpush1.bf16.msra.mxu0 0
      %401 = vmatprep.subr.bf16.mxu0 0
      %402 = vmatpush1.bf16.msra.mxu0 0
      %403 = vmatprep.subr.bf16.mxu0 0
      %404 = vmatpush1.bf16.msra.mxu0 0
      %405 = vmatprep.subr.bf16.mxu0 0
      %406 = vmatpush1.bf16.msra.mxu0 0
      %407 = vmatprep.mubr.bf16.mxu0 0
      %408 = vmatmul.mubr.bf16.gmra.mrb[0].mxu0 %v328
      %v409 = vpop.f32.mrb[0].mxu0
      %v410 = vadd.f32 %v220, %v409
      %v411 = vpop.f32.mrb[0].mxu0
      %v412 = vpop.f32.mrb[0].mxu0
      %v413 = vadd.f32 %v220, %v412
      %v414 = vpop.f32.mrb[0].mxu0
      %415 = vmatprep.mubr.bf16.mxu0 0
      %416 = vmatmul.mubr.bf16.gmra.mrb[0].mxu0 %v331
      %v417 = vpop.f32.mrb[0].mxu0
      %v418 = vadd.f32 %v220, %v417
      %v419 = vpop.f32.mrb[0].mxu0
      %v420 = vpop.f32.mrb[0].mxu0
      %v421 = vadd.f32 %v220, %v420
      %v422 = vpop.f32.mrb[0].mxu0
      %423 = vmatprep.mubr.bf16.mxu0 0
      %424 = vmatmul.mubr.bf16.gmra.mrb[0].mxu0 %v334
      %v425 = vpop.f32.mrb[0].mxu0
      %v426 = vadd.f32 %v220, %v425
      %v427 = vpop.f32.mrb[0].mxu0
      %v428 = vpop.f32.mrb[0].mxu0
      %v429 = vadd.f32 %v220, %v428
      %v430 = vpop.f32.mrb[0].mxu0
      %431 = vmatprep.mubr.bf16.mxu0 0
      %432 = vmatmul.mubr.bf16.gmra.mrb[0].mxu0 %v337
      %v433 = vpop.f32.mrb[0].mxu0
      %v434 = vadd.f32 %v220, %v433
      %v435 = vpop.f32.mrb[0].mxu0
      %v436 = vpop.f32.mrb[0].mxu0
      %v437 = vadd.f32 %v220, %v436
      %v438 = vpop.f32.mrb[0].mxu0
      %439 = vmatprep.mubr.bf16.mxu0 0
      %440 = vmatmul.mubr.bf16.gmra.mrb[0].mxu0 %v340
      %v441 = vpop.f32.mrb[0].mxu0
      %v442 = vadd.f32 %v220, %v441
      %v443 = vpop.f32.mrb[0].mxu0
      %v444 = vpop.f32.mrb[0].mxu0
      %v445 = vadd.f32 %v220, %v444
      %v446 = vpop.f32.mrb[0].mxu0
      %447 = vmatprep.mubr.bf16.mxu0 0
      %448 = vmatmul.mubr.bf16.gmra.mrb[0].mxu0 %v343
      %v449 = vpop.f32.mrb[0].mxu0
      %v450 = vadd.f32 %v220, %v449
      %v451 = vpop.f32.mrb[0].mxu0
      %v452 = vpop.f32.mrb[0].mxu0
      %v453 = vadd.f32 %v220, %v452
      %v454 = vpop.f32.mrb[0].mxu0
      %455 = vmatprep.mubr.bf16.mxu0 0
      %456 = vmatmul.mubr.bf16.gmra.mrb[0].mxu0 %v346
      %v457 = vpop.f32.mrb[0].mxu0
      %v458 = vadd.f32 %v220, %v457
      %v459 = vpop.f32.mrb[0].mxu0
      %v460 = vpop.f32.mrb[0].mxu0
      %v461 = vadd.f32 %v220, %v460
      %v462 = vpop.f32.mrb[0].mxu0
      %463 = vmatprep.mubr.bf16.mxu0 0
      %464 = vmatmul.mubr.bf16.gmra.mrb[0].mxu0 %v349
      %v465 = vpop.f32.mrb[0].mxu0
      %v466 = vadd.f32 %v220, %v465
      %v467 = vpop.f32.mrb[0].mxu0
      %v468 = vpop.f32.mrb[0].mxu0
      %v469 = vadd.f32 %v220, %v468
      %v470 = vpop.f32.mrb[0].mxu0
      %471 = vmatprep.mubr.bf16.mxu0 0
      %472 = vmatmul.mubr.bf16.gmra.mrb[0].mxu0 %v352
      %v473 = vpop.f32.mrb[0].mxu0
      %v474 = vadd.f32 %v220, %v473
      %v475 = vpop.f32.mrb[0].mxu0
      %v476 = vpop.f32.mrb[0].mxu0
      %v477 = vadd.f32 %v220, %v476
      %v478 = vpop.f32.mrb[0].mxu0
      %479 = vmatprep.mubr.bf16.mxu0 0
      %480 = vmatmul.mubr.bf16.gmra.mrb[0].mxu0 %v355
      %v481 = vpop.f32.mrb[0].mxu0
      %v482 = vadd.f32 %v220, %v481
      %v483 = vpop.f32.mrb[0].mxu0
      %v484 = vpop.f32.mrb[0].mxu0
      %v485 = vadd.f32 %v220, %v484
      %v486 = vpop.f32.mrb[0].mxu0
      %487 = vmatprep.mubr.bf16.mxu0 0
      %488 = vmatmul.mubr.bf16.gmra.mrb[0].mxu0 %v358
      %v489 = vpop.f32.mrb[0].mxu0
      %v490 = vadd.f32 %v220, %v489
      %v491 = vpop.f32.mrb[0].mxu0
      %v492 = vpop.f32.mrb[0].mxu0
      %v493 = vadd.f32 %v220, %v492
      %v494 = vpop.f32.mrb[0].mxu0
      %495 = vmatprep.mubr.bf16.mxu0 0
      %496 = vmatmul.mubr.bf16.gmra.mrb[0].mxu0 %v361
      %v497 = vpop.f32.mrb[0].mxu0
      %v498 = vadd.f32 %v220, %v497
      %v499 = vpop.f32.mrb[0].mxu0
      %v500 = vpop.f32.mrb[0].mxu0
      %v501 = vadd.f32 %v220, %v500
      %v502 = vpop.f32.mrb[0].mxu0
      %503 = vmatprep.mubr.bf16.mxu0 0
      %504 = vmatmul.mubr.bf16.gmra.mrb[0].mxu0 %v364
      %v505 = vpop.f32.mrb[0].mxu0
      %v506 = vadd.f32 %v220, %v505
      %v507 = vpop.f32.mrb[0].mxu0
      %v508 = vpop.f32.mrb[0].mxu0
      %v509 = vadd.f32 %v220, %v508
      %v510 = vpop.f32.mrb[0].mxu0
      %511 = vmatprep.mubr.bf16.mxu0 0
      %512 = vmatmul.mubr.bf16.gmra.mrb[0].mxu0 %v367
      %v513 = vpop.f32.mrb[0].mxu0
      %v514 = vadd.f32 %v220, %v513
      %v515 = vpop.f32.mrb[0].mxu0
      %v516 = vpop.f32.mrb[0].mxu0
      %v517 = vadd.f32 %v220, %v516
      %v518 = vpop.f32.mrb[0].mxu0
      %519 = vmatprep.mubr.bf16.mxu0 0
      %520 = vmatmul.mubr.bf16.gmra.mrb[0].mxu0 %v370
      %v521 = vpop.f32.mrb[0].mxu0
      %v522 = vadd.f32 %v220, %v521
      %v523 = vpop.f32.mrb[0].mxu0
      %v524 = vpop.f32.mrb[0].mxu0
      %v525 = vadd.f32 %v220, %v524
      %v526 = vpop.f32.mrb[0].mxu0
      %527 = vmatprep.mubr.bf16.mxu0 0
      %528 = vmatmul.mubr.bf16.gmra.mrb[0].mxu0 %v373
      %v529 = vpop.f32.mrb[0].mxu0
      %v530 = vadd.f32 %v220, %v529
      %v531 = vpop.f32.mrb[0].mxu0
      %v532 = vpop.f32.mrb[0].mxu0
      %v533 = vadd.f32 %v220, %v532
      %v534 = vpop.f32.mrb[0].mxu0
      %535 = vdwg.mxu0
      %vm536 = vcmp.gt.f32.partialorder %v410, 0.0
      %vm537 = vcmp.gt.f32.partialorder %v413, 0.0
      %vm538 = vcmp.gt.f32.partialorder %v418, 0.0
      %vm539 = vcmp.gt.f32.partialorder %v421, 0.0
      %vm540 = vcmp.gt.f32.partialorder %v426, 0.0
      %vm541 = vcmp.gt.f32.partialorder %v429, 0.0
      %vm542 = vcmp.gt.f32.partialorder %v434, 0.0
      %vm543 = vcmp.gt.f32.partialorder %v437, 0.0
      %vm544 = vcmp.gt.f32.partialorder %v442, 0.0
      %vm545 = vcmp.gt.f32.partialorder %v445, 0.0
      %vm546 = vcmp.gt.f32.partialorder %v450, 0.0
      %vm547 = vcmp.gt.f32.partialorder %v453, 0.0
      %vm548 = vcmp.gt.f32.partialorder %v458, 0.0
      %vm549 = vcmp.gt.f32.partialorder %v461, 0.0
      %vm550 = vcmp.gt.f32.partialorder %v466, 0.0
      %vm551 = vcmp.gt.f32.partialorder %v469, 0.0
      %vm552 = vcmp.gt.f32.partialorder %v474, 0.0
      %vm553 = vcmp.gt.f32.partialorder %v477, 0.0
      %vm554 = vcmp.gt.f32.partialorder %v482, 0.0
      %vm555 = vcmp.gt.f32.partialorder %v485, 0.0
      %vm556 = vcmp.gt.f32.partialorder %v490, 0.0
      %vm557 = vcmp.gt.f32.partialorder %v493, 0.0
      %vm558 = vcmp.gt.f32.partialorder %v498, 0.0
      %vm559 = vcmp.gt.f32.partialorder %v501, 0.0
      %vm560 = vcmp.gt.f32.partialorder %v506, 0.0
      %vm561 = vcmp.gt.f32.partialorder %v509, 0.0
      %vm562 = vcmp.gt.f32.partialorder %v514, 0.0
      %vm563 = vcmp.gt.f32.partialorder %v517, 0.0
      %vm564 = vcmp.gt.f32.partialorder %v522, 0.0
      %vm565 = vcmp.gt.f32.partialorder %v525, 0.0
      %vm566 = vcmp.gt.f32.partialorder %v530, 0.0
      %vm567 = vcmp.gt.f32.partialorder %v533, 0.0
      %v568 = vmul.f32 %v410, 0.2
      %v569 = vmul.f32 %v413, 0.2
      %v570 = vmul.f32 %v418, 0.2
      %v571 = vmul.f32 %v421, 0.2
      %v572 = vmul.f32 %v426, 0.2
      %v573 = vmul.f32 %v429, 0.2
      %v574 = vmul.f32 %v434, 0.2
      %v575 = vmul.f32 %v437, 0.2
      %v576 = vmul.f32 %v442, 0.2
      %v577 = vmul.f32 %v445, 0.2
      %v578 = vmul.f32 %v450, 0.2
      %v579 = vmul.f32 %v453, 0.2
      %v580 = vmul.f32 %v458, 0.2
      %v581 = vmul.f32 %v461, 0.2
      %v582 = vmul.f32 %v466, 0.2
      %v583 = vmul.f32 %v469, 0.2
      %v584 = vmul.f32 %v474, 0.2
      %v585 = vmul.f32 %v477, 0.2
      %v586 = vmul.f32 %v482, 0.2
      %v587 = vmul.f32 %v485, 0.2
      %v588 = vmul.f32 %v490, 0.2
      %v589 = vmul.f32 %v493, 0.2
      %v590 = vmul.f32 %v498, 0.2
      %v591 = vmul.f32 %v501, 0.2
      %v592 = vmul.f32 %v506, 0.2
      %v593 = vmul.f32 %v509, 0.2
      %v594 = vmul.f32 %v514, 0.2
      %v595 = vmul.f32 %v517, 0.2
      %v596 = vmul.f32 %v522, 0.2
      %v597 = vmul.f32 %v525, 0.2
      %v598 = vmul.f32 %v530, 0.2
      %v599 = vmul.f32 %v533, 0.2
      %v600 = vsel %vm536, %v410, %v568
      %v601 = vsel %vm537, %v413, %v569
      %v602 = vsel %vm538, %v418, %v570
      %v603 = vsel %vm539, %v421, %v571
      %v604 = vsel %vm540, %v426, %v572
      %v605 = vsel %vm541, %v429, %v573
      %v606 = vsel %vm542, %v434, %v574
      %v607 = vsel %vm543, %v437, %v575
      %v608 = vsel %vm544, %v442, %v576
      %v609 = vsel %vm545, %v445, %v577
      %v610 = vsel %vm546, %v450, %v578
      %v611 = vsel %vm547, %v453, %v579
      %v612 = vsel %vm548, %v458, %v580
      %v613 = vsel %vm549, %v461, %v581
      %v614 = vsel %vm550, %v466, %v582
      %v615 = vsel %vm551, %v469, %v583
      %v616 = vsel %vm552, %v474, %v584
      %v617 = vsel %vm553, %v477, %v585
      %v618 = vsel %vm554, %v482, %v586
      %v619 = vsel %vm555, %v485, %v587
      %v620 = vsel %vm556, %v490, %v588
      %v621 = vsel %vm557, %v493, %v589
      %v622 = vsel %vm558, %v498, %v590
      %v623 = vsel %vm559, %v501, %v591
      %v624 = vsel %vm560, %v506, %v592
      %v625 = vsel %vm561, %v509, %v593
      %v626 = vsel %vm562, %v514, %v594
      %v627 = vsel %vm563, %v517, %v595
      %v628 = vsel %vm564, %v522, %v596
      %v629 = vsel %vm565, %v525, %v597
      %v630 = vsel %vm566, %v530, %v598
      %v631 = vsel %vm567, %v533, %v599
      %v632 = vpack.c.bf16 %v601, %v600
      %v633 = vpack.c.bf16 %v603, %v602
      %v634 = vpack.c.bf16 %v605, %v604
      %v635 = vpack.c.bf16 %v607, %v606
      %v636 = vpack.c.bf16 %v609, %v608
      %v637 = vpack.c.bf16 %v611, %v610
      %v638 = vpack.c.bf16 %v613, %v612
      %v639 = vpack.c.bf16 %v615, %v614
      %v640 = vpack.c.bf16 %v617, %v616
      %v641 = vpack.c.bf16 %v619, %v618
      %v642 = vpack.c.bf16 %v621, %v620
      %v643 = vpack.c.bf16 %v623, %v622
      %v644 = vpack.c.bf16 %v625, %v624
      %v645 = vpack.c.bf16 %v627, %v626
      %v646 = vpack.c.bf16 %v629, %v628
      %v647 = vpack.c.bf16 %v631, %v630
      %v664 = vunpack.c.l.b16 %v632
      %v665 = vunpack.c.h.b16 %v632
      %v666 = vunpack.c.l.b16 %v633
      %v667 = vunpack.c.h.b16 %v633
      %v668 = vunpack.c.l.b16 %v634
      %v669 = vunpack.c.h.b16 %v634
      %v670 = vunpack.c.l.b16 %v635
      %v671 = vunpack.c.h.b16 %v635
      %v672 = vunpack.c.l.b16 %v636
      %v673 = vunpack.c.h.b16 %v636
      %v674 = vunpack.c.l.b16 %v637
      %v675 = vunpack.c.h.b16 %v637
      %v676 = vunpack.c.l.b16 %v638
      %v677 = vunpack.c.h.b16 %v638
      %v678 = vunpack.c.l.b16 %v639
      %v679 = vunpack.c.h.b16 %v639
      %v680 = vunpack.c.l.b16 %v640
      %v681 = vunpack.c.h.b16 %v640
      %v682 = vunpack.c.l.b16 %v641
      %v683 = vunpack.c.h.b16 %v641
      %v684 = vunpack.c.l.b16 %v642
      %v685 = vunpack.c.h.b16 %v642
      %v686 = vunpack.c.l.b16 %v643
      %v687 = vunpack.c.h.b16 %v643
      %v688 = vunpack.c.l.b16 %v644
      %v689 = vunpack.c.h.b16 %v644
      %v690 = vunpack.c.l.b16 %v645
      %v691 = vunpack.c.h.b16 %v645
      %v692 = vunpack.c.l.b16 %v646
      %v693 = vunpack.c.h.b16 %v646
      %v694 = vunpack.c.l.b16 %v647
      %v695 = vunpack.c.h.b16 %v647
      %v696 = vpack.c.b16 %v664, %v664
      %v697 = vpack.c.b16 %v665, %v665
      %v698 = vpack.c.b16 %v666, %v666
      %v699 = vpack.c.b16 %v667, %v667
      %v700 = vpack.c.b16 %v668, %v668
      %v701 = vpack.c.b16 %v669, %v669
      %v702 = vpack.c.b16 %v670, %v670
      %v703 = vpack.c.b16 %v671, %v671
      %v704 = vpack.c.b16 %v672, %v672
      %v705 = vpack.c.b16 %v673, %v673
      %v706 = vpack.c.b16 %v674, %v674
      %v707 = vpack.c.b16 %v675, %v675
      %v708 = vpack.c.b16 %v676, %v676
      %v709 = vpack.c.b16 %v677, %v677
      %v710 = vpack.c.b16 %v678, %v678
      %v711 = vpack.c.b16 %v679, %v679
      %v712 = vpack.c.b16 %v680, %v680
      %v713 = vpack.c.b16 %v681, %v681
      %v714 = vpack.c.b16 %v682, %v682
      %v715 = vpack.c.b16 %v683, %v683
      %v716 = vpack.c.b16 %v684, %v684
      %v717 = vpack.c.b16 %v685, %v685
      %v718 = vpack.c.b16 %v686, %v686
      %v719 = vpack.c.b16 %v687, %v687
      %v720 = vpack.c.b16 %v688, %v688
      %v721 = vpack.c.b16 %v689, %v689
      %v722 = vpack.c.b16 %v690, %v690
      %v723 = vpack.c.b16 %v691, %v691
      %v724 = vpack.c.b16 %v692, %v692
      %v725 = vpack.c.b16 %v693, %v693
      %v726 = vpack.c.b16 %v694, %v694
      %v727 = vpack.c.b16 %v695, %v695
      %760 = vst [vmem:[%s172] sm:$0xf] %v696
      %761 = vst [vmem:[%s172 + $0x4] sm:$0xf] %v697
      %762 = vst [vmem:[%s172 + $0x8] sm:$0xf] %v698
      %763 = vst [vmem:[%s172 + $0xc] sm:$0xf] %v699
      %764 = vst [vmem:[%s172 + $0x10] sm:$0xf] %v700
      %765 = vst [vmem:[%s172 + $0x14] sm:$0xf] %v701
      %766 = vst [vmem:[%s172 + $0x18] sm:$0xf] %v702
      %767 = vst [vmem:[%s172 + $0x1c] sm:$0xf] %v703
      %768 = vst [vmem:[%s172 + $0x20] sm:$0xf] %v704
      %769 = vst [vmem:[%s172 + $0x24] sm:$0xf] %v705
      %770 = vst [vmem:[%s172 + $0x28] sm:$0xf] %v706
      %771 = vst [vmem:[%s172 + $0x2c] sm:$0xf] %v707
      %772 = vst [vmem:[%s172 + $0x30] sm:$0xf] %v708
      %773 = vst [vmem:[%s172 + $0x34] sm:$0xf] %v709
      %774 = vst [vmem:[%s172 + $0x38] sm:$0xf] %v710
      %775 = vst [vmem:[%s172 + $0x3c] sm:$0xf] %v711
      %776 = vst [vmem:[%s172 + $0x40] sm:$0xf] %v712
      %777 = vst [vmem:[%s172 + $0x44] sm:$0xf] %v713
      %778 = vst [vmem:[%s172 + $0x48] sm:$0xf] %v714
      %779 = vst [vmem:[%s172 + $0x4c] sm:$0xf] %v715
      %780 = vst [vmem:[%s172 + $0x50] sm:$0xf] %v716
      %781 = vst [vmem:[%s172 + $0x54] sm:$0xf] %v717
      %782 = vst [vmem:[%s172 + $0x58] sm:$0xf] %v718
      %783 = vst [vmem:[%s172 + $0x5c] sm:$0xf] %v719
      %784 = vst [vmem:[%s172 + $0x60] sm:$0xf] %v720
      %785 = vst [vmem:[%s172 + $0x64] sm:$0xf] %v721
      %786 = vst [vmem:[%s172 + $0x68] sm:$0xf] %v722
      %787 = vst [vmem:[%s172 + $0x6c] sm:$0xf] %v723
      %788 = vst [vmem:[%s172 + $0x70] sm:$0xf] %v724
      %789 = vst [vmem:[%s172 + $0x74] sm:$0xf] %v725
      %790 = vst [vmem:[%s172 + $0x78] sm:$0xf] %v726
      %791 = vst [vmem:[%s172 + $0x7c] sm:$0xf] %v727
      %s792 = smul.u32 32, %s14
      %p793 = scmp.lt.s32.totalorder %s792, 63
      %s794 = scalar_select %p793, %s792, 63
      %s795 = smul.addr %s794, 4
      %s796 = scalar_lea.vmem %s3, %s795
      // Predicated region
      $region33: #{discriminator_forward.4} parent=31 // pred_check
        %p797 = pneg %p100
      $region34: #{discriminator_forward.4} parent=31 // pred_check_branch
        %799 = sbr.rel (%p797) target = $region36
      $region35: #{discriminator_forward.4} parent=31 // pred_region
        %s800 = smul.u32 32, %s14
      $region36: #{discriminator_forward.4} parent=31 // pred_fallthru
        _
    $region32: #{discriminator_forward.4} parent=5 // pred_fallthru
      _
    %p801 = scmp.le.s32.totalorder 2, %s9
    // Predicated region
    $region37: #{discriminator_forward.4} parent=5 // pred_check
      %p802 = pneg %p801
    $region38: #{discriminator_forward.4} parent=5 // pred_check_branch
      %804 = sbr.rel (%p802) target = $region40
    $region39: #{discriminator_forward.4} parent=5 // pred_region
      %s805 = ssub.s32 %s9, 2
      // Predicated region
      $region41: #{discriminator_forward.4} parent=39 // pred_check
        %p806 = pneg %p106
      $region42: #{discriminator_forward.4} parent=39 // pred_check_branch
        %808 = sbr.rel (%p806) target = $region44
      $region43: #{discriminator_forward.4} parent=39 // pred_region
        %s809 = smul.u32 32, %s15
        %p810 = scmp.lt.s32.totalorder %s809, 63
        %s811 = scalar_select %p810, %s809, 63
        %s812 = smul.addr %s811, 4
        %s813 = scalar_lea.vmem %s3, %s812
      $region44: #{discriminator_forward.4} parent=39 // pred_fallthru
        _
    $region40: #{discriminator_forward.4} parent=5 // pred_fallthru
      _
  $region6: #{discriminator_forward.4} parent=0 // loop_footer
    %s13 = sadd.s32 1, %s9
  $region7: #{discriminator_forward.4} parent=0 // loop_footer_branch
    %8 = sbr.rel target = $region3
  $region8: #{discriminator_forward.4} parent=0 // loop_exit
    _

// kernel: discriminator_forward.5
$region0: #{discriminator_forward.5}
  #allocation0 [shape = 'u32[]', space=smem, size = 0x4, offset = 0x4, fixed_abs, tag = 'smem constant byte address 0x4 - core index']
  #allocation1 [shape = 'u32[144,128]{1,0:T(1,128)}', space=vmem, size = 0x12000, scoped, tag = 'internal scratch']
  %s0 = inlined_call_operand.vmem [shape: bf16[128,2048], index: 0, kind: input, shape index: {}]
  %s1 = inlined_call_operand.vmem [shape: bf16[2048,128], index: 1, kind: input, shape index: {}]
  %s2 = inlined_call_operand.vmem [shape: f32[1,128], index: 2, kind: input, shape index: {}]
  %s3 = inlined_call_operand.vmem [shape: f32[1,128], index: 3, kind: input, shape index: {}]
  %s4 = inlined_call_operand.vmem [shape: bf16[128,128], index: 4, kind: output, shape index: {}]
  %s5 = sld [smem:[#allocation0]]
  $region26: #{discriminator_forward.5} parent=0
    _
  %s7 = ssub.s32 1, %s5
  %s8 = scalar_select 0, %s7, %s5
  // Predicated region
  $region2: #{discriminator_forward.5} parent=0 // pred_check
    _
  $region3: #{discriminator_forward.5} parent=0 // pred_check_branch
    %10 = sbr.rel (0) target = $region5
  $region4: #{discriminator_forward.5} parent=0 // pred_region
    _
  $region5: #{discriminator_forward.5} parent=0 // pred_fallthru
    _
  // Predicated region
  $region6: #{discriminator_forward.5} parent=0 // pred_check
    _
  $region7: #{discriminator_forward.5} parent=0 // pred_check_branch
    %12 = sbr.rel (0) target = $region9
  $region8: #{discriminator_forward.5} parent=0 // pred_region
    _
  $region9: #{discriminator_forward.5} parent=0 // pred_fallthru
    _
  // Predicated region
  $region10: #{discriminator_forward.5} parent=0 // pred_check
    _
  $region11: #{discriminator_forward.5} parent=0 // pred_check_branch
    %14 = sbr.rel (0) target = $region13
  $region12: #{discriminator_forward.5} parent=0 // pred_region
    _
  $region13: #{discriminator_forward.5} parent=0 // pred_fallthru
    _
  // Predicated region
  $region14: #{discriminator_forward.5} parent=0 // pred_check
    _
  $region15: #{discriminator_forward.5} parent=0 // pred_check_branch
    %16 = sbr.rel (0) target = $region17
  $region16: #{discriminator_forward.5} parent=0 // pred_region
    _
  $region17: #{discriminator_forward.5} parent=0 // pred_fallthru
    _
  %v18 = vld [vmem:[%s0] sm:$0xff]
  %v19 = vld [vmem:[%s0 + $0x8] sm:$0xff]
  %v20 = vld [vmem:[%s0 + $0x10] sm:$0xff]
  %v21 = vld [vmem:[%s0 + $0x18] sm:$0xff]
  %v22 = vld [vmem:[%s0 + $0x20] sm:$0xff]
  %v23 = vld [vmem:[%s0 + $0x28] sm:$0xff]
  %v24 = vld [vmem:[%s0 + $0x30] sm:$0xff]
  %v25 = vld [vmem:[%s0 + $0x38] sm:$0xff]
  %v26 = vld [vmem:[%s0 + $0x40] sm:$0xff]
  %v27 = vld [vmem:[%s0 + $0x48] sm:$0xff]
  %v28 = vld [vmem:[%s0 + $0x50] sm:$0xff]
  %v29 = vld [vmem:[%s0 + $0x58] sm:$0xff]
  %v30 = vld [vmem:[%s0 + $0x60] sm:$0xff]
  %v31 = vld [vmem:[%s0 + $0x68] sm:$0xff]
  %v32 = vld [vmem:[%s0 + $0x70] sm:$0xff]
  %v33 = vld [vmem:[%s0 + $0x78] sm:$0xff]
  %v34 = vld [vmem:[%s0 + $0x80] sm:$0xff]
  %v35 = vld [vmem:[%s0 + $0x88] sm:$0xff]
  %v36 = vld [vmem:[%s0 + $0x90] sm:$0xff]
  %v37 = vld [vmem:[%s0 + $0x98] sm:$0xff]
  %v38 = vld [vmem:[%s0 + $0xa0] sm:$0xff]
  %v39 = vld [vmem:[%s0 + $0xa8] sm:$0xff]
  %v40 = vld [vmem:[%s0 + $0xb0] sm:$0xff]
  %v41 = vld [vmem:[%s0 + $0xb8] sm:$0xff]
  %v42 = vld [vmem:[%s0 + $0xc0] sm:$0xff]
  %v43 = vld [vmem:[%s0 + $0xc8] sm:$0xff]
  %v44 = vld [vmem:[%s0 + $0xd0] sm:$0xff]
  %v45 = vld [vmem:[%s0 + $0xd8] sm:$0xff]
  %v46 = vld [vmem:[%s0 + $0xe0] sm:$0xff]
  %v47 = vld [vmem:[%s0 + $0xe8] sm:$0xff]
  %v48 = vld [vmem:[%s0 + $0xf0] sm:$0xff]
  %v49 = vld [vmem:[%s0 + $0xf8] sm:$0xff]
  %v50 = vld [vmem:[%s0 + $0x100] sm:$0xff]
  %v51 = vld [vmem:[%s0 + $0x108] sm:$0xff]
  %v52 = vld [vmem:[%s0 + $0x110] sm:$0xff]
  %v53 = vld [vmem:[%s0 + $0x118] sm:$0xff]
  %v54 = vld [vmem:[%s0 + $0x120] sm:$0xff]
  %v55 = vld [vmem:[%s0 + $0x128] sm:$0xff]
  %v56 = vld [vmem:[%s0 + $0x130] sm:$0xff]
  %v57 = vld [vmem:[%s0 + $0x138] sm:$0xff]
  %v58 = vld [vmem:[%s0 + $0x140] sm:$0xff]
  %v59 = vld [vmem:[%s0 + $0x148] sm:$0xff]
  %v60 = vld [vmem:[%s0 + $0x150] sm:$0xff]
  %v61 = vld [vmem:[%s0 + $0x158] sm:$0xff]
  %v62 = vld [vmem:[%s0 + $0x160] sm:$0xff]
  %v63 = vld [vmem:[%s0 + $0x168] sm:$0xff]
  %v64 = vld [vmem:[%s0 + $0x170] sm:$0xff]
  %v65 = vld [vmem:[%s0 + $0x178] sm:$0xff]
  %v66 = vld [vmem:[%s0 + $0x180] sm:$0xff]
  %v67 = vld [vmem:[%s0 + $0x188] sm:$0xff]
  %v68 = vld [vmem:[%s0 + $0x190] sm:$0xff]
  %v69 = vld [vmem:[%s0 + $0x198] sm:$0xff]
  %v70 = vld [vmem:[%s0 + $0x1a0] sm:$0xff]
  %v71 = vld [vmem:[%s0 + $0x1a8] sm:$0xff]
  %v72 = vld [vmem:[%s0 + $0x1b0] sm:$0xff]
  %v73 = vld [vmem:[%s0 + $0x1b8] sm:$0xff]
  %v74 = vld [vmem:[%s0 + $0x1c0] sm:$0xff]
  %v75 = vld [vmem:[%s0 + $0x1c8] sm:$0xff]
  %v76 = vld [vmem:[%s0 + $0x1d0] sm:$0xff]
  %v77 = vld [vmem:[%s0 + $0x1d8] sm:$0xff]
  %v78 = vld [vmem:[%s0 + $0x1e0] sm:$0xff]
  %v79 = vld [vmem:[%s0 + $0x1e8] sm:$0xff]
  %v80 = vld [vmem:[%s0 + $0x1f0] sm:$0xff]
  %v81 = vld [vmem:[%s0 + $0x1f8] sm:$0xff]
  %v82 = vld [vmem:[%s0 + $0x200] sm:$0xff]
  %v83 = vld [vmem:[%s0 + $0x208] sm:$0xff]
  %v84 = vld [vmem:[%s0 + $0x210] sm:$0xff]
  %v85 = vld [vmem:[%s0 + $0x218] sm:$0xff]
  %v86 = vld [vmem:[%s0 + $0x220] sm:$0xff]
  %v87 = vld [vmem:[%s0 + $0x228] sm:$0xff]
  %v88 = vld [vmem:[%s0 + $0x230] sm:$0xff]
  %v89 = vld [vmem:[%s0 + $0x238] sm:$0xff]
  %v90 = vld [vmem:[%s0 + $0x240] sm:$0xff]
  %v91 = vld [vmem:[%s0 + $0x248] sm:$0xff]
  %v92 = vld [vmem:[%s0 + $0x250] sm:$0xff]
  %v93 = vld [vmem:[%s0 + $0x258] sm:$0xff]
  %v94 = vld [vmem:[%s0 + $0x260] sm:$0xff]
  %v95 = vld [vmem:[%s0 + $0x268] sm:$0xff]
  %v96 = vld [vmem:[%s0 + $0x270] sm:$0xff]
  %v97 = vld [vmem:[%s0 + $0x278] sm:$0xff]
  %v98 = vld [vmem:[%s0 + $0x280] sm:$0xff]
  %v99 = vld [vmem:[%s0 + $0x288] sm:$0xff]
  %v100 = vld [vmem:[%s0 + $0x290] sm:$0xff]
  %v101 = vld [vmem:[%s0 + $0x298] sm:$0xff]
  %v102 = vld [vmem:[%s0 + $0x2a0] sm:$0xff]
  %v103 = vld [vmem:[%s0 + $0x2a8] sm:$0xff]
  %v104 = vld [vmem:[%s0 + $0x2b0] sm:$0xff]
  %v105 = vld [vmem:[%s0 + $0x2b8] sm:$0xff]
  %v106 = vld [vmem:[%s0 + $0x2c0] sm:$0xff]
  %v107 = vld [vmem:[%s0 + $0x2c8] sm:$0xff]
  %v108 = vld [vmem:[%s0 + $0x2d0] sm:$0xff]
  %v109 = vld [vmem:[%s0 + $0x2d8] sm:$0xff]
  %v110 = vld [vmem:[%s0 + $0x2e0] sm:$0xff]
  %v111 = vld [vmem:[%s0 + $0x2e8] sm:$0xff]
  %v112 = vld [vmem:[%s0 + $0x2f0] sm:$0xff]
  %v113 = vld [vmem:[%s0 + $0x2f8] sm:$0xff]
  %v114 = vld [vmem:[%s0 + $0x300] sm:$0xff]
  %v115 = vld [vmem:[%s0 + $0x308] sm:$0xff]
  %v116 = vld [vmem:[%s0 + $0x310] sm:$0xff]
  %v117 = vld [vmem:[%s0 + $0x318] sm:$0xff]
  %v118 = vld [vmem:[%s0 + $0x320] sm:$0xff]
  %v119 = vld [vmem:[%s0 + $0x328] sm:$0xff]
  %v120 = vld [vmem:[%s0 + $0x330] sm:$0xff]
  %v121 = vld [vmem:[%s0 + $0x338] sm:$0xff]
  %v122 = vld [vmem:[%s0 + $0x340] sm:$0xff]
  %v123 = vld [vmem:[%s0 + $0x348] sm:$0xff]
  %v124 = vld [vmem:[%s0 + $0x350] sm:$0xff]
  %v125 = vld [vmem:[%s0 + $0x358] sm:$0xff]
  %v126 = vld [vmem:[%s0 + $0x360] sm:$0xff]
  %v127 = vld [vmem:[%s0 + $0x368] sm:$0xff]
  %v128 = vld [vmem:[%s0 + $0x370] sm:$0xff]
  %v129 = vld [vmem:[%s0 + $0x378] sm:$0xff]
  %v130 = vld [vmem:[%s0 + $0x380] sm:$0xff]
  %v131 = vld [vmem:[%s0 + $0x388] sm:$0xff]
  %v132 = vld [vmem:[%s0 + $0x390] sm:$0xff]
  %v133 = vld [vmem:[%s0 + $0x398] sm:$0xff]
  %v134 = vld [vmem:[%s0 + $0x3a0] sm:$0xff]
  %v135 = vld [vmem:[%s0 + $0x3a8] sm:$0xff]
  %v136 = vld [vmem:[%s0 + $0x3b0] sm:$0xff]
  %v137 = vld [vmem:[%s0 + $0x3b8] sm:$0xff]
  %v138 = vld [vmem:[%s0 + $0x3c0] sm:$0xff]
  %v139 = vld [vmem:[%s0 + $0x3c8] sm:$0xff]
  %v140 = vld [vmem:[%s0 + $0x3d0] sm:$0xff]
  %v141 = vld [vmem:[%s0 + $0x3d8] sm:$0xff]
  %v142 = vld [vmem:[%s0 + $0x3e0] sm:$0xff]
  %v143 = vld [vmem:[%s0 + $0x3e8] sm:$0xff]
  %v144 = vld [vmem:[%s0 + $0x3f0] sm:$0xff]
  %v145 = vld [vmem:[%s0 + $0x3f8] sm:$0xff]
  %v146 = vld [vmem:[%s1] sm:$0xf]
  %v147 = vld [vmem:[%s1 + $0x4] sm:$0xf]
  %v148 = vld [vmem:[%s1 + $0x8] sm:$0xf]
  %v149 = vld [vmem:[%s1 + $0xc] sm:$0xf]
  %v150 = vld [vmem:[%s1 + $0x10] sm:$0xf]
  %v151 = vld [vmem:[%s1 + $0x14] sm:$0xf]
  %v152 = vld [vmem:[%s1 + $0x18] sm:$0xf]
  %v153 = vld [vmem:[%s1 + $0x1c] sm:$0xf]
  %v154 = vld [vmem:[%s1 + $0x20] sm:$0xf]
  %v155 = vld [vmem:[%s1 + $0x24] sm:$0xf]
  %v156 = vld [vmem:[%s1 + $0x28] sm:$0xf]
  %v157 = vld [vmem:[%s1 + $0x2c] sm:$0xf]
  %v158 = vld [vmem:[%s1 + $0x30] sm:$0xf]
  %v159 = vld [vmem:[%s1 + $0x34] sm:$0xf]
  %v160 = vld [vmem:[%s1 + $0x38] sm:$0xf]
  %v161 = vld [vmem:[%s1 + $0x3c] sm:$0xf]
  %v162 = vld [vmem:[%s1 + $0x40] sm:$0xf]
  %v163 = vld [vmem:[%s1 + $0x44] sm:$0xf]
  %v164 = vld [vmem:[%s1 + $0x48] sm:$0xf]
  %v165 = vld [vmem:[%s1 + $0x4c] sm:$0xf]
  %v166 = vld [vmem:[%s1 + $0x50] sm:$0xf]
  %v167 = vld [vmem:[%s1 + $0x54] sm:$0xf]
  %v168 = vld [vmem:[%s1 + $0x58] sm:$0xf]
  %v169 = vld [vmem:[%s1 + $0x5c] sm:$0xf]
  %v170 = vld [vmem:[%s1 + $0x60] sm:$0xf]
  %v171 = vld [vmem:[%s1 + $0x64] sm:$0xf]
  %v172 = vld [vmem:[%s1 + $0x68] sm:$0xf]
  %v173 = vld [vmem:[%s1 + $0x6c] sm:$0xf]
  %v174 = vld [vmem:[%s1 + $0x70] sm:$0xf]
  %v175 = vld [vmem:[%s1 + $0x74] sm:$0xf]
  %v176 = vld [vmem:[%s1 + $0x78] sm:$0xf]
  %v177 = vld [vmem:[%s1 + $0x7c] sm:$0xf]
  %v178 = vld [vmem:[%s1 + $0x80] sm:$0xf]
  %v179 = vld [vmem:[%s1 + $0x84] sm:$0xf]
  %v180 = vld [vmem:[%s1 + $0x88] sm:$0xf]
  %v181 = vld [vmem:[%s1 + $0x8c] sm:$0xf]
  %v182 = vld [vmem:[%s1 + $0x90] sm:$0xf]
  %v183 = vld [vmem:[%s1 + $0x94] sm:$0xf]
  %v184 = vld [vmem:[%s1 + $0x98] sm:$0xf]
  %v185 = vld [vmem:[%s1 + $0x9c] sm:$0xf]
  %v186 = vld [vmem:[%s1 + $0xa0] sm:$0xf]
  %v187 = vld [vmem:[%s1 + $0xa4] sm:$0xf]
  %v188 = vld [vmem:[%s1 + $0xa8] sm:$0xf]
  %v189 = vld [vmem:[%s1 + $0xac] sm:$0xf]
  %v190 = vld [vmem:[%s1 + $0xb0] sm:$0xf]
  %v191 = vld [vmem:[%s1 + $0xb4] sm:$0xf]
  %v192 = vld [vmem:[%s1 + $0xb8] sm:$0xf]
  %v193 = vld [vmem:[%s1 + $0xbc] sm:$0xf]
  %v194 = vld [vmem:[%s1 + $0xc0] sm:$0xf]
  %v195 = vld [vmem:[%s1 + $0xc4] sm:$0xf]
  %v196 = vld [vmem:[%s1 + $0xc8] sm:$0xf]
  %v197 = vld [vmem:[%s1 + $0xcc] sm:$0xf]
  %v198 = vld [vmem:[%s1 + $0xd0] sm:$0xf]
  %v199 = vld [vmem:[%s1 + $0xd4] sm:$0xf]
  %v200 = vld [vmem:[%s1 + $0xd8] sm:$0xf]
  %v201 = vld [vmem:[%s1 + $0xdc] sm:$0xf]
  %v202 = vld [vmem:[%s1 + $0xe0] sm:$0xf]
  %v203 = vld [vmem:[%s1 + $0xe4] sm:$0xf]
  %v204 = vld [vmem:[%s1 + $0xe8] sm:$0xf]
  %v205 = vld [vmem:[%s1 + $0xec] sm:$0xf]
  %v206 = vld [vmem:[%s1 + $0xf0] sm:$0xf]
  %v207 = vld [vmem:[%s1 + $0xf4] sm:$0xf]
  %v208 = vld [vmem:[%s1 + $0xf8] sm:$0xf]
  %v209 = vld [vmem:[%s1 + $0xfc] sm:$0xf]
  %v210 = vld [vmem:[%s1 + $0x100] sm:$0xf]
  %v211 = vld [vmem:[%s1 + $0x104] sm:$0xf]
  %v212 = vld [vmem:[%s1 + $0x108] sm:$0xf]
  %v213 = vld [vmem:[%s1 + $0x10c] sm:$0xf]
  %v214 = vld [vmem:[%s1 + $0x110] sm:$0xf]
  %v215 = vld [vmem:[%s1 + $0x114] sm:$0xf]
  %v216 = vld [vmem:[%s1 + $0x118] sm:$0xf]
  %v217 = vld [vmem:[%s1 + $0x11c] sm:$0xf]
  %v218 = vld [vmem:[%s1 + $0x120] sm:$0xf]
  %v219 = vld [vmem:[%s1 + $0x124] sm:$0xf]
  %v220 = vld [vmem:[%s1 + $0x128] sm:$0xf]
  %v221 = vld [vmem:[%s1 + $0x12c] sm:$0xf]
  %v222 = vld [vmem:[%s1 + $0x130] sm:$0xf]
  %v223 = vld [vmem:[%s1 + $0x134] sm:$0xf]
  %v224 = vld [vmem:[%s1 + $0x138] sm:$0xf]
  %v225 = vld [vmem:[%s1 + $0x13c] sm:$0xf]
  %v226 = vld [vmem:[%s1 + $0x140] sm:$0xf]
  %v227 = vld [vmem:[%s1 + $0x144] sm:$0xf]
  %v228 = vld [vmem:[%s1 + $0x148] sm:$0xf]
  %v229 = vld [vmem:[%s1 + $0x14c] sm:$0xf]
  %v230 = vld [vmem:[%s1 + $0x150] sm:$0xf]
  %v231 = vld [vmem:[%s1 + $0x154] sm:$0xf]
  %v232 = vld [vmem:[%s1 + $0x158] sm:$0xf]
  %v233 = vld [vmem:[%s1 + $0x15c] sm:$0xf]
  %v234 = vld [vmem:[%s1 + $0x160] sm:$0xf]
  %v235 = vld [vmem:[%s1 + $0x164] sm:$0xf]
  %v236 = vld [vmem:[%s1 + $0x168] sm:$0xf]
  %v237 = vld [vmem:[%s1 + $0x16c] sm:$0xf]
  %v238 = vld [vmem:[%s1 + $0x170] sm:$0xf]
  %v239 = vld [vmem:[%s1 + $0x174] sm:$0xf]
  %v240 = vld [vmem:[%s1 + $0x178] sm:$0xf]
  %v241 = vld [vmem:[%s1 + $0x17c] sm:$0xf]
  %v242 = vld [vmem:[%s1 + $0x180] sm:$0xf]
  %v243 = vld [vmem:[%s1 + $0x184] sm:$0xf]
  %v244 = vld [vmem:[%s1 + $0x188] sm:$0xf]
  %v245 = vld [vmem:[%s1 + $0x18c] sm:$0xf]
  %v246 = vld [vmem:[%s1 + $0x190] sm:$0xf]
  %v247 = vld [vmem:[%s1 + $0x194] sm:$0xf]
  %v248 = vld [vmem:[%s1 + $0x198] sm:$0xf]
  %v249 = vld [vmem:[%s1 + $0x19c] sm:$0xf]
  %v250 = vld [vmem:[%s1 + $0x1a0] sm:$0xf]
  %v251 = vld [vmem:[%s1 + $0x1a4] sm:$0xf]
  %v252 = vld [vmem:[%s1 + $0x1a8] sm:$0xf]
  %v253 = vld [vmem:[%s1 + $0x1ac] sm:$0xf]
  %v254 = vld [vmem:[%s1 + $0x1b0] sm:$0xf]
  %v255 = vld [vmem:[%s1 + $0x1b4] sm:$0xf]
  %v256 = vld [vmem:[%s1 + $0x1b8] sm:$0xf]
  %v257 = vld [vmem:[%s1 + $0x1bc] sm:$0xf]
  %v258 = vld [vmem:[%s1 + $0x1c0] sm:$0xf]
  %v259 = vld [vmem:[%s1 + $0x1c4] sm:$0xf]
  %v260 = vld [vmem:[%s1 + $0x1c8] sm:$0xf]
  %v261 = vld [vmem:[%s1 + $0x1cc] sm:$0xf]
  %v262 = vld [vmem:[%s1 + $0x1d0] sm:$0xf]
  %v263 = vld [vmem:[%s1 + $0x1d4] sm:$0xf]
  %v264 = vld [vmem:[%s1 + $0x1d8] sm:$0xf]
  %v265 = vld [vmem:[%s1 + $0x1dc] sm:$0xf]
  %v266 = vld [vmem:[%s1 + $0x1e0] sm:$0xf]
  %v267 = vld [vmem:[%s1 + $0x1e4] sm:$0xf]
  %v268 = vld [vmem:[%s1 + $0x1e8] sm:$0xf]
  %v269 = vld [vmem:[%s1 + $0x1ec] sm:$0xf]
  %v270 = vld [vmem:[%s1 + $0x1f0] sm:$0xf]
  %v271 = vld [vmem:[%s1 + $0x1f4] sm:$0xf]
  %v272 = vld [vmem:[%s1 + $0x1f8] sm:$0xf]
  %v273 = vld [vmem:[%s1 + $0x1fc] sm:$0xf]
  %v274 = vld [vmem:[%s1 + $0x200] sm:$0xf]
  %v275 = vld [vmem:[%s1 + $0x204] sm:$0xf]
  %v276 = vld [vmem:[%s1 + $0x208] sm:$0xf]
  %v277 = vld [vmem:[%s1 + $0x20c] sm:$0xf]
  %v278 = vld [vmem:[%s1 + $0x210] sm:$0xf]
  %v279 = vld [vmem:[%s1 + $0x214] sm:$0xf]
  %v280 = vld [vmem:[%s1 + $0x218] sm:$0xf]
  %v281 = vld [vmem:[%s1 + $0x21c] sm:$0xf]
  %v282 = vld [vmem:[%s1 + $0x220] sm:$0xf]
  %v283 = vld [vmem:[%s1 + $0x224] sm:$0xf]
  %v284 = vld [vmem:[%s1 + $0x228] sm:$0xf]
  %v285 = vld [vmem:[%s1 + $0x22c] sm:$0xf]
  %v286 = vld [vmem:[%s1 + $0x230] sm:$0xf]
  %v287 = vld [vmem:[%s1 + $0x234] sm:$0xf]
  %v288 = vld [vmem:[%s1 + $0x238] sm:$0xf]
  %v289 = vld [vmem:[%s1 + $0x23c] sm:$0xf]
  %v290 = vld [vmem:[%s1 + $0x240] sm:$0xf]
  %v291 = vld [vmem:[%s1 + $0x244] sm:$0xf]
  %v292 = vld [vmem:[%s1 + $0x248] sm:$0xf]
  %v293 = vld [vmem:[%s1 + $0x24c] sm:$0xf]
  %v294 = vld [vmem:[%s1 + $0x250] sm:$0xf]
  %v295 = vld [vmem:[%s1 + $0x254] sm:$0xf]
  %v296 = vld [vmem:[%s1 + $0x258] sm:$0xf]
  %v297 = vld [vmem:[%s1 + $0x25c] sm:$0xf]
  %v298 = vld [vmem:[%s1 + $0x260] sm:$0xf]
  %v299 = vld [vmem:[%s1 + $0x264] sm:$0xf]
  %v300 = vld [vmem:[%s1 + $0x268] sm:$0xf]
  %v301 = vld [vmem:[%s1 + $0x26c] sm:$0xf]
  %v302 = vld [vmem:[%s1 + $0x270] sm:$0xf]
  %v303 = vld [vmem:[%s1 + $0x274] sm:$0xf]
  %v304 = vld [vmem:[%s1 + $0x278] sm:$0xf]
  %v305 = vld [vmem:[%s1 + $0x27c] sm:$0xf]
  %v306 = vld [vmem:[%s1 + $0x280] sm:$0xf]
  %v307 = vld [vmem:[%s1 + $0x284] sm:$0xf]
  %v308 = vld [vmem:[%s1 + $0x288] sm:$0xf]
  %v309 = vld [vmem:[%s1 + $0x28c] sm:$0xf]
  %v310 = vld [vmem:[%s1 + $0x290] sm:$0xf]
  %v311 = vld [vmem:[%s1 + $0x294] sm:$0xf]
  %v312 = vld [vmem:[%s1 + $0x298] sm:$0xf]
  %v313 = vld [vmem:[%s1 + $0x29c] sm:$0xf]
  %v314 = vld [vmem:[%s1 + $0x2a0] sm:$0xf]
  %v315 = vld [vmem:[%s1 + $0x2a4] sm:$0xf]
  %v316 = vld [vmem:[%s1 + $0x2a8] sm:$0xf]
  %v317 = vld [vmem:[%s1 + $0x2ac] sm:$0xf]
  %v318 = vld [vmem:[%s1 + $0x2b0] sm:$0xf]
  %v319 = vld [vmem:[%s1 + $0x2b4] sm:$0xf]
  %v320 = vld [vmem:[%s1 + $0x2b8] sm:$0xf]
  %v321 = vld [vmem:[%s1 + $0x2bc] sm:$0xf]
  %v322 = vld [vmem:[%s1 + $0x2c0] sm:$0xf]
  %v323 = vld [vmem:[%s1 + $0x2c4] sm:$0xf]
  %v324 = vld [vmem:[%s1 + $0x2c8] sm:$0xf]
  %v325 = vld [vmem:[%s1 + $0x2cc] sm:$0xf]
  %v326 = vld [vmem:[%s1 + $0x2d0] sm:$0xf]
  %v327 = vld [vmem:[%s1 + $0x2d4] sm:$0xf]
  %v328 = vld [vmem:[%s1 + $0x2d8] sm:$0xf]
  %v329 = vld [vmem:[%s1 + $0x2dc] sm:$0xf]
  %v330 = vld [vmem:[%s1 + $0x2e0] sm:$0xf]
  %v331 = vld [vmem:[%s1 + $0x2e4] sm:$0xf]
  %v332 = vld [vmem:[%s1 + $0x2e8] sm:$0xf]
  %v333 = vld [vmem:[%s1 + $0x2ec] sm:$0xf]
  %v334 = vld [vmem:[%s1 + $0x2f0] sm:$0xf]
  %v335 = vld [vmem:[%s1 + $0x2f4] sm:$0xf]
  %v336 = vld [vmem:[%s1 + $0x2f8] sm:$0xf]
  %v337 = vld [vmem:[%s1 + $0x2fc] sm:$0xf]
  %v338 = vld [vmem:[%s1 + $0x300] sm:$0xf]
  %v339 = vld [vmem:[%s1 + $0x304] sm:$0xf]
  %v340 = vld [vmem:[%s1 + $0x308] sm:$0xf]
  %v341 = vld [vmem:[%s1 + $0x30c] sm:$0xf]
  %v342 = vld [vmem:[%s1 + $0x310] sm:$0xf]
  %v343 = vld [vmem:[%s1 + $0x314] sm:$0xf]
  %v344 = vld [vmem:[%s1 + $0x318] sm:$0xf]
  %v345 = vld [vmem:[%s1 + $0x31c] sm:$0xf]
  %v346 = vld [vmem:[%s1 + $0x320] sm:$0xf]
  %v347 = vld [vmem:[%s1 + $0x324] sm:$0xf]
  %v348 = vld [vmem:[%s1 + $0x328] sm:$0xf]
  %v349 = vld [vmem:[%s1 + $0x32c] sm:$0xf]
  %v350 = vld [vmem:[%s1 + $0x330] sm:$0xf]
  %v351 = vld [vmem:[%s1 + $0x334] sm:$0xf]
  %v352 = vld [vmem:[%s1 + $0x338] sm:$0xf]
  %v353 = vld [vmem:[%s1 + $0x33c] sm:$0xf]
  %v354 = vld [vmem:[%s1 + $0x340] sm:$0xf]
  %v355 = vld [vmem:[%s1 + $0x344] sm:$0xf]
  %v356 = vld [vmem:[%s1 + $0x348] sm:$0xf]
  %v357 = vld [vmem:[%s1 + $0x34c] sm:$0xf]
  %v358 = vld [vmem:[%s1 + $0x350] sm:$0xf]
  %v359 = vld [vmem:[%s1 + $0x354] sm:$0xf]
  %v360 = vld [vmem:[%s1 + $0x358] sm:$0xf]
  %v361 = vld [vmem:[%s1 + $0x35c] sm:$0xf]
  %v362 = vld [vmem:[%s1 + $0x360] sm:$0xf]
  %v363 = vld [vmem:[%s1 + $0x364] sm:$0xf]
  %v364 = vld [vmem:[%s1 + $0x368] sm:$0xf]
  %v365 = vld [vmem:[%s1 + $0x36c] sm:$0xf]
  %v366 = vld [vmem:[%s1 + $0x370] sm:$0xf]
  %v367 = vld [vmem:[%s1 + $0x374] sm:$0xf]
  %v368 = vld [vmem:[%s1 + $0x378] sm:$0xf]
  %v369 = vld [vmem:[%s1 + $0x37c] sm:$0xf]
  %v370 = vld [vmem:[%s1 + $0x380] sm:$0xf]
  %v371 = vld [vmem:[%s1 + $0x384] sm:$0xf]
  %v372 = vld [vmem:[%s1 + $0x388] sm:$0xf]
  %v373 = vld [vmem:[%s1 + $0x38c] sm:$0xf]
  %v374 = vld [vmem:[%s1 + $0x390] sm:$0xf]
  %v375 = vld [vmem:[%s1 + $0x394] sm:$0xf]
  %v376 = vld [vmem:[%s1 + $0x398] sm:$0xf]
  %v377 = vld [vmem:[%s1 + $0x39c] sm:$0xf]
  %v378 = vld [vmem:[%s1 + $0x3a0] sm:$0xf]
  %v379 = vld [vmem:[%s1 + $0x3a4] sm:$0xf]
  %v380 = vld [vmem:[%s1 + $0x3a8] sm:$0xf]
  %v381 = vld [vmem:[%s1 + $0x3ac] sm:$0xf]
  %v382 = vld [vmem:[%s1 + $0x3b0] sm:$0xf]
  %v383 = vld [vmem:[%s1 + $0x3b4] sm:$0xf]
  %v384 = vld [vmem:[%s1 + $0x3b8] sm:$0xf]
  %v385 = vld [vmem:[%s1 + $0x3bc] sm:$0xf]
  %v386 = vld [vmem:[%s1 + $0x3c0] sm:$0xf]
  %v387 = vld [vmem:[%s1 + $0x3c4] sm:$0xf]
  %v388 = vld [vmem:[%s1 + $0x3c8] sm:$0xf]
  %v389 = vld [vmem:[%s1 + $0x3cc] sm:$0xf]
  %v390 = vld [vmem:[%s1 + $0x3d0] sm:$0xf]
  %v391 = vld [vmem:[%s1 + $0x3d4] sm:$0xf]
  %v392 = vld [vmem:[%s1 + $0x3d8] sm:$0xf]
  %v393 = vld [vmem:[%s1 + $0x3dc] sm:$0xf]
  %v394 = vld [vmem:[%s1 + $0x3e0] sm:$0xf]
  %v395 = vld [vmem:[%s1 + $0x3e4] sm:$0xf]
  %v396 = vld [vmem:[%s1 + $0x3e8] sm:$0xf]
  %v397 = vld [vmem:[%s1 + $0x3ec] sm:$0xf]
  %v398 = vld [vmem:[%s1 + $0x3f0] sm:$0xf]
  %v399 = vld [vmem:[%s1 + $0x3f4] sm:$0xf]
  %v400 = vld [vmem:[%s1 + $0x3f8] sm:$0xf]
  %v401 = vld [vmem:[%s1 + $0x3fc] sm:$0xf]
  %v530 = vunpack.c.l.b16 %v18
  %v531 = vunpack.c.h.b16 %v18
  %v532 = vunpack.c.l.b16 %v19
  %v533 = vunpack.c.h.b16 %v19
  %v534 = vunpack.c.l.b16 %v20
  %v535 = vunpack.c.h.b16 %v20
  %v536 = vunpack.c.l.b16 %v21
  %v537 = vunpack.c.h.b16 %v21
  %v538 = vunpack.c.l.b16 %v22
  %v539 = vunpack.c.h.b16 %v22
  %v540 = vunpack.c.l.b16 %v23
  %v541 = vunpack.c.h.b16 %v23
  %v542 = vunpack.c.l.b16 %v24
  %v543 = vunpack.c.h.b16 %v24
  %v544 = vunpack.c.l.b16 %v25
  %v545 = vunpack.c.h.b16 %v25
  %v546 = vunpack.c.l.b16 %v26
  %v547 = vunpack.c.h.b16 %v26
  %v548 = vunpack.c.l.b16 %v27
  %v549 = vunpack.c.h.b16 %v27
  %v550 = vunpack.c.l.b16 %v28
  %v551 = vunpack.c.h.b16 %v28
  %v552 = vunpack.c.l.b16 %v29
  %v553 = vunpack.c.h.b16 %v29
  %v554 = vunpack.c.l.b16 %v30
  %v555 = vunpack.c.h.b16 %v30
  %v556 = vunpack.c.l.b16 %v31
  %v557 = vunpack.c.h.b16 %v31
  %v558 = vunpack.c.l.b16 %v32
  %v559 = vunpack.c.h.b16 %v32
  %v560 = vunpack.c.l.b16 %v33
  %v561 = vunpack.c.h.b16 %v33
  %v562 = vunpack.c.l.b16 %v34
  %v563 = vunpack.c.h.b16 %v34
  %v564 = vunpack.c.l.b16 %v35
  %v565 = vunpack.c.h.b16 %v35
  %v566 = vunpack.c.l.b16 %v36
  %v567 = vunpack.c.h.b16 %v36
  %v568 = vunpack.c.l.b16 %v37
  %v569 = vunpack.c.h.b16 %v37
  %v570 = vunpack.c.l.b16 %v38
  %v571 = vunpack.c.h.b16 %v38
  %v572 = vunpack.c.l.b16 %v39
  %v573 = vunpack.c.h.b16 %v39
  %v574 = vunpack.c.l.b16 %v40
  %v575 = vunpack.c.h.b16 %v40
  %v576 = vunpack.c.l.b16 %v41
  %v577 = vunpack.c.h.b16 %v41
  %v578 = vunpack.c.l.b16 %v42
  %v579 = vunpack.c.h.b16 %v42
  %v580 = vunpack.c.l.b16 %v43
  %v581 = vunpack.c.h.b16 %v43
  %v582 = vunpack.c.l.b16 %v44
  %v583 = vunpack.c.h.b16 %v44
  %v584 = vunpack.c.l.b16 %v45
  %v585 = vunpack.c.h.b16 %v45
  %v586 = vunpack.c.l.b16 %v46
  %v587 = vunpack.c.h.b16 %v46
  %v588 = vunpack.c.l.b16 %v47
  %v589 = vunpack.c.h.b16 %v47
  %v590 = vunpack.c.l.b16 %v48
  %v591 = vunpack.c.h.b16 %v48
  %v592 = vunpack.c.l.b16 %v49
  %v593 = vunpack.c.h.b16 %v49
  %v594 = vunpack.c.l.b16 %v50
  %v595 = vunpack.c.h.b16 %v50
  %v596 = vunpack.c.l.b16 %v51
  %v597 = vunpack.c.h.b16 %v51
  %v598 = vunpack.c.l.b16 %v52
  %v599 = vunpack.c.h.b16 %v52
  %v600 = vunpack.c.l.b16 %v53
  %v601 = vunpack.c.h.b16 %v53
  %v602 = vunpack.c.l.b16 %v54
  %v603 = vunpack.c.h.b16 %v54
  %v604 = vunpack.c.l.b16 %v55
  %v605 = vunpack.c.h.b16 %v55
  %v606 = vunpack.c.l.b16 %v56
  %v607 = vunpack.c.h.b16 %v56
  %v608 = vunpack.c.l.b16 %v57
  %v609 = vunpack.c.h.b16 %v57
  %v610 = vunpack.c.l.b16 %v58
  %v611 = vunpack.c.h.b16 %v58
  %v612 = vunpack.c.l.b16 %v59
  %v613 = vunpack.c.h.b16 %v59
  %v614 = vunpack.c.l.b16 %v60
  %v615 = vunpack.c.h.b16 %v60
  %v616 = vunpack.c.l.b16 %v61
  %v617 = vunpack.c.h.b16 %v61
  %v618 = vunpack.c.l.b16 %v62
  %v619 = vunpack.c.h.b16 %v62
  %v620 = vunpack.c.l.b16 %v63
  %v621 = vunpack.c.h.b16 %v63
  %v622 = vunpack.c.l.b16 %v64
  %v623 = vunpack.c.h.b16 %v64
  %v624 = vunpack.c.l.b16 %v65
  %v625 = vunpack.c.h.b16 %v65
  %v626 = vunpack.c.l.b16 %v66
  %v627 = vunpack.c.h.b16 %v66
  %v628 = vunpack.c.l.b16 %v67
  %v629 = vunpack.c.h.b16 %v67
  %v630 = vunpack.c.l.b16 %v68
  %v631 = vunpack.c.h.b16 %v68
  %v632 = vunpack.c.l.b16 %v69
  %v633 = vunpack.c.h.b16 %v69
  %v634 = vunpack.c.l.b16 %v70
  %v635 = vunpack.c.h.b16 %v70
  %v636 = vunpack.c.l.b16 %v71
  %v637 = vunpack.c.h.b16 %v71
  %v638 = vunpack.c.l.b16 %v72
  %v639 = vunpack.c.h.b16 %v72
  %v640 = vunpack.c.l.b16 %v73
  %v641 = vunpack.c.h.b16 %v73
  %v642 = vunpack.c.l.b16 %v74
  %v643 = vunpack.c.h.b16 %v74
  %v644 = vunpack.c.l.b16 %v75
  %v645 = vunpack.c.h.b16 %v75
  %v646 = vunpack.c.l.b16 %v76
  %v647 = vunpack.c.h.b16 %v76
  %v648 = vunpack.c.l.b16 %v77
  %v649 = vunpack.c.h.b16 %v77
  %v650 = vunpack.c.l.b16 %v78
  %v651 = vunpack.c.h.b16 %v78
  %v652 = vunpack.c.l.b16 %v79
  %v653 = vunpack.c.h.b16 %v79
  %v654 = vunpack.c.l.b16 %v80
  %v655 = vunpack.c.h.b16 %v80
  %v656 = vunpack.c.l.b16 %v81
  %v657 = vunpack.c.h.b16 %v81
  %v658 = vunpack.c.l.b16 %v82
  %v659 = vunpack.c.h.b16 %v82
  %v660 = vunpack.c.l.b16 %v83
  %v661 = vunpack.c.h.b16 %v83
  %v662 = vunpack.c.l.b16 %v84
  %v663 = vunpack.c.h.b16 %v84
  %v664 = vunpack.c.l.b16 %v85
  %v665 = vunpack.c.h.b16 %v85
  %v666 = vunpack.c.l.b16 %v86
  %v667 = vunpack.c.h.b16 %v86
  %v668 = vunpack.c.l.b16 %v87
  %v669 = vunpack.c.h.b16 %v87
  %v670 = vunpack.c.l.b16 %v88
  %v671 = vunpack.c.h.b16 %v88
  %v672 = vunpack.c.l.b16 %v89
  %v673 = vunpack.c.h.b16 %v89
  %v674 = vunpack.c.l.b16 %v90
  %v675 = vunpack.c.h.b16 %v90
  %v676 = vunpack.c.l.b16 %v91
  %v677 = vunpack.c.h.b16 %v91
  %v678 = vunpack.c.l.b16 %v92
  %v679 = vunpack.c.h.b16 %v92
  %v680 = vunpack.c.l.b16 %v93
  %v681 = vunpack.c.h.b16 %v93
  %v682 = vunpack.c.l.b16 %v94
  %v683 = vunpack.c.h.b16 %v94
  %v684 = vunpack.c.l.b16 %v95
  %v685 = vunpack.c.h.b16 %v95
  %v686 = vunpack.c.l.b16 %v96
  %v687 = vunpack.c.h.b16 %v96
  %v688 = vunpack.c.l.b16 %v97
  %v689 = vunpack.c.h.b16 %v97
  %v690 = vunpack.c.l.b16 %v98
  %v691 = vunpack.c.h.b16 %v98
  %v692 = vunpack.c.l.b16 %v99
  %v693 = vunpack.c.h.b16 %v99
  %v694 = vunpack.c.l.b16 %v100
  %v695 = vunpack.c.h.b16 %v100
  %v696 = vunpack.c.l.b16 %v101
  %v697 = vunpack.c.h.b16 %v101
  %v698 = vunpack.c.l.b16 %v102
  %v699 = vunpack.c.h.b16 %v102
  %v700 = vunpack.c.l.b16 %v103
  %v701 = vunpack.c.h.b16 %v103
  %v702 = vunpack.c.l.b16 %v104
  %v703 = vunpack.c.h.b16 %v104
  %v704 = vunpack.c.l.b16 %v105
  %v705 = vunpack.c.h.b16 %v105
  %v706 = vunpack.c.l.b16 %v106
  %v707 = vunpack.c.h.b16 %v106
  %v708 = vunpack.c.l.b16 %v107
  %v709 = vunpack.c.h.b16 %v107
  %v710 = vunpack.c.l.b16 %v108
  %v711 = vunpack.c.h.b16 %v108
  %v712 = vunpack.c.l.b16 %v109
  %v713 = vunpack.c.h.b16 %v109
  %v714 = vunpack.c.l.b16 %v110
  %v715 = vunpack.c.h.b16 %v110
  %v716 = vunpack.c.l.b16 %v111
  %v717 = vunpack.c.h.b16 %v111
  %v718 = vunpack.c.l.b16 %v112
  %v719 = vunpack.c.h.b16 %v112
  %v720 = vunpack.c.l.b16 %v113
  %v721 = vunpack.c.h.b16 %v113
  %v722 = vunpack.c.l.b16 %v114
  %v723 = vunpack.c.h.b16 %v114
  %v724 = vunpack.c.l.b16 %v115
  %v725 = vunpack.c.h.b16 %v115
  %v726 = vunpack.c.l.b16 %v116
  %v727 = vunpack.c.h.b16 %v116
  %v728 = vunpack.c.l.b16 %v117
  %v729 = vunpack.c.h.b16 %v117
  %v730 = vunpack.c.l.b16 %v118
  %v731 = vunpack.c.h.b16 %v118
  %v732 = vunpack.c.l.b16 %v119
  %v733 = vunpack.c.h.b16 %v119
  %v734 = vunpack.c.l.b16 %v120
  %v735 = vunpack.c.h.b16 %v120
  %v736 = vunpack.c.l.b16 %v121
  %v737 = vunpack.c.h.b16 %v121
  %v738 = vunpack.c.l.b16 %v122
  %v739 = vunpack.c.h.b16 %v122
  %v740 = vunpack.c.l.b16 %v123
  %v741 = vunpack.c.h.b16 %v123
  %v742 = vunpack.c.l.b16 %v124
  %v743 = vunpack.c.h.b16 %v124
  %v744 = vunpack.c.l.b16 %v125
  %v745 = vunpack.c.h.b16 %v125
  %v746 = vunpack.c.l.b16 %v126
  %v747 = vunpack.c.h.b16 %v126
  %v748 = vunpack.c.l.b16 %v127
  %v749 = vunpack.c.h.b16 %v127
  %v750 = vunpack.c.l.b16 %v128
  %v751 = vunpack.c.h.b16 %v128
  %v752 = vunpack.c.l.b16 %v129
  %v753 = vunpack.c.h.b16 %v129
  %v754 = vunpack.c.l.b16 %v130
  %v755 = vunpack.c.h.b16 %v130
  %v756 = vunpack.c.l.b16 %v131
  %v757 = vunpack.c.h.b16 %v131
  %v758 = vunpack.c.l.b16 %v132
  %v759 = vunpack.c.h.b16 %v132
  %v760 = vunpack.c.l.b16 %v133
  %v761 = vunpack.c.h.b16 %v133
  %v762 = vunpack.c.l.b16 %v134
  %v763 = vunpack.c.h.b16 %v134
  %v764 = vunpack.c.l.b16 %v135
  %v765 = vunpack.c.h.b16 %v135
  %v766 = vunpack.c.l.b16 %v136
  %v767 = vunpack.c.h.b16 %v136
  %v768 = vunpack.c.l.b16 %v137
  %v769 = vunpack.c.h.b16 %v137
  %v770 = vunpack.c.l.b16 %v138
  %v771 = vunpack.c.h.b16 %v138
  %v772 = vunpack.c.l.b16 %v139
  %v773 = vunpack.c.h.b16 %v139
  %v774 = vunpack.c.l.b16 %v140
  %v775 = vunpack.c.h.b16 %v140
  %v776 = vunpack.c.l.b16 %v141
  %v777 = vunpack.c.h.b16 %v141
  %v778 = vunpack.c.l.b16 %v142
  %v779 = vunpack.c.h.b16 %v142
  %v780 = vunpack.c.l.b16 %v143
  %v781 = vunpack.c.h.b16 %v143
  %v782 = vunpack.c.l.b16 %v144
  %v783 = vunpack.c.h.b16 %v144
  %v784 = vunpack.c.l.b16 %v145
  %v785 = vunpack.c.h.b16 %v145
  %v786 = vpack.c.b16 %v546, %v530
  %v787 = vpack.c.b16 %v547, %v531
  %v788 = vpack.c.b16 %v548, %v532
  %v789 = vpack.c.b16 %v549, %v533
  %v790 = vpack.c.b16 %v550, %v534
  %v791 = vpack.c.b16 %v551, %v535
  %v792 = vpack.c.b16 %v552, %v536
  %v793 = vpack.c.b16 %v553, %v537
  %v794 = vpack.c.b16 %v554, %v538
  %v795 = vpack.c.b16 %v555, %v539
  %v796 = vpack.c.b16 %v556, %v540
  %v797 = vpack.c.b16 %v557, %v541
  %v798 = vpack.c.b16 %v558, %v542
  %v799 = vpack.c.b16 %v559, %v543
  %v800 = vpack.c.b16 %v560, %v544
  %v801 = vpack.c.b16 %v561, %v545
  %v802 = vpack.c.b16 %v578, %v562
  %v803 = vpack.c.b16 %v579, %v563
  %v804 = vpack.c.b16 %v580, %v564
  %v805 = vpack.c.b16 %v581, %v565
  %v806 = vpack.c.b16 %v582, %v566
  %v807 = vpack.c.b16 %v583, %v567
  %v808 = vpack.c.b16 %v584, %v568
  %v809 = vpack.c.b16 %v585, %v569
  %v810 = vpack.c.b16 %v586, %v570
  %v811 = vpack.c.b16 %v587, %v571
  %v812 = vpack.c.b16 %v588, %v572
  %v813 = vpack.c.b16 %v589, %v573
  %v814 = vpack.c.b16 %v590, %v574
  %v815 = vpack.c.b16 %v591, %v575
  %v816 = vpack.c.b16 %v592, %v576
  %v817 = vpack.c.b16 %v593, %v577
  %v818 = vpack.c.b16 %v610, %v594
  %v819 = vpack.c.b16 %v611, %v595
  %v820 = vpack.c.b16 %v612, %v596
  %v821 = vpack.c.b16 %v613, %v597
  %v822 = vpack.c.b16 %v614, %v598
  %v823 = vpack.c.b16 %v615, %v599
  %v824 = vpack.c.b16 %v616, %v600
  %v825 = vpack.c.b16 %v617, %v601
  %v826 = vpack.c.b16 %v618, %v602
  %v827 = vpack.c.b16 %v619, %v603
  %v828 = vpack.c.b16 %v620, %v604
  %v829 = vpack.c.b16 %v621, %v605
  %v830 = vpack.c.b16 %v622, %v606
  %v831 = vpack.c.b16 %v623, %v607
  %v832 = vpack.c.b16 %v624, %v608
  %v833 = vpack.c.b16 %v625, %v609
  %v834 = vpack.c.b16 %v642, %v626
  %v835 = vpack.c.b16 %v643, %v627
  %v836 = vpack.c.b16 %v644, %v628
  %v837 = vpack.c.b16 %v645, %v629
  %v838 = vpack.c.b16 %v646, %v630
  %v839 = vpack.c.b16 %v647, %v631
  %v840 = vpack.c.b16 %v648, %v632
  %v841 = vpack.c.b16 %v649, %v633
  %v842 = vpack.c.b16 %v650, %v634
  %v843 = vpack.c.b16 %v651, %v635
  %v844 = vpack.c.b16 %v652, %v636
  %v845 = vpack.c.b16 %v653, %v637
  %v846 = vpack.c.b16 %v654, %v638
  %v847 = vpack.c.b16 %v655, %v639
  %v848 = vpack.c.b16 %v656, %v640
  %v849 = vpack.c.b16 %v657, %v641
  %v850 = vpack.c.b16 %v674, %v658
  %v851 = vpack.c.b16 %v675, %v659
  %v852 = vpack.c.b16 %v676, %v660
  %v853 = vpack.c.b16 %v677, %v661
  %v854 = vpack.c.b16 %v678, %v662
  %v855 = vpack.c.b16 %v679, %v663
  %v856 = vpack.c.b16 %v680, %v664
  %v857 = vpack.c.b16 %v681, %v665
  %v858 = vpack.c.b16 %v682, %v666
  %v859 = vpack.c.b16 %v683, %v667
  %v860 = vpack.c.b16 %v684, %v668
  %v861 = vpack.c.b16 %v685, %v669
  %v862 = vpack.c.b16 %v686, %v670
  %v863 = vpack.c.b16 %v687, %v671
  %v864 = vpack.c.b16 %v688, %v672
  %v865 = vpack.c.b16 %v689, %v673
  %v866 = vpack.c.b16 %v706, %v690
  %v867 = vpack.c.b16 %v707, %v691
  %v868 = vpack.c.b16 %v708, %v692
  %v869 = vpack.c.b16 %v709, %v693
  %v870 = vpack.c.b16 %v710, %v694
  %v871 = vpack.c.b16 %v711, %v695
  %v872 = vpack.c.b16 %v712, %v696
  %v873 = vpack.c.b16 %v713, %v697
  %v874 = vpack.c.b16 %v714, %v698
  %v875 = vpack.c.b16 %v715, %v699
  %v876 = vpack.c.b16 %v716, %v700
  %v877 = vpack.c.b16 %v717, %v701
  %v878 = vpack.c.b16 %v718, %v702
  %v879 = vpack.c.b16 %v719, %v703
  %v880 = vpack.c.b16 %v720, %v704
  %v881 = vpack.c.b16 %v721, %v705
  %v882 = vpack.c.b16 %v738, %v722
  %v883 = vpack.c.b16 %v739, %v723
  %v884 = vpack.c.b16 %v740, %v724
  %v885 = vpack.c.b16 %v741, %v725
  %v886 = vpack.c.b16 %v742, %v726
  %v887 = vpack.c.b16 %v743, %v727
  %v888 = vpack.c.b16 %v744, %v728
  %v889 = vpack.c.b16 %v745, %v729
  %v890 = vpack.c.b16 %v746, %v730
  %v891 = vpack.c.b16 %v747, %v731
  %v892 = vpack.c.b16 %v748, %v732
  %v893 = vpack.c.b16 %v749, %v733
  %v894 = vpack.c.b16 %v750, %v734
  %v895 = vpack.c.b16 %v751, %v735
  %v896 = vpack.c.b16 %v752, %v736
  %v897 = vpack.c.b16 %v753, %v737
  %v898 = vpack.c.b16 %v770, %v754
  %v899 = vpack.c.b16 %v771, %v755
  %v900 = vpack.c.b16 %v772, %v756
  %v901 = vpack.c.b16 %v773, %v757
  %v902 = vpack.c.b16 %v774, %v758
  %v903 = vpack.c.b16 %v775, %v759
  %v904 = vpack.c.b16 %v776, %v760
  %v905 = vpack.c.b16 %v777, %v761
  %v906 = vpack.c.b16 %v778, %v762
  %v907 = vpack.c.b16 %v779, %v763
  %v908 = vpack.c.b16 %v780, %v764
  %v909 = vpack.c.b16 %v781, %v765
  %v910 = vpack.c.b16 %v782, %v766
  %v911 = vpack.c.b16 %v783, %v767
  %v912 = vpack.c.b16 %v784, %v768
  %v913 = vpack.c.b16 %v785, %v769
  %v1298 = vunpack.c.l.b16 %v146
  %v1299 = vunpack.c.l.b16 %v147
  %v1300 = vunpack.c.l.b16 %v148
  %v1301 = vunpack.c.l.b16 %v149
  %v1302 = vunpack.c.l.b16 %v150
  %v1303 = vunpack.c.l.b16 %v151
  %v1304 = vunpack.c.l.b16 %v152
  %v1305 = vunpack.c.l.b16 %v153
  %v1306 = vunpack.c.l.b16 %v154
  %v1307 = vunpack.c.l.b16 %v155
  %v1308 = vunpack.c.l.b16 %v156
  %v1309 = vunpack.c.l.b16 %v157
  %v1310 = vunpack.c.l.b16 %v158
  %v1311 = vunpack.c.l.b16 %v159
  %v1312 = vunpack.c.l.b16 %v160
  %v1313 = vunpack.c.l.b16 %v161
  %v1314 = vunpack.c.l.b16 %v162
  %v1315 = vunpack.c.l.b16 %v163
  %v1316 = vunpack.c.l.b16 %v164
  %v1317 = vunpack.c.l.b16 %v165
  %v1318 = vunpack.c.l.b16 %v166
  %v1319 = vunpack.c.l.b16 %v167
  %v1320 = vunpack.c.l.b16 %v168
  %v1321 = vunpack.c.l.b16 %v169
  %v1322 = vunpack.c.l.b16 %v170
  %v1323 = vunpack.c.l.b16 %v171
  %v1324 = vunpack.c.l.b16 %v172
  %v1325 = vunpack.c.l.b16 %v173
  %v1326 = vunpack.c.l.b16 %v174
  %v1327 = vunpack.c.l.b16 %v175
  %v1328 = vunpack.c.l.b16 %v176
  %v1329 = vunpack.c.l.b16 %v177
  %v1330 = vunpack.c.l.b16 %v178
  %v1331 = vunpack.c.l.b16 %v179
  %v1332 = vunpack.c.l.b16 %v180
  %v1333 = vunpack.c.l.b16 %v181
  %v1334 = vunpack.c.l.b16 %v182
  %v1335 = vunpack.c.l.b16 %v183
  %v1336 = vunpack.c.l.b16 %v184
  %v1337 = vunpack.c.l.b16 %v185
  %v1338 = vunpack.c.l.b16 %v186
  %v1339 = vunpack.c.l.b16 %v187
  %v1340 = vunpack.c.l.b16 %v188
  %v1341 = vunpack.c.l.b16 %v189
  %v1342 = vunpack.c.l.b16 %v190
  %v1343 = vunpack.c.l.b16 %v191
  %v1344 = vunpack.c.l.b16 %v192
  %v1345 = vunpack.c.l.b16 %v193
  %v1346 = vunpack.c.l.b16 %v194
  %v1347 = vunpack.c.l.b16 %v195
  %v1348 = vunpack.c.l.b16 %v196
  %v1349 = vunpack.c.l.b16 %v197
  %v1350 = vunpack.c.l.b16 %v198
  %v1351 = vunpack.c.l.b16 %v199
  %v1352 = vunpack.c.l.b16 %v200
  %v1353 = vunpack.c.l.b16 %v201
  %v1354 = vunpack.c.l.b16 %v202
  %v1355 = vunpack.c.l.b16 %v203
  %v1356 = vunpack.c.l.b16 %v204
  %v1357 = vunpack.c.l.b16 %v205
  %v1358 = vunpack.c.l.b16 %v206
  %v1359 = vunpack.c.l.b16 %v207
  %v1360 = vunpack.c.l.b16 %v208
  %v1361 = vunpack.c.l.b16 %v209
  %v1362 = vunpack.c.l.b16 %v210
  %v1363 = vunpack.c.l.b16 %v211
  %v1364 = vunpack.c.l.b16 %v212
  %v1365 = vunpack.c.l.b16 %v213
  %v1366 = vunpack.c.l.b16 %v214
  %v1367 = vunpack.c.l.b16 %v215
  %v1368 = vunpack.c.l.b16 %v216
  %v1369 = vunpack.c.l.b16 %v217
  %v1370 = vunpack.c.l.b16 %v218
  %v1371 = vunpack.c.l.b16 %v219
  %v1372 = vunpack.c.l.b16 %v220
  %v1373 = vunpack.c.l.b16 %v221
  %v1374 = vunpack.c.l.b16 %v222
  %v1375 = vunpack.c.l.b16 %v223
  %v1376 = vunpack.c.l.b16 %v224
  %v1377 = vunpack.c.l.b16 %v225
  %v1378 = vunpack.c.l.b16 %v226
  %v1379 = vunpack.c.l.b16 %v227
  %v1380 = vunpack.c.l.b16 %v228
  %v1381 = vunpack.c.l.b16 %v229
  %v1382 = vunpack.c.l.b16 %v230
  %v1383 = vunpack.c.l.b16 %v231
  %v1384 = vunpack.c.l.b16 %v232
  %v1385 = vunpack.c.l.b16 %v233
  %v1386 = vunpack.c.l.b16 %v234
  %v1387 = vunpack.c.l.b16 %v235
  %v1388 = vunpack.c.l.b16 %v236
  %v1389 = vunpack.c.l.b16 %v237
  %v1390 = vunpack.c.l.b16 %v238
  %v1391 = vunpack.c.l.b16 %v239
  %v1392 = vunpack.c.l.b16 %v240
  %v1393 = vunpack.c.l.b16 %v241
  %v1394 = vunpack.c.l.b16 %v242
  %v1395 = vunpack.c.l.b16 %v243
  %v1396 = vunpack.c.l.b16 %v244
  %v1397 = vunpack.c.l.b16 %v245
  %v1398 = vunpack.c.l.b16 %v246
  %v1399 = vunpack.c.l.b16 %v247
  %v1400 = vunpack.c.l.b16 %v248
  %v1401 = vunpack.c.l.b16 %v249
  %v1402 = vunpack.c.l.b16 %v250
  %v1403 = vunpack.c.l.b16 %v251
  %v1404 = vunpack.c.l.b16 %v252
  %v1405 = vunpack.c.l.b16 %v253
  %v1406 = vunpack.c.l.b16 %v254
  %v1407 = vunpack.c.l.b16 %v255
  %v1408 = vunpack.c.l.b16 %v256
  %v1409 = vunpack.c.l.b16 %v257
  %v1410 = vunpack.c.l.b16 %v258
  %v1411 = vunpack.c.l.b16 %v259
  %v1412 = vunpack.c.l.b16 %v260
  %v1413 = vunpack.c.l.b16 %v261
  %v1414 = vunpack.c.l.b16 %v262
  %v1415 = vunpack.c.l.b16 %v263
  %v1416 = vunpack.c.l.b16 %v264
  %v1417 = vunpack.c.l.b16 %v265
  %v1418 = vunpack.c.l.b16 %v266
  %v1419 = vunpack.c.l.b16 %v267
  %v1420 = vunpack.c.l.b16 %v268
  %v1421 = vunpack.c.l.b16 %v269
  %v1422 = vunpack.c.l.b16 %v270
  %v1423 = vunpack.c.l.b16 %v271
  %v1424 = vunpack.c.l.b16 %v272
  %v1425 = vunpack.c.l.b16 %v273
  %v1426 = vunpack.c.l.b16 %v274
  %v1427 = vunpack.c.l.b16 %v275
  %v1428 = vunpack.c.l.b16 %v276
  %v1429 = vunpack.c.l.b16 %v277
  %v1430 = vunpack.c.l.b16 %v278
  %v1431 = vunpack.c.l.b16 %v279
  %v1432 = vunpack.c.l.b16 %v280
  %v1433 = vunpack.c.l.b16 %v281
  %v1434 = vunpack.c.l.b16 %v282
  %v1435 = vunpack.c.l.b16 %v283
  %v1436 = vunpack.c.l.b16 %v284
  %v1437 = vunpack.c.l.b16 %v285
  %v1438 = vunpack.c.l.b16 %v286
  %v1439 = vunpack.c.l.b16 %v287
  %v1440 = vunpack.c.l.b16 %v288
  %v1441 = vunpack.c.l.b16 %v289
  %v1442 = vunpack.c.l.b16 %v290
  %v1443 = vunpack.c.l.b16 %v291
  %v1444 = vunpack.c.l.b16 %v292
  %v1445 = vunpack.c.l.b16 %v293
  %v1446 = vunpack.c.l.b16 %v294
  %v1447 = vunpack.c.l.b16 %v295
  %v1448 = vunpack.c.l.b16 %v296
  %v1449 = vunpack.c.l.b16 %v297
  %v1450 = vunpack.c.l.b16 %v298
  %v1451 = vunpack.c.l.b16 %v299
  %v1452 = vunpack.c.l.b16 %v300
  %v1453 = vunpack.c.l.b16 %v301
  %v1454 = vunpack.c.l.b16 %v302
  %v1455 = vunpack.c.l.b16 %v303
  %v1456 = vunpack.c.l.b16 %v304
  %v1457 = vunpack.c.l.b16 %v305
  %v1458 = vunpack.c.l.b16 %v306
  %v1459 = vunpack.c.l.b16 %v307
  %v1460 = vunpack.c.l.b16 %v308
  %v1461 = vunpack.c.l.b16 %v309
  %v1462 = vunpack.c.l.b16 %v310
  %v1463 = vunpack.c.l.b16 %v311
  %v1464 = vunpack.c.l.b16 %v312
  %v1465 = vunpack.c.l.b16 %v313
  %v1466 = vunpack.c.l.b16 %v314
  %v1467 = vunpack.c.l.b16 %v315
  %v1468 = vunpack.c.l.b16 %v316
  %v1469 = vunpack.c.l.b16 %v317
  %v1470 = vunpack.c.l.b16 %v318
  %v1471 = vunpack.c.l.b16 %v319
  %v1472 = vunpack.c.l.b16 %v320
  %v1473 = vunpack.c.l.b16 %v321
  %v1474 = vunpack.c.l.b16 %v322
  %v1475 = vunpack.c.l.b16 %v323
  %v1476 = vunpack.c.l.b16 %v324
  %v1477 = vunpack.c.l.b16 %v325
  %v1478 = vunpack.c.l.b16 %v326
  %v1479 = vunpack.c.l.b16 %v327
  %v1480 = vunpack.c.l.b16 %v328
  %v1481 = vunpack.c.l.b16 %v329
  %v1482 = vunpack.c.l.b16 %v330
  %v1483 = vunpack.c.l.b16 %v331
  %v1484 = vunpack.c.l.b16 %v332
  %v1485 = vunpack.c.l.b16 %v333
  %v1486 = vunpack.c.l.b16 %v334
  %v1487 = vunpack.c.l.b16 %v335
  %v1488 = vunpack.c.l.b16 %v336
  %v1489 = vunpack.c.l.b16 %v337
  %v1490 = vunpack.c.l.b16 %v338
  %v1491 = vunpack.c.l.b16 %v339
  %v1492 = vunpack.c.l.b16 %v340
  %v1493 = vunpack.c.l.b16 %v341
  %v1494 = vunpack.c.l.b16 %v342
  %v1495 = vunpack.c.l.b16 %v343
  %v1496 = vunpack.c.l.b16 %v344
  %v1497 = vunpack.c.l.b16 %v345
  %v1498 = vunpack.c.l.b16 %v346
  %v1499 = vunpack.c.l.b16 %v347
  %v1500 = vunpack.c.l.b16 %v348
  %v1501 = vunpack.c.l.b16 %v349
  %v1502 = vunpack.c.l.b16 %v350
  %v1503 = vunpack.c.l.b16 %v351
  %v1504 = vunpack.c.l.b16 %v352
  %v1505 = vunpack.c.l.b16 %v353
  %v1506 = vunpack.c.l.b16 %v354
  %v1507 = vunpack.c.l.b16 %v355
  %v1508 = vunpack.c.l.b16 %v356
  %v1509 = vunpack.c.l.b16 %v357
  %v1510 = vunpack.c.l.b16 %v358
  %v1511 = vunpack.c.l.b16 %v359
  %v1512 = vunpack.c.l.b16 %v360
  %v1513 = vunpack.c.l.b16 %v361
  %v1514 = vunpack.c.l.b16 %v362
  %v1515 = vunpack.c.l.b16 %v363
  %v1516 = vunpack.c.l.b16 %v364
  %v1517 = vunpack.c.l.b16 %v365
  %v1518 = vunpack.c.l.b16 %v366
  %v1519 = vunpack.c.l.b16 %v367
  %v1520 = vunpack.c.l.b16 %v368
  %v1521 = vunpack.c.l.b16 %v369
  %v1522 = vunpack.c.l.b16 %v370
  %v1523 = vunpack.c.l.b16 %v371
  %v1524 = vunpack.c.l.b16 %v372
  %v1525 = vunpack.c.l.b16 %v373
  %v1526 = vunpack.c.l.b16 %v374
  %v1527 = vunpack.c.l.b16 %v375
  %v1528 = vunpack.c.l.b16 %v376
  %v1529 = vunpack.c.l.b16 %v377
  %v1530 = vunpack.c.l.b16 %v378
  %v1531 = vunpack.c.l.b16 %v379
  %v1532 = vunpack.c.l.b16 %v380
  %v1533 = vunpack.c.l.b16 %v381
  %v1534 = vunpack.c.l.b16 %v382
  %v1535 = vunpack.c.l.b16 %v383
  %v1536 = vunpack.c.l.b16 %v384
  %v1537 = vunpack.c.l.b16 %v385
  %v1538 = vunpack.c.l.b16 %v386
  %v1539 = vunpack.c.l.b16 %v387
  %v1540 = vunpack.c.l.b16 %v388
  %v1541 = vunpack.c.l.b16 %v389
  %v1542 = vunpack.c.l.b16 %v390
  %v1543 = vunpack.c.l.b16 %v391
  %v1544 = vunpack.c.l.b16 %v392
  %v1545 = vunpack.c.l.b16 %v393
  %v1546 = vunpack.c.l.b16 %v394
  %v1547 = vunpack.c.l.b16 %v395
  %v1548 = vunpack.c.l.b16 %v396
  %v1549 = vunpack.c.l.b16 %v397
  %v1550 = vunpack.c.l.b16 %v398
  %v1551 = vunpack.c.l.b16 %v399
  %v1552 = vunpack.c.l.b16 %v400
  %v1553 = vunpack.c.l.b16 %v401
  %v1554 = vpack.c.b16 %v1299, %v1298
  %v1555 = vpack.c.b16 %v1301, %v1300
  %v1556 = vpack.c.b16 %v1303, %v1302
  %v1557 = vpack.c.b16 %v1305, %v1304
  %v1558 = vpack.c.b16 %v1307, %v1306
  %v1559 = vpack.c.b16 %v1309, %v1308
  %v1560 = vpack.c.b16 %v1311, %v1310
  %v1561 = vpack.c.b16 %v1313, %v1312
  %v1562 = vpack.c.b16 %v1315, %v1314
  %v1563 = vpack.c.b16 %v1317, %v1316
  %v1564 = vpack.c.b16 %v1319, %v1318
  %v1565 = vpack.c.b16 %v1321, %v1320
  %v1566 = vpack.c.b16 %v1323, %v1322
  %v1567 = vpack.c.b16 %v1325, %v1324
  %v1568 = vpack.c.b16 %v1327, %v1326
  %v1569 = vpack.c.b16 %v1329, %v1328
  %v1570 = vpack.c.b16 %v1331, %v1330
  %v1571 = vpack.c.b16 %v1333, %v1332
  %v1572 = vpack.c.b16 %v1335, %v1334
  %v1573 = vpack.c.b16 %v1337, %v1336
  %v1574 = vpack.c.b16 %v1339, %v1338
  %v1575 = vpack.c.b16 %v1341, %v1340
  %v1576 = vpack.c.b16 %v1343, %v1342
  %v1577 = vpack.c.b16 %v1345, %v1344
  %v1578 = vpack.c.b16 %v1347, %v1346
  %v1579 = vpack.c.b16 %v1349, %v1348
  %v1580 = vpack.c.b16 %v1351, %v1350
  %v1581 = vpack.c.b16 %v1353, %v1352
  %v1582 = vpack.c.b16 %v1355, %v1354
  %v1583 = vpack.c.b16 %v1357, %v1356
  %v1584 = vpack.c.b16 %v1359, %v1358
  %v1585 = vpack.c.b16 %v1361, %v1360
  %v1586 = vpack.c.b16 %v1363, %v1362
  %v1587 = vpack.c.b16 %v1365, %v1364
  %v1588 = vpack.c.b16 %v1367, %v1366
  %v1589 = vpack.c.b16 %v1369, %v1368
  %v1590 = vpack.c.b16 %v1371, %v1370
  %v1591 = vpack.c.b16 %v1373, %v1372
  %v1592 = vpack.c.b16 %v1375, %v1374
  %v1593 = vpack.c.b16 %v1377, %v1376
  %v1594 = vpack.c.b16 %v1379, %v1378
  %v1595 = vpack.c.b16 %v1381, %v1380
  %v1596 = vpack.c.b16 %v1383, %v1382
  %v1597 = vpack.c.b16 %v1385, %v1384
  %v1598 = vpack.c.b16 %v1387, %v1386
  %v1599 = vpack.c.b16 %v1389, %v1388
  %v1600 = vpack.c.b16 %v1391, %v1390
  %v1601 = vpack.c.b16 %v1393, %v1392
  %v1602 = vpack.c.b16 %v1395, %v1394
  %v1603 = vpack.c.b16 %v1397, %v1396
  %v1604 = vpack.c.b16 %v1399, %v1398
  %v1605 = vpack.c.b16 %v1401, %v1400
  %v1606 = vpack.c.b16 %v1403, %v1402
  %v1607 = vpack.c.b16 %v1405, %v1404
  %v1608 = vpack.c.b16 %v1407, %v1406
  %v1609 = vpack.c.b16 %v1409, %v1408
  %v1610 = vpack.c.b16 %v1411, %v1410
  %v1611 = vpack.c.b16 %v1413, %v1412
  %v1612 = vpack.c.b16 %v1415, %v1414
  %v1613 = vpack.c.b16 %v1417, %v1416
  %v1614 = vpack.c.b16 %v1419, %v1418
  %v1615 = vpack.c.b16 %v1421, %v1420
  %v1616 = vpack.c.b16 %v1423, %v1422
  %v1617 = vpack.c.b16 %v1425, %v1424
  %v1618 = vpack.c.b16 %v1427, %v1426
  %v1619 = vpack.c.b16 %v1429, %v1428
  %v1620 = vpack.c.b16 %v1431, %v1430
  %v1621 = vpack.c.b16 %v1433, %v1432
  %v1622 = vpack.c.b16 %v1435, %v1434
  %v1623 = vpack.c.b16 %v1437, %v1436
  %v1624 = vpack.c.b16 %v1439, %v1438
  %v1625 = vpack.c.b16 %v1441, %v1440
  %v1626 = vpack.c.b16 %v1443, %v1442
  %v1627 = vpack.c.b16 %v1445, %v1444
  %v1628 = vpack.c.b16 %v1447, %v1446
  %v1629 = vpack.c.b16 %v1449, %v1448
  %v1630 = vpack.c.b16 %v1451, %v1450
  %v1631 = vpack.c.b16 %v1453, %v1452
  %v1632 = vpack.c.b16 %v1455, %v1454
  %v1633 = vpack.c.b16 %v1457, %v1456
  %v1634 = vpack.c.b16 %v1459, %v1458
  %v1635 = vpack.c.b16 %v1461, %v1460
  %v1636 = vpack.c.b16 %v1463, %v1462
  %v1637 = vpack.c.b16 %v1465, %v1464
  %v1638 = vpack.c.b16 %v1467, %v1466
  %v1639 = vpack.c.b16 %v1469, %v1468
  %v1640 = vpack.c.b16 %v1471, %v1470
  %v1641 = vpack.c.b16 %v1473, %v1472
  %v1642 = vpack.c.b16 %v1475, %v1474
  %v1643 = vpack.c.b16 %v1477, %v1476
  %v1644 = vpack.c.b16 %v1479, %v1478
  %v1645 = vpack.c.b16 %v1481, %v1480
  %v1646 = vpack.c.b16 %v1483, %v1482
  %v1647 = vpack.c.b16 %v1485, %v1484
  %v1648 = vpack.c.b16 %v1487, %v1486
  %v1649 = vpack.c.b16 %v1489, %v1488
  %v1650 = vpack.c.b16 %v1491, %v1490
  %v1651 = vpack.c.b16 %v1493, %v1492
  %v1652 = vpack.c.b16 %v1495, %v1494
  %v1653 = vpack.c.b16 %v1497, %v1496
  %v1654 = vpack.c.b16 %v1499, %v1498
  %v1655 = vpack.c.b16 %v1501, %v1500
  %v1656 = vpack.c.b16 %v1503, %v1502
  %v1657 = vpack.c.b16 %v1505, %v1504
  %v1658 = vpack.c.b16 %v1507, %v1506
  %v1659 = vpack.c.b16 %v1509, %v1508
  %v1660 = vpack.c.b16 %v1511, %v1510
  %v1661 = vpack.c.b16 %v1513, %v1512
  %v1662 = vpack.c.b16 %v1515, %v1514
  %v1663 = vpack.c.b16 %v1517, %v1516
  %v1664 = vpack.c.b16 %v1519, %v1518
  %v1665 = vpack.c.b16 %v1521, %v1520
  %v1666 = vpack.c.b16 %v1523, %v1522
  %v1667 = vpack.c.b16 %v1525, %v1524
  %v1668 = vpack.c.b16 %v1527, %v1526
  %v1669 = vpack.c.b16 %v1529, %v1528
  %v1670 = vpack.c.b16 %v1531, %v1530
  %v1671 = vpack.c.b16 %v1533, %v1532
  %v1672 = vpack.c.b16 %v1535, %v1534
  %v1673 = vpack.c.b16 %v1537, %v1536
  %v1674 = vpack.c.b16 %v1539, %v1538
  %v1675 = vpack.c.b16 %v1541, %v1540
  %v1676 = vpack.c.b16 %v1543, %v1542
  %v1677 = vpack.c.b16 %v1545, %v1544
  %v1678 = vpack.c.b16 %v1547, %v1546
  %v1679 = vpack.c.b16 %v1549, %v1548
  %v1680 = vpack.c.b16 %v1551, %v1550
  %v1681 = vpack.c.b16 %v1553, %v1552
  %1810 = vmatprep.subr.bf16.mxu0 0
  %1811 = vmatpush1.bf16.msra.mxu0 %v1554
  %1812 = vmatprep.subr.bf16.mxu0 0
  %1813 = vmatpush1.bf16.msra.mxu0 %v1555
  %1814 = vmatprep.subr.bf16.mxu0 0
  %1815 = vmatpush1.bf16.msra.mxu0 %v1556
  %1816 = vmatprep.subr.bf16.mxu0 0
  %1817 = vmatpush1.bf16.msra.mxu0 %v1557
  %1818 = vmatprep.subr.bf16.mxu0 0
  %1819 = vmatpush1.bf16.msra.mxu0 %v1558
  %1820 = vmatprep.subr.bf16.mxu0 0
  %1821 = vmatpush1.bf16.msra.mxu0 %v1559
  %1822 = vmatprep.subr.bf16.mxu0 0
  %1823 = vmatpush1.bf16.msra.mxu0 %v1560
  %1824 = vmatprep.subr.bf16.mxu0 0
  %1825 = vmatpush1.bf16.msra.mxu0 %v1561
  %1826 = vmatprep.subr.bf16.mxu0 0
  %1827 = vmatpush1.bf16.msra.mxu0 %v1562
  %1828 = vmatprep.subr.bf16.mxu0 0
  %1829 = vmatpush1.bf16.msra.mxu0 %v1563
  %1830 = vmatprep.subr.bf16.mxu0 0
  %1831 = vmatpush1.bf16.msra.mxu0 %v1564
  %1832 = vmatprep.subr.bf16.mxu0 0
  %1833 = vmatpush1.bf16.msra.mxu0 %v1565
  %1834 = vmatprep.subr.bf16.mxu0 0
  %1835 = vmatpush1.bf16.msra.mxu0 %v1566
  %1836 = vmatprep.subr.bf16.mxu0 0
  %1837 = vmatpush1.bf16.msra.mxu0 %v1567
  %1838 = vmatprep.subr.bf16.mxu0 0
  %1839 = vmatpush1.bf16.msra.mxu0 %v1568
  %1840 = vmatprep.subr.bf16.mxu0 0
  %1841 = vmatpush1.bf16.msra.mxu0 %v1569
  %1842 = vmatprep.mubr.bf16.mxu0 %v787
  %1843 = vmatmul.mubr.bf16.gmra.mrb[0].mxu0 %v786
  %v1844 = vpop.f32.mrb[0].mxu0
  %v1845 = vadd.f32 0.0, %v1844
  %v1846 = vpop.f32.mrb[0].mxu0
  %v1847 = vpop.f32.mrb[0].mxu0
  %v1848 = vadd.f32 0.0, %v1847
  %v1849 = vpop.f32.mrb[0].mxu0
  %1850 = vmatprep.mubr.bf16.mxu0 %v803
  %1851 = vmatmul.mubr.bf16.gmra.mrb[0].mxu0 %v802
  %v1852 = vpop.f32.mrb[0].mxu0
  %v1853 = vadd.f32 0.0, %v1852
  %v1854 = vpop.f32.mrb[0].mxu0
  %v1855 = vpop.f32.mrb[0].mxu0
  %v1856 = vadd.f32 0.0, %v1855
  %v1857 = vpop.f32.mrb[0].mxu0
  %1858 = vmatprep.mubr.bf16.mxu0 %v819
  %1859 = vmatmul.mubr.bf16.gmra.mrb[0].mxu0 %v818
  %v1860 = vpop.f32.mrb[0].mxu0
  %v1861 = vadd.f32 0.0, %v1860
  %v1862 = vpop.f32.mrb[0].mxu0
  %v1863 = vpop.f32.mrb[0].mxu0
  %v1864 = vadd.f32 0.0, %v1863
  %v1865 = vpop.f32.mrb[0].mxu0
  %1866 = vmatprep.mubr.bf16.mxu0 %v835
  %1867 = vmatmul.mubr.bf16.gmra.mrb[0].mxu0 %v834
  %v1868 = vpop.f32.mrb[0].mxu0
  %v1869 = vadd.f32 0.0, %v1868
  %v1870 = vpop.f32.mrb[0].mxu0
  %v1871 = vpop.f32.mrb[0].mxu0
  %v1872 = vadd.f32 0.0, %v1871
  %v1873 = vpop.f32.mrb[0].mxu0
  %1874 = vmatprep.mubr.bf16.mxu0 %v851
  %1875 = vmatmul.mubr.bf16.gmra.mrb[0].mxu0 %v850
  %v1876 = vpop.f32.mrb[0].mxu0
  %v1877 = vadd.f32 0.0, %v1876
  %v1878 = vpop.f32.mrb[0].mxu0
  %v1879 = vpop.f32.mrb[0].mxu0
  %v1880 = vadd.f32 0.0, %v1879
  %v1881 = vpop.f32.mrb[0].mxu0
  %1882 = vmatprep.mubr.bf16.mxu0 %v867
  %1883 = vmatmul.mubr.bf16.gmra.mrb[0].mxu0 %v866
  %v1884 = vpop.f32.mrb[0].mxu0
  %v1885 = vadd.f32 0.0, %v1884
  %v1886 = vpop.f32.mrb[0].mxu0
  %v1887 = vpop.f32.mrb[0].mxu0
  %v1888 = vadd.f32 0.0, %v1887
  %v1889 = vpop.f32.mrb[0].mxu0
  %1890 = vmatprep.mubr.bf16.mxu0 %v883
  %1891 = vmatmul.mubr.bf16.gmra.mrb[0].mxu0 %v882
  %v1892 = vpop.f32.mrb[0].mxu0
  %v1893 = vadd.f32 0.0, %v1892
  %v1894 = vpop.f32.mrb[0].mxu0
  %v1895 = vpop.f32.mrb[0].mxu0
  %v1896 = vadd.f32 0.0, %v1895
  %v1897 = vpop.f32.mrb[0].mxu0
  %1898 = vmatprep.mubr.bf16.mxu0 %v899
  %1899 = vmatmul.mubr.bf16.gmra.mrb[0].mxu0 %v898
  %v1900 = vpop.f32.mrb[0].mxu0
  %v1901 = vadd.f32 0.0, %v1900
  %v1902 = vpop.f32.mrb[0].mxu0
  %v1903 = vpop.f32.mrb[0].mxu0
  %v1904 = vadd.f32 0.0, %v1903
  %v1905 = vpop.f32.mrb[0].mxu0
  %1906 = vdwg.mxu0
  %1907 = vmatprep.subr.bf16.mxu0 0
  %1908 = vmatpush1.bf16.msra.mxu0 %v1570
  %1909 = vmatprep.subr.bf16.mxu0 0
  %1910 = vmatpush1.bf16.msra.mxu0 %v1571
  %1911 = vmatprep.subr.bf16.mxu0 0
  %1912 = vmatpush1.bf16.msra.mxu0 %v1572
  %1913 = vmatprep.subr.bf16.mxu0 0
  %1914 = vmatpush1.bf16.msra.mxu0 %v1573
  %1915 = vmatprep.subr.bf16.mxu0 0
  %1916 = vmatpush1.bf16.msra.mxu0 %v1574
  %1917 = vmatprep.subr.bf16.mxu0 0
  %1918 = vmatpush1.bf16.msra.mxu0 %v1575
  %1919 = vmatprep.subr.bf16.mxu0 0
  %1920 = vmatpush1.bf16.msra.mxu0 %v1576
  %1921 = vmatprep.subr.bf16.mxu0 0
  %1922 = vmatpush1.bf16.msra.mxu0 %v1577
  %1923 = vmatprep.subr.bf16.mxu0 0
  %1924 = vmatpush1.bf16.msra.mxu0 %v1578
  %1925 = vmatprep.subr.bf16.mxu0 0
  %1926 = vmatpush1.bf16.msra.mxu0 %v1579
  %1927 = vmatprep.subr.bf16.mxu0 0
  %1928 = vmatpush1.bf16.msra.mxu0 %v1580
  %1929 = vmatprep.subr.bf16.mxu0 0
  %1930 = vmatpush1.bf16.msra.mxu0 %v1581
  %1931 = vmatprep.subr.bf16.mxu0 0
  %1932 = vmatpush1.bf16.msra.mxu0 %v1582
  %1933 = vmatprep.subr.bf16.mxu0 0
  %1934 = vmatpush1.bf16.msra.mxu0 %v1583
  %1935 = vmatprep.subr.bf16.mxu0 0
  %1936 = vmatpush1.bf16.msra.mxu0 %v1584
  %1937 = vmatprep.subr.bf16.mxu0 0
  %1938 = vmatpush1.bf16.msra.mxu0 %v1585
  %1939 = vmatprep.mubr.bf16.mxu0 %v789
  %1940 = vmatmul.mubr.bf16.gmra.mrb[0].mxu0 %v788
  %v1941 = vpop.f32.mrb[0].mxu0
  %v1942 = vadd.f32 %v1845, %v1941
  %v1943 = vpop.f32.mrb[0].mxu0
  %v1944 = vpop.f32.mrb[0].mxu0
  %v1945 = vadd.f32 %v1848, %v1944
  %v1946 = vpop.f32.mrb[0].mxu0
  %1947 = vmatprep.mubr.bf16.mxu0 %v805
  %1948 = vmatmul.mubr.bf16.gmra.mrb[0].mxu0 %v804
  %v1949 = vpop.f32.mrb[0].mxu0
  %v1950 = vadd.f32 %v1853, %v1949
  %v1951 = vpop.f32.mrb[0].mxu0
  %v1952 = vpop.f32.mrb[0].mxu0
  %v1953 = vadd.f32 %v1856, %v1952
  %v1954 = vpop.f32.mrb[0].mxu0
  %1955 = vmatprep.mubr.bf16.mxu0 %v821
  %1956 = vmatmul.mubr.bf16.gmra.mrb[0].mxu0 %v820
  %v1957 = vpop.f32.mrb[0].mxu0
  %v1958 = vadd.f32 %v1861, %v1957
  %v1959 = vpop.f32.mrb[0].mxu0
  %v1960 = vpop.f32.mrb[0].mxu0
  %v1961 = vadd.f32 %v1864, %v1960
  %v1962 = vpop.f32.mrb[0].mxu0
  %1963 = vmatprep.mubr.bf16.mxu0 %v837
  %1964 = vmatmul.mubr.bf16.gmra.mrb[0].mxu0 %v836
  %v1965 = vpop.f32.mrb[0].mxu0
  %v1966 = vadd.f32 %v1869, %v1965
  %v1967 = vpop.f32.mrb[0].mxu0
  %v1968 = vpop.f32.mrb[0].mxu0
  %v1969 = vadd.f32 %v1872, %v1968
  %v1970 = vpop.f32.mrb[0].mxu0
  %1971 = vmatprep.mubr.bf16.mxu0 %v853
  %1972 = vmatmul.mubr.bf16.gmra.mrb[0].mxu0 %v852
  %v1973 = vpop.f32.mrb[0].mxu0
  %v1974 = vadd.f32 %v1877, %v1973
  %v1975 = vpop.f32.mrb[0].mxu0
  %v1976 = vpop.f32.mrb[0].mxu0
  %v1977 = vadd.f32 %v1880, %v1976
  %v1978 = vpop.f32.mrb[0].mxu0
  %1979 = vmatprep.mubr.bf16.mxu0 %v869
  %1980 = vmatmul.mubr.bf16.gmra.mrb[0].mxu0 %v868
  %v1981 = vpop.f32.mrb[0].mxu0
  %v1982 = vadd.f32 %v1885, %v1981
  %v1983 = vpop.f32.mrb[0].mxu0
  %v1984 = vpop.f32.mrb[0].mxu0
  %v1985 = vadd.f32 %v1888, %v1984
  %v1986 = vpop.f32.mrb[0].mxu0
  %1987 = vmatprep.mubr.bf16.mxu0 %v885
  %1988 = vmatmul.mubr.bf16.gmra.mrb[0].mxu0 %v884
  %v1989 = vpop.f32.mrb[0].mxu0
  %v1990 = vadd.f32 %v1893, %v1989
  %v1991 = vpop.f32.mrb[0].mxu0
  %v1992 = vpop.f32.mrb[0].mxu0
  %v1993 = vadd.f32 %v1896, %v1992
  %v1994 = vpop.f32.mrb[0].mxu0
  %1995 = vmatprep.mubr.bf16.mxu0 %v901
  %1996 = vmatmul.mubr.bf16.gmra.mrb[0].mxu0 %v900
  %v1997 = vpop.f32.mrb[0].mxu0
  %v1998 = vadd.f32 %v1901, %v1997
  %v1999 = vpop.f32.mrb[0].mxu0
  %v2000 = vpop.f32.mrb[0].mxu0
  %v2001 = vadd.f32 %v1904, %v2000
  %v2002 = vpop.f32.mrb[0].mxu0
  %2003 = vdwg.mxu0
  %2004 = vmatprep.subr.bf16.mxu0 0
  %2005 = vmatpush1.bf16.msra.mxu0 %v1586
  %2006 = vmatprep.subr.bf16.mxu0 0
  %2007 = vmatpush1.bf16.msra.mxu0 %v1587
  %2008 = vmatprep.subr.bf16.mxu0 0
  %2009 = vmatpush1.bf16.msra.mxu0 %v1588
  %2010 = vmatprep.subr.bf16.mxu0 0
  %2011 = vmatpush1.bf16.msra.mxu0 %v1589
  %2012 = vmatprep.subr.bf16.mxu0 0
  %2013 = vmatpush1.bf16.msra.mxu0 %v1590
  %2014 = vmatprep.subr.bf16.mxu0 0
  %2015 = vmatpush1.bf16.msra.mxu0 %v1591
  %2016 = vmatprep.subr.bf16.mxu0 0
  %2017 = vmatpush1.bf16.msra.mxu0 %v1592
  %2018 = vmatprep.subr.bf16.mxu0 0
  %2019 = vmatpush1.bf16.msra.mxu0 %v1593
  %2020 = vmatprep.subr.bf16.mxu0 0
  %2021 = vmatpush1.bf16.msra.mxu0 %v1594
  %2022 = vmatprep.subr.bf16.mxu0 0
  %2023 = vmatpush1.bf16.msra.mxu0 %v1595
  %2024 = vmatprep.subr.bf16.mxu0 0
  %2025 = vmatpush1.bf16.msra.mxu0 %v1596
  %2026 = vmatprep.subr.bf16.mxu0 0
  %2027 = vmatpush1.bf16.msra.mxu0 %v1597
  %2028 = vmatprep.subr.bf16.mxu0 0
  %2029 = vmatpush1.bf16.msra.mxu0 %v1598
  %2030 = vmatprep.subr.bf16.mxu0 0
  %2031 = vmatpush1.bf16.msra.mxu0 %v1599
  %2032 = vmatprep.subr.bf16.mxu0 0
  %2033 = vmatpush1.bf16.msra.mxu0 %v1600
  %2034 = vmatprep.subr.bf16.mxu0 0
  %2035 = vmatpush1.bf16.msra.mxu0 %v1601
  %2036 = vmatprep.mubr.bf16.mxu0 %v791
  %2037 = vmatmul.mubr.bf16.gmra.mrb[0].mxu0 %v790
  %v2038 = vpop.f32.mrb[0].mxu0
  %v2039 = vadd.f32 %v1942, %v2038
  %v2040 = vpop.f32.mrb[0].mxu0
  %v2041 = vpop.f32.mrb[0].mxu0
  %v2042 = vadd.f32 %v1945, %v2041
  %v2043 = vpop.f32.mrb[0].mxu0
  %2044 = vmatprep.mubr.bf16.mxu0 %v807
  %2045 = vmatmul.mubr.bf16.gmra.mrb[0].mxu0 %v806
  %v2046 = vpop.f32.mrb[0].mxu0
  %v2047 = vadd.f32 %v1950, %v2046
  %v2048 = vpop.f32.mrb[0].mxu0
  %v2049 = vpop.f32.mrb[0].mxu0
  %v2050 = vadd.f32 %v1953, %v2049
  %v2051 = vpop.f32.mrb[0].mxu0
  %2052 = vmatprep.mubr.bf16.mxu0 %v823
  %2053 = vmatmul.mubr.bf16.gmra.mrb[0].mxu0 %v822
  %v2054 = vpop.f32.mrb[0].mxu0
  %v2055 = vadd.f32 %v1958, %v2054
  %v2056 = vpop.f32.mrb[0].mxu0
  %v2057 = vpop.f32.mrb[0].mxu0
  %v2058 = vadd.f32 %v1961, %v2057
  %v2059 = vpop.f32.mrb[0].mxu0
  %2060 = vmatprep.mubr.bf16.mxu0 %v839
  %2061 = vmatmul.mubr.bf16.gmra.mrb[0].mxu0 %v838
  %v2062 = vpop.f32.mrb[0].mxu0
  %v2063 = vadd.f32 %v1966, %v2062
  %v2064 = vpop.f32.mrb[0].mxu0
  %v2065 = vpop.f32.mrb[0].mxu0
  %v2066 = vadd.f32 %v1969, %v2065
  %v2067 = vpop.f32.mrb[0].mxu0
  %2068 = vmatprep.mubr.bf16.mxu0 %v855
  %2069 = vmatmul.mubr.bf16.gmra.mrb[0].mxu0 %v854
  %v2070 = vpop.f32.mrb[0].mxu0
  %v2071 = vadd.f32 %v1974, %v2070
  %v2072 = vpop.f32.mrb[0].mxu0
  %v2073 = vpop.f32.mrb[0].mxu0
  %v2074 = vadd.f32 %v1977, %v2073
  %v2075 = vpop.f32.mrb[0].mxu0
  %2076 = vmatprep.mubr.bf16.mxu0 %v871
  %2077 = vmatmul.mubr.bf16.gmra.mrb[0].mxu0 %v870
  %v2078 = vpop.f32.mrb[0].mxu0
  %v2079 = vadd.f32 %v1982, %v2078
  %v2080 = vpop.f32.mrb[0].mxu0
  %v2081 = vpop.f32.mrb[0].mxu0
  %v2082 = vadd.f32 %v1985, %v2081
  %v2083 = vpop.f32.mrb[0].mxu0
  %2084 = vmatprep.mubr.bf16.mxu0 %v887
  %2085 = vmatmul.mubr.bf16.gmra.mrb[0].mxu0 %v886
  %v2086 = vpop.f32.mrb[0].mxu0
  %v2087 = vadd.f32 %v1990, %v2086
  %v2088 = vpop.f32.mrb[0].mxu0
  %v2089 = vpop.f32.mrb[0].mxu0
  %v2090 = vadd.f32 %v1993, %v2089
  %v2091 = vpop.f32.mrb[0].mxu0
  %2092 = vmatprep.mubr.bf16.mxu0 %v903
  %2093 = vmatmul.mubr.bf16.gmra.mrb[0].mxu0 %v902
  %v2094 = vpop.f32.mrb[0].mxu0
  %v2095 = vadd.f32 %v1998, %v2094
  %v2096 = vpop.f32.mrb[0].mxu0
  %v2097 = vpop.f32.mrb[0].mxu0
  %v2098 = vadd.f32 %v2001, %v2097
  %v2099 = vpop.f32.mrb[0].mxu0
  %2100 = vdwg.mxu0
  %2101 = vmatprep.subr.bf16.mxu0 0
  %2102 = vmatpush1.bf16.msra.mxu0 %v1602
  %2103 = vmatprep.subr.bf16.mxu0 0
  %2104 = vmatpush1.bf16.msra.mxu0 %v1603
  %2105 = vmatprep.subr.bf16.mxu0 0
  %2106 = vmatpush1.bf16.msra.mxu0 %v1604
  %2107 = vmatprep.subr.bf16.mxu0 0
  %2108 = vmatpush1.bf16.msra.mxu0 %v1605
  %2109 = vmatprep.subr.bf16.mxu0 0
  %2110 = vmatpush1.bf16.msra.mxu0 %v1606
  %2111 = vmatprep.subr.bf16.mxu0 0
  %2112 = vmatpush1.bf16.msra.mxu0 %v1607
  %2113 = vmatprep.subr.bf16.mxu0 0
  %2114 = vmatpush1.bf16.msra.mxu0 %v1608
  %2115 = vmatprep.subr.bf16.mxu0 0
  %2116 = vmatpush1.bf16.msra.mxu0 %v1609
  %2117 = vmatprep.subr.bf16.mxu0 0
  %2118 = vmatpush1.bf16.msra.mxu0 %v1610
  %2119 = vmatprep.subr.bf16.mxu0 0
  %2120 = vmatpush1.bf16.msra.mxu0 %v1611
  %2121 = vmatprep.subr.bf16.mxu0 0
  %2122 = vmatpush1.bf16.msra.mxu0 %v1612
  %2123 = vmatprep.subr.bf16.mxu0 0
  %2124 = vmatpush1.bf16.msra.mxu0 %v1613
  %2125 = vmatprep.subr.bf16.mxu0 0
  %2126 = vmatpush1.bf16.msra.mxu0 %v1614
  %2127 = vmatprep.subr.bf16.mxu0 0
  %2128 = vmatpush1.bf16.msra.mxu0 %v1615
  %2129 = vmatprep.subr.bf16.mxu0 0
  %2130 = vmatpush1.bf16.msra.mxu0 %v1616
  %2131 = vmatprep.subr.bf16.mxu0 0
  %2132 = vmatpush1.bf16.msra.mxu0 %v1617
  %2133 = vmatprep.mubr.bf16.mxu0 %v793
  %2134 = vmatmul.mubr.bf16.gmra.mrb[0].mxu0 %v792
  %v2135 = vpop.f32.mrb[0].mxu0
  %v2136 = vadd.f32 %v2039, %v2135
  %v2137 = vpop.f32.mrb[0].mxu0
  %v2138 = vpop.f32.mrb[0].mxu0
  %v2139 = vadd.f32 %v2042, %v2138
  %v2140 = vpop.f32.mrb[0].mxu0
  %2141 = vmatprep.mubr.bf16.mxu0 %v809
  %2142 = vmatmul.mubr.bf16.gmra.mrb[0].mxu0 %v808
  %v2143 = vpop.f32.mrb[0].mxu0
  %v2144 = vadd.f32 %v2047, %v2143
  %v2145 = vpop.f32.mrb[0].mxu0
  %v2146 = vpop.f32.mrb[0].mxu0
  %v2147 = vadd.f32 %v2050, %v2146
  %v2148 = vpop.f32.mrb[0].mxu0
  %2149 = vmatprep.mubr.bf16.mxu0 %v825
  %2150 = vmatmul.mubr.bf16.gmra.mrb[0].mxu0 %v824
  %v2151 = vpop.f32.mrb[0].mxu0
  %v2152 = vadd.f32 %v2055, %v2151
  %v2153 = vpop.f32.mrb[0].mxu0
  %v2154 = vpop.f32.mrb[0].mxu0
  %v2155 = vadd.f32 %v2058, %v2154
  %v2156 = vpop.f32.mrb[0].mxu0
  %2157 = vmatprep.mubr.bf16.mxu0 %v841
  %2158 = vmatmul.mubr.bf16.gmra.mrb[0].mxu0 %v840
  %v2159 = vpop.f32.mrb[0].mxu0
  %v2160 = vadd.f32 %v2063, %v2159
  %v2161 = vpop.f32.mrb[0].mxu0
  %v2162 = vpop.f32.mrb[0].mxu0
  %v2163 = vadd.f32 %v2066, %v2162
  %v2164 = vpop.f32.mrb[0].mxu0
  %2165 = vmatprep.mubr.bf16.mxu0 %v857
  %2166 = vmatmul.mubr.bf16.gmra.mrb[0].mxu0 %v856
  %v2167 = vpop.f32.mrb[0].mxu0
  %v2168 = vadd.f32 %v2071, %v2167
  %v2169 = vpop.f32.mrb[0].mxu0
  %v2170 = vpop.f32.mrb[0].mxu0
  %v2171 = vadd.f32 %v2074, %v2170
  %v2172 = vpop.f32.mrb[0].mxu0
  %2173 = vmatprep.mubr.bf16.mxu0 %v873
  %2174 = vmatmul.mubr.bf16.gmra.mrb[0].mxu0 %v872
  %v2175 = vpop.f32.mrb[0].mxu0
  %v2176 = vadd.f32 %v2079, %v2175
  %v2177 = vpop.f32.mrb[0].mxu0
  %v2178 = vpop.f32.mrb[0].mxu0
  %v2179 = vadd.f32 %v2082, %v2178
  %v2180 = vpop.f32.mrb[0].mxu0
  %2181 = vmatprep.mubr.bf16.mxu0 %v889
  %2182 = vmatmul.mubr.bf16.gmra.mrb[0].mxu0 %v888
  %v2183 = vpop.f32.mrb[0].mxu0
  %v2184 = vadd.f32 %v2087, %v2183
  %v2185 = vpop.f32.mrb[0].mxu0
  %v2186 = vpop.f32.mrb[0].mxu0
  %v2187 = vadd.f32 %v2090, %v2186
  %v2188 = vpop.f32.mrb[0].mxu0
  %2189 = vmatprep.mubr.bf16.mxu0 %v905
  %2190 = vmatmul.mubr.bf16.gmra.mrb[0].mxu0 %v904
  %v2191 = vpop.f32.mrb[0].mxu0
  %v2192 = vadd.f32 %v2095, %v2191
  %v2193 = vpop.f32.mrb[0].mxu0
  %v2194 = vpop.f32.mrb[0].mxu0
  %v2195 = vadd.f32 %v2098, %v2194
  %v2196 = vpop.f32.mrb[0].mxu0
  %2197 = vdwg.mxu0
  %2198 = vmatprep.subr.bf16.mxu0 0
  %2199 = vmatpush1.bf16.msra.mxu0 %v1618
  %2200 = vmatprep.subr.bf16.mxu0 0
  %2201 = vmatpush1.bf16.msra.mxu0 %v1619
  %2202 = vmatprep.subr.bf16.mxu0 0
  %2203 = vmatpush1.bf16.msra.mxu0 %v1620
  %2204 = vmatprep.subr.bf16.mxu0 0
  %2205 = vmatpush1.bf16.msra.mxu0 %v1621
  %2206 = vmatprep.subr.bf16.mxu0 0
  %2207 = vmatpush1.bf16.msra.mxu0 %v1622
  %2208 = vmatprep.subr.bf16.mxu0 0
  %2209 = vmatpush1.bf16.msra.mxu0 %v1623
  %2210 = vmatprep.subr.bf16.mxu0 0
  %2211 = vmatpush1.bf16.msra.mxu0 %v1624
  %2212 = vmatprep.subr.bf16.mxu0 0
  %2213 = vmatpush1.bf16.msra.mxu0 %v1625
  %2214 = vmatprep.subr.bf16.mxu0 0
  %2215 = vmatpush1.bf16.msra.mxu0 %v1626
  %2216 = vmatprep.subr.bf16.mxu0 0
  %2217 = vmatpush1.bf16.msra.mxu0 %v1627
  %2218 = vmatprep.subr.bf16.mxu0 0
  %2219 = vmatpush1.bf16.msra.mxu0 %v1628
  %2220 = vmatprep.subr.bf16.mxu0 0
  %2221 = vmatpush1.bf16.msra.mxu0 %v1629
  %2222 = vmatprep.subr.bf16.mxu0 0
  %2223 = vmatpush1.bf16.msra.mxu0 %v1630
  %2224 = vmatprep.subr.bf16.mxu0 0
  %2225 = vmatpush1.bf16.msra.mxu0 %v1631
  %2226 = vmatprep.subr.bf16.mxu0 0
  %2227 = vmatpush1.bf16.msra.mxu0 %v1632
  %2228 = vmatprep.subr.bf16.mxu0 0
  %2229 = vmatpush1.bf16.msra.mxu0 %v1633
  %2230 = vmatprep.mubr.bf16.mxu0 %v795
  %2231 = vmatmul.mubr.bf16.gmra.mrb[0].mxu0 %v794
  %v2232 = vpop.f32.mrb[0].mxu0
  %v2233 = vadd.f32 %v2136, %v2232
  %v2234 = vpop.f32.mrb[0].mxu0
  %v2235 = vpop.f32.mrb[0].mxu0
  %v2236 = vadd.f32 %v2139, %v2235
  %v2237 = vpop.f32.mrb[0].mxu0
  %2238 = vmatprep.mubr.bf16.mxu0 %v811
  %2239 = vmatmul.mubr.bf16.gmra.mrb[0].mxu0 %v810
  %v2240 = vpop.f32.mrb[0].mxu0
  %v2241 = vadd.f32 %v2144, %v2240
  %v2242 = vpop.f32.mrb[0].mxu0
  %v2243 = vpop.f32.mrb[0].mxu0
  %v2244 = vadd.f32 %v2147, %v2243
  %v2245 = vpop.f32.mrb[0].mxu0
  %2246 = vmatprep.mubr.bf16.mxu0 %v827
  %2247 = vmatmul.mubr.bf16.gmra.mrb[0].mxu0 %v826
  %v2248 = vpop.f32.mrb[0].mxu0
  %v2249 = vadd.f32 %v2152, %v2248
  %v2250 = vpop.f32.mrb[0].mxu0
  %v2251 = vpop.f32.mrb[0].mxu0
  %v2252 = vadd.f32 %v2155, %v2251
  %v2253 = vpop.f32.mrb[0].mxu0
  %2254 = vmatprep.mubr.bf16.mxu0 %v843
  %2255 = vmatmul.mubr.bf16.gmra.mrb[0].mxu0 %v842
  %v2256 = vpop.f32.mrb[0].mxu0
  %v2257 = vadd.f32 %v2160, %v2256
  %v2258 = vpop.f32.mrb[0].mxu0
  %v2259 = vpop.f32.mrb[0].mxu0
  %v2260 = vadd.f32 %v2163, %v2259
  %v2261 = vpop.f32.mrb[0].mxu0
  %2262 = vmatprep.mubr.bf16.mxu0 %v859
  %2263 = vmatmul.mubr.bf16.gmra.mrb[0].mxu0 %v858
  %v2264 = vpop.f32.mrb[0].mxu0
  %v2265 = vadd.f32 %v2168, %v2264
  %v2266 = vpop.f32.mrb[0].mxu0
  %v2267 = vpop.f32.mrb[0].mxu0
  %v2268 = vadd.f32 %v2171, %v2267
  %v2269 = vpop.f32.mrb[0].mxu0
  %2270 = vmatprep.mubr.bf16.mxu0 %v875
  %2271 = vmatmul.mubr.bf16.gmra.mrb[0].mxu0 %v874
  %v2272 = vpop.f32.mrb[0].mxu0
  %v2273 = vadd.f32 %v2176, %v2272
  %v2274 = vpop.f32.mrb[0].mxu0
  %v2275 = vpop.f32.mrb[0].mxu0
  %v2276 = vadd.f32 %v2179, %v2275
  %v2277 = vpop.f32.mrb[0].mxu0
  %2278 = vmatprep.mubr.bf16.mxu0 %v891
  %2279 = vmatmul.mubr.bf16.gmra.mrb[0].mxu0 %v890
  %v2280 = vpop.f32.mrb[0].mxu0
  %v2281 = vadd.f32 %v2184, %v2280
  %v2282 = vpop.f32.mrb[0].mxu0
  %v2283 = vpop.f32.mrb[0].mxu0
  %v2284 = vadd.f32 %v2187, %v2283
  %v2285 = vpop.f32.mrb[0].mxu0
  %2286 = vmatprep.mubr.bf16.mxu0 %v907
  %2287 = vmatmul.mubr.bf16.gmra.mrb[0].mxu0 %v906
  %v2288 = vpop.f32.mrb[0].mxu0
  %v2289 = vadd.f32 %v2192, %v2288
  %v2290 = vpop.f32.mrb[0].mxu0
  %v2291 = vpop.f32.mrb[0].mxu0
  %v2292 = vadd.f32 %v2195, %v2291
  %v2293 = vpop.f32.mrb[0].mxu0
  %2294 = vdwg.mxu0
  %2295 = vmatprep.subr.bf16.mxu0 0
  %2296 = vmatpush1.bf16.msra.mxu0 %v1634
  %2297 = vmatprep.subr.bf16.mxu0 0
  %2298 = vmatpush1.bf16.msra.mxu0 %v1635
  %2299 = vmatprep.subr.bf16.mxu0 0
  %2300 = vmatpush1.bf16.msra.mxu0 %v1636
  %2301 = vmatprep.subr.bf16.mxu0 0
  %2302 = vmatpush1.bf16.msra.mxu0 %v1637
  %2303 = vmatprep.subr.bf16.mxu0 0
  %2304 = vmatpush1.bf16.msra.mxu0 %v1638
  %2305 = vmatprep.subr.bf16.mxu0 0
  %2306 = vmatpush1.bf16.msra.mxu0 %v1639
  %2307 = vmatprep.subr.bf16.mxu0 0
  %2308 = vmatpush1.bf16.msra.mxu0 %v1640
  %2309 = vmatprep.subr.bf16.mxu0 0
  %2310 = vmatpush1.bf16.msra.mxu0 %v1641
  %2311 = vmatprep.subr.bf16.mxu0 0
  %2312 = vmatpush1.bf16.msra.mxu0 %v1642
  %2313 = vmatprep.subr.bf16.mxu0 0
  %2314 = vmatpush1.bf16.msra.mxu0 %v1643
  %2315 = vmatprep.subr.bf16.mxu0 0
  %2316 = vmatpush1.bf16.msra.mxu0 %v1644
  %2317 = vmatprep.subr.bf16.mxu0 0
  %2318 = vmatpush1.bf16.msra.mxu0 %v1645
  %2319 = vmatprep.subr.bf16.mxu0 0
  %2320 = vmatpush1.bf16.msra.mxu0 %v1646
  %2321 = vmatprep.subr.bf16.mxu0 0
  %2322 = vmatpush1.bf16.msra.mxu0 %v1647
  %2323 = vmatprep.subr.bf16.mxu0 0
  %2324 = vmatpush1.bf16.msra.mxu0 %v1648
  %2325 = vmatprep.subr.bf16.mxu0 0
  %2326 = vmatpush1.bf16.msra.mxu0 %v1649
  %2327 = vmatprep.mubr.bf16.mxu0 %v797
  %2328 = vmatmul.mubr.bf16.gmra.mrb[0].mxu0 %v796
  %v2329 = vpop.f32.mrb[0].mxu0
  %v2330 = vadd.f32 %v2233, %v2329
  %v2331 = vpop.f32.mrb[0].mxu0
  %v2332 = vpop.f32.mrb[0].mxu0
  %v2333 = vadd.f32 %v2236, %v2332
  %v2334 = vpop.f32.mrb[0].mxu0
  %2335 = vmatprep.mubr.bf16.mxu0 %v813
  %2336 = vmatmul.mubr.bf16.gmra.mrb[0].mxu0 %v812
  %v2337 = vpop.f32.mrb[0].mxu0
  %v2338 = vadd.f32 %v2241, %v2337
  %v2339 = vpop.f32.mrb[0].mxu0
  %v2340 = vpop.f32.mrb[0].mxu0
  %v2341 = vadd.f32 %v2244, %v2340
  %v2342 = vpop.f32.mrb[0].mxu0
  %2343 = vmatprep.mubr.bf16.mxu0 %v829
  %2344 = vmatmul.mubr.bf16.gmra.mrb[0].mxu0 %v828
  %v2345 = vpop.f32.mrb[0].mxu0
  %v2346 = vadd.f32 %v2249, %v2345
  %v2347 = vpop.f32.mrb[0].mxu0
  %v2348 = vpop.f32.mrb[0].mxu0
  %v2349 = vadd.f32 %v2252, %v2348
  %v2350 = vpop.f32.mrb[0].mxu0
  %2351 = vmatprep.mubr.bf16.mxu0 %v845
  %2352 = vmatmul.mubr.bf16.gmra.mrb[0].mxu0 %v844
  %v2353 = vpop.f32.mrb[0].mxu0
  %v2354 = vadd.f32 %v2257, %v2353
  %v2355 = vpop.f32.mrb[0].mxu0
  %v2356 = vpop.f32.mrb[0].mxu0
  %v2357 = vadd.f32 %v2260, %v2356
  %v2358 = vpop.f32.mrb[0].mxu0
  %2359 = vmatprep.mubr.bf16.mxu0 %v861
  %2360 = vmatmul.mubr.bf16.gmra.mrb[0].mxu0 %v860
  %v2361 = vpop.f32.mrb[0].mxu0
  %v2362 = vadd.f32 %v2265, %v2361
  %v2363 = vpop.f32.mrb[0].mxu0
  %v2364 = vpop.f32.mrb[0].mxu0
  %v2365 = vadd.f32 %v2268, %v2364
  %v2366 = vpop.f32.mrb[0].mxu0
  %2367 = vmatprep.mubr.bf16.mxu0 %v877
  %2368 = vmatmul.mubr.bf16.gmra.mrb[0].mxu0 %v876
  %v2369 = vpop.f32.mrb[0].mxu0
  %v2370 = vadd.f32 %v2273, %v2369
  %v2371 = vpop.f32.mrb[0].mxu0
  %v2372 = vpop.f32.mrb[0].mxu0
  %v2373 = vadd.f32 %v2276, %v2372
  %v2374 = vpop.f32.mrb[0].mxu0
  %2375 = vmatprep.mubr.bf16.mxu0 %v893
  %2376 = vmatmul.mubr.bf16.gmra.mrb[0].mxu0 %v892
  %v2377 = vpop.f32.mrb[0].mxu0
  %v2378 = vadd.f32 %v2281, %v2377
  %v2379 = vpop.f32.mrb[0].mxu0
  %v2380 = vpop.f32.mrb[0].mxu0
  %v2381 = vadd.f32 %v2284, %v2380
  %v2382 = vpop.f32.mrb[0].mxu0
  %2383 = vmatprep.mubr.bf16.mxu0 %v909
  %2384 = vmatmul.mubr.bf16.gmra.mrb[0].mxu0 %v908
  %v2385 = vpop.f32.mrb[0].mxu0
  %v2386 = vadd.f32 %v2289, %v2385
  %v2387 = vpop.f32.mrb[0].mxu0
  %v2388 = vpop.f32.mrb[0].mxu0
  %v2389 = vadd.f32 %v2292, %v2388
  %v2390 = vpop.f32.mrb[0].mxu0
  %2391 = vdwg.mxu0
  %2392 = vmatprep.subr.bf16.mxu0 0
  %2393 = vmatpush1.bf16.msra.mxu0 %v1650
  %2394 = vmatprep.subr.bf16.mxu0 0
  %2395 = vmatpush1.bf16.msra.mxu0 %v1651
  %2396 = vmatprep.subr.bf16.mxu0 0
  %2397 = vmatpush1.bf16.msra.mxu0 %v1652
  %2398 = vmatprep.subr.bf16.mxu0 0
  %2399 = vmatpush1.bf16.msra.mxu0 %v1653
  %2400 = vmatprep.subr.bf16.mxu0 0
  %2401 = vmatpush1.bf16.msra.mxu0 %v1654
  %2402 = vmatprep.subr.bf16.mxu0 0
  %2403 = vmatpush1.bf16.msra.mxu0 %v1655
  %2404 = vmatprep.subr.bf16.mxu0 0
  %2405 = vmatpush1.bf16.msra.mxu0 %v1656
  %2406 = vmatprep.subr.bf16.mxu0 0
  %2407 = vmatpush1.bf16.msra.mxu0 %v1657
  %2408 = vmatprep.subr.bf16.mxu0 0
  %2409 = vmatpush1.bf16.msra.mxu0 %v1658
  %2410 = vmatprep.subr.bf16.mxu0 0
  %2411 = vmatpush1.bf16.msra.mxu0 %v1659
  %2412 = vmatprep.subr.bf16.mxu0 0
  %2413 = vmatpush1.bf16.msra.mxu0 %v1660
  %2414 = vmatprep.subr.bf16.mxu0 0
  %2415 = vmatpush1.bf16.msra.mxu0 %v1661
  %2416 = vmatprep.subr.bf16.mxu0 0
  %2417 = vmatpush1.bf16.msra.mxu0 %v1662
  %2418 = vmatprep.subr.bf16.mxu0 0
  %2419 = vmatpush1.bf16.msra.mxu0 %v1663
  %2420 = vmatprep.subr.bf16.mxu0 0
  %2421 = vmatpush1.bf16.msra.mxu0 %v1664
  %2422 = vmatprep.subr.bf16.mxu0 0
  %2423 = vmatpush1.bf16.msra.mxu0 %v1665
  %2424 = vmatprep.mubr.bf16.mxu0 %v799
  %2425 = vmatmul.mubr.bf16.gmra.mrb[0].mxu0 %v798
  %v2426 = vpop.f32.mrb[0].mxu0
  %v2427 = vadd.f32 %v2330, %v2426
  %v2428 = vpop.f32.mrb[0].mxu0
  %v2429 = vpop.f32.mrb[0].mxu0
  %v2430 = vadd.f32 %v2333, %v2429
  %v2431 = vpop.f32.mrb[0].mxu0
  %2432 = vmatprep.mubr.bf16.mxu0 %v815
  %2433 = vmatmul.mubr.bf16.gmra.mrb[0].mxu0 %v814
  %v2434 = vpop.f32.mrb[0].mxu0
  %v2435 = vadd.f32 %v2338, %v2434
  %v2436 = vpop.f32.mrb[0].mxu0
  %v2437 = vpop.f32.mrb[0].mxu0
  %v2438 = vadd.f32 %v2341, %v2437
  %v2439 = vpop.f32.mrb[0].mxu0
  %2440 = vmatprep.mubr.bf16.mxu0 %v831
  %2441 = vmatmul.mubr.bf16.gmra.mrb[0].mxu0 %v830
  %v2442 = vpop.f32.mrb[0].mxu0
  %v2443 = vadd.f32 %v2346, %v2442
  %v2444 = vpop.f32.mrb[0].mxu0
  %v2445 = vpop.f32.mrb[0].mxu0
  %v2446 = vadd.f32 %v2349, %v2445
  %v2447 = vpop.f32.mrb[0].mxu0
  %2448 = vmatprep.mubr.bf16.mxu0 %v847
  %2449 = vmatmul.mubr.bf16.gmra.mrb[0].mxu0 %v846
  %v2450 = vpop.f32.mrb[0].mxu0
  %v2451 = vadd.f32 %v2354, %v2450
  %v2452 = vpop.f32.mrb[0].mxu0
  %v2453 = vpop.f32.mrb[0].mxu0
  %v2454 = vadd.f32 %v2357, %v2453
  %v2455 = vpop.f32.mrb[0].mxu0
  %2456 = vmatprep.mubr.bf16.mxu0 %v863
  %2457 = vmatmul.mubr.bf16.gmra.mrb[0].mxu0 %v862
  %v2458 = vpop.f32.mrb[0].mxu0
  %v2459 = vadd.f32 %v2362, %v2458
  %v2460 = vpop.f32.mrb[0].mxu0
  %v2461 = vpop.f32.mrb[0].mxu0
  %v2462 = vadd.f32 %v2365, %v2461
  %v2463 = vpop.f32.mrb[0].mxu0
  %2464 = vmatprep.mubr.bf16.mxu0 %v879
  %2465 = vmatmul.mubr.bf16.gmra.mrb[0].mxu0 %v878
  %v2466 = vpop.f32.mrb[0].mxu0
  %v2467 = vadd.f32 %v2370, %v2466
  %v2468 = vpop.f32.mrb[0].mxu0
  %v2469 = vpop.f32.mrb[0].mxu0
  %v2470 = vadd.f32 %v2373, %v2469
  %v2471 = vpop.f32.mrb[0].mxu0
  %2472 = vmatprep.mubr.bf16.mxu0 %v895
  %2473 = vmatmul.mubr.bf16.gmra.mrb[0].mxu0 %v894
  %v2474 = vpop.f32.mrb[0].mxu0
  %v2475 = vadd.f32 %v2378, %v2474
  %v2476 = vpop.f32.mrb[0].mxu0
  %v2477 = vpop.f32.mrb[0].mxu0
  %v2478 = vadd.f32 %v2381, %v2477
  %v2479 = vpop.f32.mrb[0].mxu0
  %2480 = vmatprep.mubr.bf16.mxu0 %v911
  %2481 = vmatmul.mubr.bf16.gmra.mrb[0].mxu0 %v910
  %v2482 = vpop.f32.mrb[0].mxu0
  %v2483 = vadd.f32 %v2386, %v2482
  %v2484 = vpop.f32.mrb[0].mxu0
  %v2485 = vpop.f32.mrb[0].mxu0
  %v2486 = vadd.f32 %v2389, %v2485
  %v2487 = vpop.f32.mrb[0].mxu0
  %2488 = vdwg.mxu0
  %2489 = vmatprep.subr.bf16.mxu0 0
  %2490 = vmatpush1.bf16.msra.mxu0 %v1666
  %2491 = vmatprep.subr.bf16.mxu0 0
  %2492 = vmatpush1.bf16.msra.mxu0 %v1667
  %2493 = vmatprep.subr.bf16.mxu0 0
  %2494 = vmatpush1.bf16.msra.mxu0 %v1668
  %2495 = vmatprep.subr.bf16.mxu0 0
  %2496 = vmatpush1.bf16.msra.mxu0 %v1669
  %2497 = vmatprep.subr.bf16.mxu0 0
  %2498 = vmatpush1.bf16.msra.mxu0 %v1670
  %2499 = vmatprep.subr.bf16.mxu0 0
  %2500 = vmatpush1.bf16.msra.mxu0 %v1671
  %2501 = vmatprep.subr.bf16.mxu0 0
  %2502 = vmatpush1.bf16.msra.mxu0 %v1672
  %2503 = vmatprep.subr.bf16.mxu0 0
  %2504 = vmatpush1.bf16.msra.mxu0 %v1673
  %2505 = vmatprep.subr.bf16.mxu0 0
  %2506 = vmatpush1.bf16.msra.mxu0 %v1674
  %2507 = vmatprep.subr.bf16.mxu0 0
  %2508 = vmatpush1.bf16.msra.mxu0 %v1675
  %2509 = vmatprep.subr.bf16.mxu0 0
  %2510 = vmatpush1.bf16.msra.mxu0 %v1676
  %2511 = vmatprep.subr.bf16.mxu0 0
  %2512 = vmatpush1.bf16.msra.mxu0 %v1677
  %2513 = vmatprep.subr.bf16.mxu0 0
  %2514 = vmatpush1.bf16.msra.mxu0 %v1678
  %2515 = vmatprep.subr.bf16.mxu0 0
  %2516 = vmatpush1.bf16.msra.mxu0 %v1679
  %2517 = vmatprep.subr.bf16.mxu0 0
  %2518 = vmatpush1.bf16.msra.mxu0 %v1680
  %2519 = vmatprep.subr.bf16.mxu0 0
  %2520 = vmatpush1.bf16.msra.mxu0 %v1681
  %2521 = vmatprep.mubr.bf16.mxu0 %v801
  %2522 = vmatmul.mubr.bf16.gmra.mrb[0].mxu0 %v800
  %v2523 = vpop.f32.mrb[0].mxu0
  %v2524 = vadd.f32 %v2427, %v2523
  %v2525 = vpop.f32.mrb[0].mxu0
  %v2526 = vpop.f32.mrb[0].mxu0
  %v2527 = vadd.f32 %v2430, %v2526
  %v2528 = vpop.f32.mrb[0].mxu0
  %2529 = vmatprep.mubr.bf16.mxu0 %v817
  %2530 = vmatmul.mubr.bf16.gmra.mrb[0].mxu0 %v816
  %v2531 = vpop.f32.mrb[0].mxu0
  %v2532 = vadd.f32 %v2435, %v2531
  %v2533 = vpop.f32.mrb[0].mxu0
  %v2534 = vpop.f32.mrb[0].mxu0
  %v2535 = vadd.f32 %v2438, %v2534
  %v2536 = vpop.f32.mrb[0].mxu0
  %2537 = vmatprep.mubr.bf16.mxu0 %v833
  %2538 = vmatmul.mubr.bf16.gmra.mrb[0].mxu0 %v832
  %v2539 = vpop.f32.mrb[0].mxu0
  %v2540 = vadd.f32 %v2443, %v2539
  %v2541 = vpop.f32.mrb[0].mxu0
  %v2542 = vpop.f32.mrb[0].mxu0
  %v2543 = vadd.f32 %v2446, %v2542
  %v2544 = vpop.f32.mrb[0].mxu0
  %2545 = vmatprep.mubr.bf16.mxu0 %v849
  %2546 = vmatmul.mubr.bf16.gmra.mrb[0].mxu0 %v848
  %v2547 = vpop.f32.mrb[0].mxu0
  %v2548 = vadd.f32 %v2451, %v2547
  %v2549 = vpop.f32.mrb[0].mxu0
  %v2550 = vpop.f32.mrb[0].mxu0
  %v2551 = vadd.f32 %v2454, %v2550
  %v2552 = vpop.f32.mrb[0].mxu0
  %2553 = vmatprep.mubr.bf16.mxu0 %v865
  %2554 = vmatmul.mubr.bf16.gmra.mrb[0].mxu0 %v864
  %v2555 = vpop.f32.mrb[0].mxu0
  %v2556 = vadd.f32 %v2459, %v2555
  %v2557 = vpop.f32.mrb[0].mxu0
  %v2558 = vpop.f32.mrb[0].mxu0
  %v2559 = vadd.f32 %v2462, %v2558
  %v2560 = vpop.f32.mrb[0].mxu0
  %2561 = vmatprep.mubr.bf16.mxu0 %v881
  %2562 = vmatmul.mubr.bf16.gmra.mrb[0].mxu0 %v880
  %v2563 = vpop.f32.mrb[0].mxu0
  %v2564 = vadd.f32 %v2467, %v2563
  %v2565 = vpop.f32.mrb[0].mxu0
  %v2566 = vpop.f32.mrb[0].mxu0
  %v2567 = vadd.f32 %v2470, %v2566
  %v2568 = vpop.f32.mrb[0].mxu0
  %2569 = vmatprep.mubr.bf16.mxu0 %v897
  %2570 = vmatmul.mubr.bf16.gmra.mrb[0].mxu0 %v896
  %v2571 = vpop.f32.mrb[0].mxu0
  %v2572 = vadd.f32 %v2475, %v2571
  %v2573 = vpop.f32.mrb[0].mxu0
  %v2574 = vpop.f32.mrb[0].mxu0
  %v2575 = vadd.f32 %v2478, %v2574
  %v2576 = vpop.f32.mrb[0].mxu0
  %2577 = vmatprep.mubr.bf16.mxu0 %v913
  %2578 = vmatmul.mubr.bf16.gmra.mrb[0].mxu0 %v912
  %v2579 = vpop.f32.mrb[0].mxu0
  %v2580 = vadd.f32 %v2483, %v2579
  %v2581 = vpop.f32.mrb[0].mxu0
  %v2582 = vpop.f32.mrb[0].mxu0
  %v2583 = vadd.f32 %v2486, %v2582
  %v2584 = vpop.f32.mrb[0].mxu0
  %2585 = vdwg.mxu0
  %v2586 = vadd.f32 %v2524, %v2527
  %v2587 = vadd.f32 %v2586, %v2532
  %v2588 = vadd.f32 %v2587, %v2535
  %v2589 = vadd.f32 %v2588, %v2540
  %v2590 = vadd.f32 %v2589, %v2543
  %v2591 = vadd.f32 %v2590, %v2548
  %v2592 = vadd.f32 %v2591, %v2551
  %v2593 = vadd.f32 %v2592, %v2556
  %v2594 = vadd.f32 %v2593, %v2559
  %v2595 = vadd.f32 %v2594, %v2564
  %v2596 = vadd.f32 %v2595, %v2567
  %v2597 = vadd.f32 %v2596, %v2572
  %v2598 = vadd.f32 %v2597, %v2575
  %v2599 = vadd.f32 %v2598, %v2580
  %v2600 = vadd.f32 %v2599, %v2583
  %v2601 = vrot.slane %v2600, 4
  %v2602 = vadd.f32 %v2600, %v2601
  %v2603 = vrot.slane %v2602, 2
  %v2604 = vadd.f32 %v2602, %v2603
  %v2605 = vrot.slane %v2604, 1
  %v2606 = vadd.f32 %v2604, %v2605
  %v2607 = vrcp.pop 128.0
  %v2608 = vmul.f32 %v2606, %v2607
  %v2609 = vsub.f32 %v2524, %v2608
  %v2610 = vsub.f32 %v2527, %v2608
  %v2611 = vsub.f32 %v2532, %v2608
  %v2612 = vsub.f32 %v2535, %v2608
  %v2613 = vsub.f32 %v2540, %v2608
  %v2614 = vsub.f32 %v2543, %v2608
  %v2615 = vsub.f32 %v2548, %v2608
  %v2616 = vsub.f32 %v2551, %v2608
  %v2617 = vsub.f32 %v2556, %v2608
  %v2618 = vsub.f32 %v2559, %v2608
  %v2619 = vsub.f32 %v2564, %v2608
  %v2620 = vsub.f32 %v2567, %v2608
  %v2621 = vsub.f32 %v2572, %v2608
  %v2622 = vsub.f32 %v2575, %v2608
  %v2623 = vsub.f32 %v2580, %v2608
  %v2624 = vsub.f32 %v2583, %v2608
  %v2625 = vmul.f32 %v2609, %v2609
  %v2626 = vmul.f32 %v2610, %v2610
  %v2627 = vmul.f32 %v2611, %v2611
  %v2628 = vmul.f32 %v2612, %v2612
  %v2629 = vmul.f32 %v2613, %v2613
  %v2630 = vmul.f32 %v2614, %v2614
  %v2631 = vmul.f32 %v2615, %v2615
  %v2632 = vmul.f32 %v2616, %v2616
  %v2633 = vmul.f32 %v2617, %v2617
  %v2634 = vmul.f32 %v2618, %v2618
  %v2635 = vmul.f32 %v2619, %v2619
  %v2636 = vmul.f32 %v2620, %v2620
  %v2637 = vmul.f32 %v2621, %v2621
  %v2638 = vmul.f32 %v2622, %v2622
  %v2639 = vmul.f32 %v2623, %v2623
  %v2640 = vmul.f32 %v2624, %v2624
  %v2641 = vadd.f32 %v2625, %v2626
  %v2642 = vadd.f32 %v2641, %v2627
  %v2643 = vadd.f32 %v2642, %v2628
  %v2644 = vadd.f32 %v2643, %v2629
  %v2645 = vadd.f32 %v2644, %v2630
  %v2646 = vadd.f32 %v2645, %v2631
  %v2647 = vadd.f32 %v2646, %v2632
  %v2648 = vadd.f32 %v2647, %v2633
  %v2649 = vadd.f32 %v2648, %v2634
  %v2650 = vadd.f32 %v2649, %v2635
  %v2651 = vadd.f32 %v2650, %v2636
  %v2652 = vadd.f32 %v2651, %v2637
  %v2653 = vadd.f32 %v2652, %v2638
  %v2654 = vadd.f32 %v2653, %v2639
  %v2655 = vadd.f32 %v2654, %v2640
  %v2656 = vrot.slane %v2655, 4
  %v2657 = vadd.f32 %v2655, %v2656
  %v2658 = vrot.slane %v2657, 2
  %v2659 = vadd.f32 %v2657, %v2658
  %v2660 = vrot.slane %v2659, 1
  %v2661 = vadd.f32 %v2659, %v2660
  %v2662 = vmul.f32 %v2661, %v2607
  %v2663 = vld [vmem:[%s2] sm:$0x1]
  %v2664 = vadd.f32 %v2662, 1e-05
  %v2665 = vrsqrt.pop %v2664
  %v2666 = vmul.f32 %v2663, %v2665
  %v2667 = vld [vmem:[%s3] sm:$0x1]
  %v2668 = vmul.f32 %v2608, %v2666
  %v2669 = vsub.f32 %v2667, %v2668
  %v2671 = vlaneseq
  %v2672 = vshrl.u32 %v2671, 7
  %v2673 = vsub.s32 0, %v2672
  %v2674 = vrot.slane %v2666, %v2673
  %v2676 = vmul.f32 %v2524, %v2674
  %v2677 = vmul.f32 %v2527, %v2674
  %v2678 = vmul.f32 %v2532, %v2674
  %v2679 = vmul.f32 %v2535, %v2674
  %v2680 = vmul.f32 %v2540, %v2674
  %v2681 = vmul.f32 %v2543, %v2674
  %v2682 = vmul.f32 %v2548, %v2674
  %v2683 = vmul.f32 %v2551, %v2674
  %v2684 = vmul.f32 %v2556, %v2674
  %v2685 = vmul.f32 %v2559, %v2674
  %v2686 = vmul.f32 %v2564, %v2674
  %v2687 = vmul.f32 %v2567, %v2674
  %v2688 = vmul.f32 %v2572, %v2674
  %v2689 = vmul.f32 %v2575, %v2674
  %v2690 = vmul.f32 %v2580, %v2674
  %v2691 = vmul.f32 %v2583, %v2674
  %v2693 = vlaneseq
  %v2694 = vshrl.u32 %v2693, 7
  %v2695 = vsub.s32 0, %v2694
  %v2696 = vrot.slane %v2669, %v2695
  %v2698 = vadd.f32 %v2676, %v2696
  %v2699 = vadd.f32 %v2677, %v2696
  %v2700 = vadd.f32 %v2678, %v2696
  %v2701 = vadd.f32 %v2679, %v2696
  %v2702 = vadd.f32 %v2680, %v2696
  %v2703 = vadd.f32 %v2681, %v2696
  %v2704 = vadd.f32 %v2682, %v2696
  %v2705 = vadd.f32 %v2683, %v2696
  %v2706 = vadd.f32 %v2684, %v2696
  %v2707 = vadd.f32 %v2685, %v2696
  %v2708 = vadd.f32 %v2686, %v2696
  %v2709 = vadd.f32 %v2687, %v2696
  %v2710 = vadd.f32 %v2688, %v2696
  %v2711 = vadd.f32 %v2689, %v2696
  %v2712 = vadd.f32 %v2690, %v2696
  %v2713 = vadd.f32 %v2691, %v2696
  %vm2714 = vcmp.gt.f32.partialorder %v2698, 0.0
  %vm2715 = vcmp.gt.f32.partialorder %v2699, 0.0
  %vm2716 = vcmp.gt.f32.partialorder %v2700, 0.0
  %vm2717 = vcmp.gt.f32.partialorder %v2701, 0.0
  %vm2718 = vcmp.gt.f32.partialorder %v2702, 0.0
  %vm2719 = vcmp.gt.f32.partialorder %v2703, 0.0
  %vm2720 = vcmp.gt.f32.partialorder %v2704, 0.0
  %vm2721 = vcmp.gt.f32.partialorder %v2705, 0.0
  %vm2722 = vcmp.gt.f32.partialorder %v2706, 0.0
  %vm2723 = vcmp.gt.f32.partialorder %v2707, 0.0
  %vm2724 = vcmp.gt.f32.partialorder %v2708, 0.0
  %vm2725 = vcmp.gt.f32.partialorder %v2709, 0.0
  %vm2726 = vcmp.gt.f32.partialorder %v2710, 0.0
  %vm2727 = vcmp.gt.f32.partialorder %v2711, 0.0
  %vm2728 = vcmp.gt.f32.partialorder %v2712, 0.0
  %vm2729 = vcmp.gt.f32.partialorder %v2713, 0.0
  %v2730 = vmul.f32 %v2698, 0.2
  %v2731 = vmul.f32 %v2699, 0.2
  %v2732 = vmul.f32 %v2700, 0.2
  %v2733 = vmul.f32 %v2701, 0.2
  %v2734 = vmul.f32 %v2702, 0.2
  %v2735 = vmul.f32 %v2703, 0.2
  %v2736 = vmul.f32 %v2704, 0.2
  %v2737 = vmul.f32 %v2705, 0.2
  %v2738 = vmul.f32 %v2706, 0.2
  %v2739 = vmul.f32 %v2707, 0.2
  %v2740 = vmul.f32 %v2708, 0.2
  %v2741 = vmul.f32 %v2709, 0.2
  %v2742 = vmul.f32 %v2710, 0.2
  %v2743 = vmul.f32 %v2711, 0.2
  %v2744 = vmul.f32 %v2712, 0.2
  %v2745 = vmul.f32 %v2713, 0.2
  %v2746 = vsel %vm2714, %v2698, %v2730
  %v2747 = vsel %vm2715, %v2699, %v2731
  %v2748 = vsel %vm2716, %v2700, %v2732
  %v2749 = vsel %vm2717, %v2701, %v2733
  %v2750 = vsel %vm2718, %v2702, %v2734
  %v2751 = vsel %vm2719, %v2703, %v2735
  %v2752 = vsel %vm2720, %v2704, %v2736
  %v2753 = vsel %vm2721, %v2705, %v2737
  %v2754 = vsel %vm2722, %v2706, %v2738
  %v2755 = vsel %vm2723, %v2707, %v2739
  %v2756 = vsel %vm2724, %v2708, %v2740
  %v2757 = vsel %vm2725, %v2709, %v2741
  %v2758 = vsel %vm2726, %v2710, %v2742
  %v2759 = vsel %vm2727, %v2711, %v2743
  %v2760 = vsel %vm2728, %v2712, %v2744
  %v2761 = vsel %vm2729, %v2713, %v2745
  %v2762 = vpack.c.bf16 %v2747, %v2746
  %v2763 = vpack.c.bf16 %v2749, %v2748
  %v2764 = vpack.c.bf16 %v2751, %v2750
  %v2765 = vpack.c.bf16 %v2753, %v2752
  %v2766 = vpack.c.bf16 %v2755, %v2754
  %v2767 = vpack.c.bf16 %v2757, %v2756
  %v2768 = vpack.c.bf16 %v2759, %v2758
  %v2769 = vpack.c.bf16 %v2761, %v2760
  %v2778 = vunpack.c.l.b16 %v2762
  %v2779 = vunpack.c.h.b16 %v2762
  %v2780 = vunpack.c.l.b16 %v2763
  %v2781 = vunpack.c.h.b16 %v2763
  %v2782 = vunpack.c.l.b16 %v2764
  %v2783 = vunpack.c.h.b16 %v2764
  %v2784 = vunpack.c.l.b16 %v2765
  %v2785 = vunpack.c.h.b16 %v2765
  %v2786 = vunpack.c.l.b16 %v2766
  %v2787 = vunpack.c.h.b16 %v2766
  %v2788 = vunpack.c.l.b16 %v2767
  %v2789 = vunpack.c.h.b16 %v2767
  %v2790 = vunpack.c.l.b16 %v2768
  %v2791 = vunpack.c.h.b16 %v2768
  %v2792 = vunpack.c.l.b16 %v2769
  %v2793 = vunpack.c.h.b16 %v2769
  %v2794 = vpack.c.b16 %v2778, %v2778
  %v2795 = vpack.c.b16 %v2779, %v2779
  %v2796 = vpack.c.b16 %v2780, %v2780
  %v2797 = vpack.c.b16 %v2781, %v2781
  %v2798 = vpack.c.b16 %v2782, %v2782
  %v2799 = vpack.c.b16 %v2783, %v2783
  %v2800 = vpack.c.b16 %v2784, %v2784
  %v2801 = vpack.c.b16 %v2785, %v2785
  %v2802 = vpack.c.b16 %v2786, %v2786
  %v2803 = vpack.c.b16 %v2787, %v2787
  %v2804 = vpack.c.b16 %v2788, %v2788
  %v2805 = vpack.c.b16 %v2789, %v2789
  %v2806 = vpack.c.b16 %v2790, %v2790
  %v2807 = vpack.c.b16 %v2791, %v2791
  %v2808 = vpack.c.b16 %v2792, %v2792
  %v2809 = vpack.c.b16 %v2793, %v2793
  %2826 = vst [vmem:[%s4] sm:$0xf] %v2794
  %2827 = vst [vmem:[%s4 + $0x4] sm:$0xf] %v2795
  %2828 = vst [vmem:[%s4 + $0x8] sm:$0xf] %v2796
  %2829 = vst [vmem:[%s4 + $0xc] sm:$0xf] %v2797
  %2830 = vst [vmem:[%s4 + $0x10] sm:$0xf] %v2798
  %2831 = vst [vmem:[%s4 + $0x14] sm:$0xf] %v2799
  %2832 = vst [vmem:[%s4 + $0x18] sm:$0xf] %v2800
  %2833 = vst [vmem:[%s4 + $0x1c] sm:$0xf] %v2801
  %2834 = vst [vmem:[%s4 + $0x20] sm:$0xf] %v2802
  %2835 = vst [vmem:[%s4 + $0x24] sm:$0xf] %v2803
  %2836 = vst [vmem:[%s4 + $0x28] sm:$0xf] %v2804
  %2837 = vst [vmem:[%s4 + $0x2c] sm:$0xf] %v2805
  %2838 = vst [vmem:[%s4 + $0x30] sm:$0xf] %v2806
  %2839 = vst [vmem:[%s4 + $0x34] sm:$0xf] %v2807
  %2840 = vst [vmem:[%s4 + $0x38] sm:$0xf] %v2808
  %2841 = vst [vmem:[%s4 + $0x3c] sm:$0xf] %v2809
  // Predicated region
  $region18: #{discriminator_forward.5} parent=0 // pred_check
    _
  $region19: #{discriminator_forward.5} parent=0 // pred_check_branch
    %2843 = sbr.rel (0) target = $region21
  $region20: #{discriminator_forward.5} parent=0 // pred_region
    _
  $region21: #{discriminator_forward.5} parent=0 // pred_fallthru
    _
  // Predicated region
  $region22: #{discriminator_forward.5} parent=0 // pred_check
    _
  $region23: #{discriminator_forward.5} parent=0 // pred_check_branch
    %2845 = sbr.rel (0) target = $region25
  $region24: #{discriminator_forward.5} parent=0 // pred_region
    _
  $region25: #{discriminator_forward.5} parent=0 // pred_fallthru
    _

// kernel: discriminator_forward.6
$region0: #{discriminator_forward.6}
  #allocation0 [shape = 'u32[]', space=smem, size = 0x4, offset = 0x4, fixed_abs, tag = 'smem constant byte address 0x4 - core index']
  #allocation1 [shape = 'u32[144,128]{1,0:T(1,128)}', space=vmem, size = 0x12000, scoped, tag = 'internal scratch']
  %s0 = inlined_call_operand.vmem [shape: bf16[32,2048], index: 0, kind: input, shape index: {}]
  %s1 = inlined_call_operand.vmem [shape: bf16[2048,128], index: 1, kind: input, shape index: {}]
  %s2 = inlined_call_operand.vmem [shape: f32[1,128], index: 2, kind: input, shape index: {}]
  %s3 = inlined_call_operand.vmem [shape: f32[1,128], index: 3, kind: input, shape index: {}]
  %s4 = inlined_call_operand.vmem [shape: bf16[32,128], index: 4, kind: output, shape index: {}]
  %s5 = sld [smem:[#allocation0]]
  $region26: #{discriminator_forward.6} parent=0
    _
  %s7 = ssub.s32 1, %s5
  %s8 = scalar_select 0, %s7, %s5
  // Predicated region
  $region2: #{discriminator_forward.6} parent=0 // pred_check
    _
  $region3: #{discriminator_forward.6} parent=0 // pred_check_branch
    %10 = sbr.rel (0) target = $region5
  $region4: #{discriminator_forward.6} parent=0 // pred_region
    _
  $region5: #{discriminator_forward.6} parent=0 // pred_fallthru
    _
  // Predicated region
  $region6: #{discriminator_forward.6} parent=0 // pred_check
    _
  $region7: #{discriminator_forward.6} parent=0 // pred_check_branch
    %12 = sbr.rel (0) target = $region9
  $region8: #{discriminator_forward.6} parent=0 // pred_region
    _
  $region9: #{discriminator_forward.6} parent=0 // pred_fallthru
    _
  // Predicated region
  $region10: #{discriminator_forward.6} parent=0 // pred_check
    _
  $region11: #{discriminator_forward.6} parent=0 // pred_check_branch
    %14 = sbr.rel (0) target = $region13
  $region12: #{discriminator_forward.6} parent=0 // pred_region
    _
  $region13: #{discriminator_forward.6} parent=0 // pred_fallthru
    _
  // Predicated region
  $region14: #{discriminator_forward.6} parent=0 // pred_check
    _
  $region15: #{discriminator_forward.6} parent=0 // pred_check_branch
    %16 = sbr.rel (0) target = $region17
  $region16: #{discriminator_forward.6} parent=0 // pred_region
    _
  $region17: #{discriminator_forward.6} parent=0 // pred_fallthru
    _
  %v18 = vld [vmem:[%s0] sm:$0xff]
  %v19 = vld [vmem:[%s0 + $0x8] sm:$0xff]
  %v20 = vld [vmem:[%s0 + $0x10] sm:$0xff]
  %v21 = vld [vmem:[%s0 + $0x18] sm:$0xff]
  %v22 = vld [vmem:[%s0 + $0x20] sm:$0xff]
  %v23 = vld [vmem:[%s0 + $0x28] sm:$0xff]
  %v24 = vld [vmem:[%s0 + $0x30] sm:$0xff]
  %v25 = vld [vmem:[%s0 + $0x38] sm:$0xff]
  %v26 = vld [vmem:[%s0 + $0x40] sm:$0xff]
  %v27 = vld [vmem:[%s0 + $0x48] sm:$0xff]
  %v28 = vld [vmem:[%s0 + $0x50] sm:$0xff]
  %v29 = vld [vmem:[%s0 + $0x58] sm:$0xff]
  %v30 = vld [vmem:[%s0 + $0x60] sm:$0xff]
  %v31 = vld [vmem:[%s0 + $0x68] sm:$0xff]
  %v32 = vld [vmem:[%s0 + $0x70] sm:$0xff]
  %v33 = vld [vmem:[%s0 + $0x78] sm:$0xff]
  %v34 = vld [vmem:[%s0 + $0x80] sm:$0xff]
  %v35 = vld [vmem:[%s0 + $0x88] sm:$0xff]
  %v36 = vld [vmem:[%s0 + $0x90] sm:$0xff]
  %v37 = vld [vmem:[%s0 + $0x98] sm:$0xff]
  %v38 = vld [vmem:[%s0 + $0xa0] sm:$0xff]
  %v39 = vld [vmem:[%s0 + $0xa8] sm:$0xff]
  %v40 = vld [vmem:[%s0 + $0xb0] sm:$0xff]
  %v41 = vld [vmem:[%s0 + $0xb8] sm:$0xff]
  %v42 = vld [vmem:[%s0 + $0xc0] sm:$0xff]
  %v43 = vld [vmem:[%s0 + $0xc8] sm:$0xff]
  %v44 = vld [vmem:[%s0 + $0xd0] sm:$0xff]
  %v45 = vld [vmem:[%s0 + $0xd8] sm:$0xff]
  %v46 = vld [vmem:[%s0 + $0xe0] sm:$0xff]
  %v47 = vld [vmem:[%s0 + $0xe8] sm:$0xff]
  %v48 = vld [vmem:[%s0 + $0xf0] sm:$0xff]
  %v49 = vld [vmem:[%s0 + $0xf8] sm:$0xff]
  %v50 = vld [vmem:[%s1] sm:$0xf]
  %v51 = vld [vmem:[%s1 + $0x4] sm:$0xf]
  %v52 = vld [vmem:[%s1 + $0x8] sm:$0xf]
  %v53 = vld [vmem:[%s1 + $0xc] sm:$0xf]
  %v54 = vld [vmem:[%s1 + $0x10] sm:$0xf]
  %v55 = vld [vmem:[%s1 + $0x14] sm:$0xf]
  %v56 = vld [vmem:[%s1 + $0x18] sm:$0xf]
  %v57 = vld [vmem:[%s1 + $0x1c] sm:$0xf]
  %v58 = vld [vmem:[%s1 + $0x20] sm:$0xf]
  %v59 = vld [vmem:[%s1 + $0x24] sm:$0xf]
  %v60 = vld [vmem:[%s1 + $0x28] sm:$0xf]
  %v61 = vld [vmem:[%s1 + $0x2c] sm:$0xf]
  %v62 = vld [vmem:[%s1 + $0x30] sm:$0xf]
  %v63 = vld [vmem:[%s1 + $0x34] sm:$0xf]
  %v64 = vld [vmem:[%s1 + $0x38] sm:$0xf]
  %v65 = vld [vmem:[%s1 + $0x3c] sm:$0xf]
  %v66 = vld [vmem:[%s1 + $0x40] sm:$0xf]
  %v67 = vld [vmem:[%s1 + $0x44] sm:$0xf]
  %v68 = vld [vmem:[%s1 + $0x48] sm:$0xf]
  %v69 = vld [vmem:[%s1 + $0x4c] sm:$0xf]
  %v70 = vld [vmem:[%s1 + $0x50] sm:$0xf]
  %v71 = vld [vmem:[%s1 + $0x54] sm:$0xf]
  %v72 = vld [vmem:[%s1 + $0x58] sm:$0xf]
  %v73 = vld [vmem:[%s1 + $0x5c] sm:$0xf]
  %v74 = vld [vmem:[%s1 + $0x60] sm:$0xf]
  %v75 = vld [vmem:[%s1 + $0x64] sm:$0xf]
  %v76 = vld [vmem:[%s1 + $0x68] sm:$0xf]
  %v77 = vld [vmem:[%s1 + $0x6c] sm:$0xf]
  %v78 = vld [vmem:[%s1 + $0x70] sm:$0xf]
  %v79 = vld [vmem:[%s1 + $0x74] sm:$0xf]
  %v80 = vld [vmem:[%s1 + $0x78] sm:$0xf]
  %v81 = vld [vmem:[%s1 + $0x7c] sm:$0xf]
  %v82 = vld [vmem:[%s1 + $0x80] sm:$0xf]
  %v83 = vld [vmem:[%s1 + $0x84] sm:$0xf]
  %v84 = vld [vmem:[%s1 + $0x88] sm:$0xf]
  %v85 = vld [vmem:[%s1 + $0x8c] sm:$0xf]
  %v86 = vld [vmem:[%s1 + $0x90] sm:$0xf]
  %v87 = vld [vmem:[%s1 + $0x94] sm:$0xf]
  %v88 = vld [vmem:[%s1 + $0x98] sm:$0xf]
  %v89 = vld [vmem:[%s1 + $0x9c] sm:$0xf]
  %v90 = vld [vmem:[%s1 + $0xa0] sm:$0xf]
  %v91 = vld [vmem:[%s1 + $0xa4] sm:$0xf]
  %v92 = vld [vmem:[%s1 + $0xa8] sm:$0xf]
  %v93 = vld [vmem:[%s1 + $0xac] sm:$0xf]
  %v94 = vld [vmem:[%s1 + $0xb0] sm:$0xf]
  %v95 = vld [vmem:[%s1 + $0xb4] sm:$0xf]
  %v96 = vld [vmem:[%s1 + $0xb8] sm:$0xf]
  %v97 = vld [vmem:[%s1 + $0xbc] sm:$0xf]
  %v98 = vld [vmem:[%s1 + $0xc0] sm:$0xf]
  %v99 = vld [vmem:[%s1 + $0xc4] sm:$0xf]
  %v100 = vld [vmem:[%s1 + $0xc8] sm:$0xf]
  %v101 = vld [vmem:[%s1 + $0xcc] sm:$0xf]
  %v102 = vld [vmem:[%s1 + $0xd0] sm:$0xf]
  %v103 = vld [vmem:[%s1 + $0xd4] sm:$0xf]
  %v104 = vld [vmem:[%s1 + $0xd8] sm:$0xf]
  %v105 = vld [vmem:[%s1 + $0xdc] sm:$0xf]
  %v106 = vld [vmem:[%s1 + $0xe0] sm:$0xf]
  %v107 = vld [vmem:[%s1 + $0xe4] sm:$0xf]
  %v108 = vld [vmem:[%s1 + $0xe8] sm:$0xf]
  %v109 = vld [vmem:[%s1 + $0xec] sm:$0xf]
  %v110 = vld [vmem:[%s1 + $0xf0] sm:$0xf]
  %v111 = vld [vmem:[%s1 + $0xf4] sm:$0xf]
  %v112 = vld [vmem:[%s1 + $0xf8] sm:$0xf]
  %v113 = vld [vmem:[%s1 + $0xfc] sm:$0xf]
  %v114 = vld [vmem:[%s1 + $0x100] sm:$0xf]
  %v115 = vld [vmem:[%s1 + $0x104] sm:$0xf]
  %v116 = vld [vmem:[%s1 + $0x108] sm:$0xf]
  %v117 = vld [vmem:[%s1 + $0x10c] sm:$0xf]
  %v118 = vld [vmem:[%s1 + $0x110] sm:$0xf]
  %v119 = vld [vmem:[%s1 + $0x114] sm:$0xf]
  %v120 = vld [vmem:[%s1 + $0x118] sm:$0xf]
  %v121 = vld [vmem:[%s1 + $0x11c] sm:$0xf]
  %v122 = vld [vmem:[%s1 + $0x120] sm:$0xf]
  %v123 = vld [vmem:[%s1 + $0x124] sm:$0xf]
  %v124 = vld [vmem:[%s1 + $0x128] sm:$0xf]
  %v125 = vld [vmem:[%s1 + $0x12c] sm:$0xf]
  %v126 = vld [vmem:[%s1 + $0x130] sm:$0xf]
  %v127 = vld [vmem:[%s1 + $0x134] sm:$0xf]
  %v128 = vld [vmem:[%s1 + $0x138] sm:$0xf]
  %v129 = vld [vmem:[%s1 + $0x13c] sm:$0xf]
  %v130 = vld [vmem:[%s1 + $0x140] sm:$0xf]
  %v131 = vld [vmem:[%s1 + $0x144] sm:$0xf]
  %v132 = vld [vmem:[%s1 + $0x148] sm:$0xf]
  %v133 = vld [vmem:[%s1 + $0x14c] sm:$0xf]
  %v134 = vld [vmem:[%s1 + $0x150] sm:$0xf]
  %v135 = vld [vmem:[%s1 + $0x154] sm:$0xf]
  %v136 = vld [vmem:[%s1 + $0x158] sm:$0xf]
  %v137 = vld [vmem:[%s1 + $0x15c] sm:$0xf]
  %v138 = vld [vmem:[%s1 + $0x160] sm:$0xf]
  %v139 = vld [vmem:[%s1 + $0x164] sm:$0xf]
  %v140 = vld [vmem:[%s1 + $0x168] sm:$0xf]
  %v141 = vld [vmem:[%s1 + $0x16c] sm:$0xf]
  %v142 = vld [vmem:[%s1 + $0x170] sm:$0xf]
  %v143 = vld [vmem:[%s1 + $0x174] sm:$0xf]
  %v144 = vld [vmem:[%s1 + $0x178] sm:$0xf]
  %v145 = vld [vmem:[%s1 + $0x17c] sm:$0xf]
  %v146 = vld [vmem:[%s1 + $0x180] sm:$0xf]
  %v147 = vld [vmem:[%s1 + $0x184] sm:$0xf]
  %v148 = vld [vmem:[%s1 + $0x188] sm:$0xf]
  %v149 = vld [vmem:[%s1 + $0x18c] sm:$0xf]
  %v150 = vld [vmem:[%s1 + $0x190] sm:$0xf]
  %v151 = vld [vmem:[%s1 + $0x194] sm:$0xf]
  %v152 = vld [vmem:[%s1 + $0x198] sm:$0xf]
  %v153 = vld [vmem:[%s1 + $0x19c] sm:$0xf]
  %v154 = vld [vmem:[%s1 + $0x1a0] sm:$0xf]
  %v155 = vld [vmem:[%s1 + $0x1a4] sm:$0xf]
  %v156 = vld [vmem:[%s1 + $0x1a8] sm:$0xf]
  %v157 = vld [vmem:[%s1 + $0x1ac] sm:$0xf]
  %v158 = vld [vmem:[%s1 + $0x1b0] sm:$0xf]
  %v159 = vld [vmem:[%s1 + $0x1b4] sm:$0xf]
  %v160 = vld [vmem:[%s1 + $0x1b8] sm:$0xf]
  %v161 = vld [vmem:[%s1 + $0x1bc] sm:$0xf]
  %v162 = vld [vmem:[%s1 + $0x1c0] sm:$0xf]
  %v163 = vld [vmem:[%s1 + $0x1c4] sm:$0xf]
  %v164 = vld [vmem:[%s1 + $0x1c8] sm:$0xf]
  %v165 = vld [vmem:[%s1 + $0x1cc] sm:$0xf]
  %v166 = vld [vmem:[%s1 + $0x1d0] sm:$0xf]
  %v167 = vld [vmem:[%s1 + $0x1d4] sm:$0xf]
  %v168 = vld [vmem:[%s1 + $0x1d8] sm:$0xf]
  %v169 = vld [vmem:[%s1 + $0x1dc] sm:$0xf]
  %v170 = vld [vmem:[%s1 + $0x1e0] sm:$0xf]
  %v171 = vld [vmem:[%s1 + $0x1e4] sm:$0xf]
  %v172 = vld [vmem:[%s1 + $0x1e8] sm:$0xf]
  %v173 = vld [vmem:[%s1 + $0x1ec] sm:$0xf]
  %v174 = vld [vmem:[%s1 + $0x1f0] sm:$0xf]
  %v175 = vld [vmem:[%s1 + $0x1f4] sm:$0xf]
  %v176 = vld [vmem:[%s1 + $0x1f8] sm:$0xf]
  %v177 = vld [vmem:[%s1 + $0x1fc] sm:$0xf]
  %v178 = vld [vmem:[%s1 + $0x200] sm:$0xf]
  %v179 = vld [vmem:[%s1 + $0x204] sm:$0xf]
  %v180 = vld [vmem:[%s1 + $0x208] sm:$0xf]
  %v181 = vld [vmem:[%s1 + $0x20c] sm:$0xf]
  %v182 = vld [vmem:[%s1 + $0x210] sm:$0xf]
  %v183 = vld [vmem:[%s1 + $0x214] sm:$0xf]
  %v184 = vld [vmem:[%s1 + $0x218] sm:$0xf]
  %v185 = vld [vmem:[%s1 + $0x21c] sm:$0xf]
  %v186 = vld [vmem:[%s1 + $0x220] sm:$0xf]
  %v187 = vld [vmem:[%s1 + $0x224] sm:$0xf]
  %v188 = vld [vmem:[%s1 + $0x228] sm:$0xf]
  %v189 = vld [vmem:[%s1 + $0x22c] sm:$0xf]
  %v190 = vld [vmem:[%s1 + $0x230] sm:$0xf]
  %v191 = vld [vmem:[%s1 + $0x234] sm:$0xf]
  %v192 = vld [vmem:[%s1 + $0x238] sm:$0xf]
  %v193 = vld [vmem:[%s1 + $0x23c] sm:$0xf]
  %v194 = vld [vmem:[%s1 + $0x240] sm:$0xf]
  %v195 = vld [vmem:[%s1 + $0x244] sm:$0xf]
  %v196 = vld [vmem:[%s1 + $0x248] sm:$0xf]
  %v197 = vld [vmem:[%s1 + $0x24c] sm:$0xf]
  %v198 = vld [vmem:[%s1 + $0x250] sm:$0xf]
  %v199 = vld [vmem:[%s1 + $0x254] sm:$0xf]
  %v200 = vld [vmem:[%s1 + $0x258] sm:$0xf]
  %v201 = vld [vmem:[%s1 + $0x25c] sm:$0xf]
  %v202 = vld [vmem:[%s1 + $0x260] sm:$0xf]
  %v203 = vld [vmem:[%s1 + $0x264] sm:$0xf]
  %v204 = vld [vmem:[%s1 + $0x268] sm:$0xf]
  %v205 = vld [vmem:[%s1 + $0x26c] sm:$0xf]
  %v206 = vld [vmem:[%s1 + $0x270] sm:$0xf]
  %v207 = vld [vmem:[%s1 + $0x274] sm:$0xf]
  %v208 = vld [vmem:[%s1 + $0x278] sm:$0xf]
  %v209 = vld [vmem:[%s1 + $0x27c] sm:$0xf]
  %v210 = vld [vmem:[%s1 + $0x280] sm:$0xf]
  %v211 = vld [vmem:[%s1 + $0x284] sm:$0xf]
  %v212 = vld [vmem:[%s1 + $0x288] sm:$0xf]
  %v213 = vld [vmem:[%s1 + $0x28c] sm:$0xf]
  %v214 = vld [vmem:[%s1 + $0x290] sm:$0xf]
  %v215 = vld [vmem:[%s1 + $0x294] sm:$0xf]
  %v216 = vld [vmem:[%s1 + $0x298] sm:$0xf]
  %v217 = vld [vmem:[%s1 + $0x29c] sm:$0xf]
  %v218 = vld [vmem:[%s1 + $0x2a0] sm:$0xf]
  %v219 = vld [vmem:[%s1 + $0x2a4] sm:$0xf]
  %v220 = vld [vmem:[%s1 + $0x2a8] sm:$0xf]
  %v221 = vld [vmem:[%s1 + $0x2ac] sm:$0xf]
  %v222 = vld [vmem:[%s1 + $0x2b0] sm:$0xf]
  %v223 = vld [vmem:[%s1 + $0x2b4] sm:$0xf]
  %v224 = vld [vmem:[%s1 + $0x2b8] sm:$0xf]
  %v225 = vld [vmem:[%s1 + $0x2bc] sm:$0xf]
  %v226 = vld [vmem:[%s1 + $0x2c0] sm:$0xf]
  %v227 = vld [vmem:[%s1 + $0x2c4] sm:$0xf]
  %v228 = vld [vmem:[%s1 + $0x2c8] sm:$0xf]
  %v229 = vld [vmem:[%s1 + $0x2cc] sm:$0xf]
  %v230 = vld [vmem:[%s1 + $0x2d0] sm:$0xf]
  %v231 = vld [vmem:[%s1 + $0x2d4] sm:$0xf]
  %v232 = vld [vmem:[%s1 + $0x2d8] sm:$0xf]
  %v233 = vld [vmem:[%s1 + $0x2dc] sm:$0xf]
  %v234 = vld [vmem:[%s1 + $0x2e0] sm:$0xf]
  %v235 = vld [vmem:[%s1 + $0x2e4] sm:$0xf]
  %v236 = vld [vmem:[%s1 + $0x2e8] sm:$0xf]
  %v237 = vld [vmem:[%s1 + $0x2ec] sm:$0xf]
  %v238 = vld [vmem:[%s1 + $0x2f0] sm:$0xf]
  %v239 = vld [vmem:[%s1 + $0x2f4] sm:$0xf]
  %v240 = vld [vmem:[%s1 + $0x2f8] sm:$0xf]
  %v241 = vld [vmem:[%s1 + $0x2fc] sm:$0xf]
  %v242 = vld [vmem:[%s1 + $0x300] sm:$0xf]
  %v243 = vld [vmem:[%s1 + $0x304] sm:$0xf]
  %v244 = vld [vmem:[%s1 + $0x308] sm:$0xf]
  %v245 = vld [vmem:[%s1 + $0x30c] sm:$0xf]
  %v246 = vld [vmem:[%s1 + $0x310] sm:$0xf]
  %v247 = vld [vmem:[%s1 + $0x314] sm:$0xf]
  %v248 = vld [vmem:[%s1 + $0x318] sm:$0xf]
  %v249 = vld [vmem:[%s1 + $0x31c] sm:$0xf]
  %v250 = vld [vmem:[%s1 + $0x320] sm:$0xf]
  %v251 = vld [vmem:[%s1 + $0x324] sm:$0xf]
  %v252 = vld [vmem:[%s1 + $0x328] sm:$0xf]
  %v253 = vld [vmem:[%s1 + $0x32c] sm:$0xf]
  %v254 = vld [vmem:[%s1 + $0x330] sm:$0xf]
  %v255 = vld [vmem:[%s1 + $0x334] sm:$0xf]
  %v256 = vld [vmem:[%s1 + $0x338] sm:$0xf]
  %v257 = vld [vmem:[%s1 + $0x33c] sm:$0xf]
  %v258 = vld [vmem:[%s1 + $0x340] sm:$0xf]
  %v259 = vld [vmem:[%s1 + $0x344] sm:$0xf]
  %v260 = vld [vmem:[%s1 + $0x348] sm:$0xf]
  %v261 = vld [vmem:[%s1 + $0x34c] sm:$0xf]
  %v262 = vld [vmem:[%s1 + $0x350] sm:$0xf]
  %v263 = vld [vmem:[%s1 + $0x354] sm:$0xf]
  %v264 = vld [vmem:[%s1 + $0x358] sm:$0xf]
  %v265 = vld [vmem:[%s1 + $0x35c] sm:$0xf]
  %v266 = vld [vmem:[%s1 + $0x360] sm:$0xf]
  %v267 = vld [vmem:[%s1 + $0x364] sm:$0xf]
  %v268 = vld [vmem:[%s1 + $0x368] sm:$0xf]
  %v269 = vld [vmem:[%s1 + $0x36c] sm:$0xf]
  %v270 = vld [vmem:[%s1 + $0x370] sm:$0xf]
  %v271 = vld [vmem:[%s1 + $0x374] sm:$0xf]
  %v272 = vld [vmem:[%s1 + $0x378] sm:$0xf]
  %v273 = vld [vmem:[%s1 + $0x37c] sm:$0xf]
  %v274 = vld [vmem:[%s1 + $0x380] sm:$0xf]
  %v275 = vld [vmem:[%s1 + $0x384] sm:$0xf]
  %v276 = vld [vmem:[%s1 + $0x388] sm:$0xf]
  %v277 = vld [vmem:[%s1 + $0x38c] sm:$0xf]
  %v278 = vld [vmem:[%s1 + $0x390] sm:$0xf]
  %v279 = vld [vmem:[%s1 + $0x394] sm:$0xf]
  %v280 = vld [vmem:[%s1 + $0x398] sm:$0xf]
  %v281 = vld [vmem:[%s1 + $0x39c] sm:$0xf]
  %v282 = vld [vmem:[%s1 + $0x3a0] sm:$0xf]
  %v283 = vld [vmem:[%s1 + $0x3a4] sm:$0xf]
  %v284 = vld [vmem:[%s1 + $0x3a8] sm:$0xf]
  %v285 = vld [vmem:[%s1 + $0x3ac] sm:$0xf]
  %v286 = vld [vmem:[%s1 + $0x3b0] sm:$0xf]
  %v287 = vld [vmem:[%s1 + $0x3b4] sm:$0xf]
  %v288 = vld [vmem:[%s1 + $0x3b8] sm:$0xf]
  %v289 = vld [vmem:[%s1 + $0x3bc] sm:$0xf]
  %v290 = vld [vmem:[%s1 + $0x3c0] sm:$0xf]
  %v291 = vld [vmem:[%s1 + $0x3c4] sm:$0xf]
  %v292 = vld [vmem:[%s1 + $0x3c8] sm:$0xf]
  %v293 = vld [vmem:[%s1 + $0x3cc] sm:$0xf]
  %v294 = vld [vmem:[%s1 + $0x3d0] sm:$0xf]
  %v295 = vld [vmem:[%s1 + $0x3d4] sm:$0xf]
  %v296 = vld [vmem:[%s1 + $0x3d8] sm:$0xf]
  %v297 = vld [vmem:[%s1 + $0x3dc] sm:$0xf]
  %v298 = vld [vmem:[%s1 + $0x3e0] sm:$0xf]
  %v299 = vld [vmem:[%s1 + $0x3e4] sm:$0xf]
  %v300 = vld [vmem:[%s1 + $0x3e8] sm:$0xf]
  %v301 = vld [vmem:[%s1 + $0x3ec] sm:$0xf]
  %v302 = vld [vmem:[%s1 + $0x3f0] sm:$0xf]
  %v303 = vld [vmem:[%s1 + $0x3f4] sm:$0xf]
  %v304 = vld [vmem:[%s1 + $0x3f8] sm:$0xf]
  %v305 = vld [vmem:[%s1 + $0x3fc] sm:$0xf]
  %v338 = vunpack.c.l.b16 %v18
  %v339 = vunpack.c.h.b16 %v18
  %v340 = vunpack.c.l.b16 %v19
  %v341 = vunpack.c.h.b16 %v19
  %v342 = vunpack.c.l.b16 %v20
  %v343 = vunpack.c.h.b16 %v20
  %v344 = vunpack.c.l.b16 %v21
  %v345 = vunpack.c.h.b16 %v21
  %v346 = vunpack.c.l.b16 %v22
  %v347 = vunpack.c.h.b16 %v22
  %v348 = vunpack.c.l.b16 %v23
  %v349 = vunpack.c.h.b16 %v23
  %v350 = vunpack.c.l.b16 %v24
  %v351 = vunpack.c.h.b16 %v24
  %v352 = vunpack.c.l.b16 %v25
  %v353 = vunpack.c.h.b16 %v25
  %v354 = vunpack.c.l.b16 %v26
  %v355 = vunpack.c.h.b16 %v26
  %v356 = vunpack.c.l.b16 %v27
  %v357 = vunpack.c.h.b16 %v27
  %v358 = vunpack.c.l.b16 %v28
  %v359 = vunpack.c.h.b16 %v28
  %v360 = vunpack.c.l.b16 %v29
  %v361 = vunpack.c.h.b16 %v29
  %v362 = vunpack.c.l.b16 %v30
  %v363 = vunpack.c.h.b16 %v30
  %v364 = vunpack.c.l.b16 %v31
  %v365 = vunpack.c.h.b16 %v31
  %v366 = vunpack.c.l.b16 %v32
  %v367 = vunpack.c.h.b16 %v32
  %v368 = vunpack.c.l.b16 %v33
  %v369 = vunpack.c.h.b16 %v33
  %v370 = vunpack.c.l.b16 %v34
  %v371 = vunpack.c.h.b16 %v34
  %v372 = vunpack.c.l.b16 %v35
  %v373 = vunpack.c.h.b16 %v35
  %v374 = vunpack.c.l.b16 %v36
  %v375 = vunpack.c.h.b16 %v36
  %v376 = vunpack.c.l.b16 %v37
  %v377 = vunpack.c.h.b16 %v37
  %v378 = vunpack.c.l.b16 %v38
  %v379 = vunpack.c.h.b16 %v38
  %v380 = vunpack.c.l.b16 %v39
  %v381 = vunpack.c.h.b16 %v39
  %v382 = vunpack.c.l.b16 %v40
  %v383 = vunpack.c.h.b16 %v40
  %v384 = vunpack.c.l.b16 %v41
  %v385 = vunpack.c.h.b16 %v41
  %v386 = vunpack.c.l.b16 %v42
  %v387 = vunpack.c.h.b16 %v42
  %v388 = vunpack.c.l.b16 %v43
  %v389 = vunpack.c.h.b16 %v43
  %v390 = vunpack.c.l.b16 %v44
  %v391 = vunpack.c.h.b16 %v44
  %v392 = vunpack.c.l.b16 %v45
  %v393 = vunpack.c.h.b16 %v45
  %v394 = vunpack.c.l.b16 %v46
  %v395 = vunpack.c.h.b16 %v46
  %v396 = vunpack.c.l.b16 %v47
  %v397 = vunpack.c.h.b16 %v47
  %v398 = vunpack.c.l.b16 %v48
  %v399 = vunpack.c.h.b16 %v48
  %v400 = vunpack.c.l.b16 %v49
  %v401 = vunpack.c.h.b16 %v49
  %v402 = vpack.c.b16 %v354, %v338
  %v403 = vpack.c.b16 %v355, %v339
  %v404 = vpack.c.b16 %v356, %v340
  %v405 = vpack.c.b16 %v357, %v341
  %v406 = vpack.c.b16 %v358, %v342
  %v407 = vpack.c.b16 %v359, %v343
  %v408 = vpack.c.b16 %v360, %v344
  %v409 = vpack.c.b16 %v361, %v345
  %v410 = vpack.c.b16 %v362, %v346
  %v411 = vpack.c.b16 %v363, %v347
  %v412 = vpack.c.b16 %v364, %v348
  %v413 = vpack.c.b16 %v365, %v349
  %v414 = vpack.c.b16 %v366, %v350
  %v415 = vpack.c.b16 %v367, %v351
  %v416 = vpack.c.b16 %v368, %v352
  %v417 = vpack.c.b16 %v369, %v353
  %v418 = vpack.c.b16 %v386, %v370
  %v419 = vpack.c.b16 %v387, %v371
  %v420 = vpack.c.b16 %v388, %v372
  %v421 = vpack.c.b16 %v389, %v373
  %v422 = vpack.c.b16 %v390, %v374
  %v423 = vpack.c.b16 %v391, %v375
  %v424 = vpack.c.b16 %v392, %v376
  %v425 = vpack.c.b16 %v393, %v377
  %v426 = vpack.c.b16 %v394, %v378
  %v427 = vpack.c.b16 %v395, %v379
  %v428 = vpack.c.b16 %v396, %v380
  %v429 = vpack.c.b16 %v397, %v381
  %v430 = vpack.c.b16 %v398, %v382
  %v431 = vpack.c.b16 %v399, %v383
  %v432 = vpack.c.b16 %v400, %v384
  %v433 = vpack.c.b16 %v401, %v385
  %v722 = vunpack.c.l.b16 %v50
  %v723 = vunpack.c.l.b16 %v51
  %v724 = vunpack.c.l.b16 %v52
  %v725 = vunpack.c.l.b16 %v53
  %v726 = vunpack.c.l.b16 %v54
  %v727 = vunpack.c.l.b16 %v55
  %v728 = vunpack.c.l.b16 %v56
  %v729 = vunpack.c.l.b16 %v57
  %v730 = vunpack.c.l.b16 %v58
  %v731 = vunpack.c.l.b16 %v59
  %v732 = vunpack.c.l.b16 %v60
  %v733 = vunpack.c.l.b16 %v61
  %v734 = vunpack.c.l.b16 %v62
  %v735 = vunpack.c.l.b16 %v63
  %v736 = vunpack.c.l.b16 %v64
  %v737 = vunpack.c.l.b16 %v65
  %v738 = vunpack.c.l.b16 %v66
  %v739 = vunpack.c.l.b16 %v67
  %v740 = vunpack.c.l.b16 %v68
  %v741 = vunpack.c.l.b16 %v69
  %v742 = vunpack.c.l.b16 %v70
  %v743 = vunpack.c.l.b16 %v71
  %v744 = vunpack.c.l.b16 %v72
  %v745 = vunpack.c.l.b16 %v73
  %v746 = vunpack.c.l.b16 %v74
  %v747 = vunpack.c.l.b16 %v75
  %v748 = vunpack.c.l.b16 %v76
  %v749 = vunpack.c.l.b16 %v77
  %v750 = vunpack.c.l.b16 %v78
  %v751 = vunpack.c.l.b16 %v79
  %v752 = vunpack.c.l.b16 %v80
  %v753 = vunpack.c.l.b16 %v81
  %v754 = vunpack.c.l.b16 %v82
  %v755 = vunpack.c.l.b16 %v83
  %v756 = vunpack.c.l.b16 %v84
  %v757 = vunpack.c.l.b16 %v85
  %v758 = vunpack.c.l.b16 %v86
  %v759 = vunpack.c.l.b16 %v87
  %v760 = vunpack.c.l.b16 %v88
  %v761 = vunpack.c.l.b16 %v89
  %v762 = vunpack.c.l.b16 %v90
  %v763 = vunpack.c.l.b16 %v91
  %v764 = vunpack.c.l.b16 %v92
  %v765 = vunpack.c.l.b16 %v93
  %v766 = vunpack.c.l.b16 %v94
  %v767 = vunpack.c.l.b16 %v95
  %v768 = vunpack.c.l.b16 %v96
  %v769 = vunpack.c.l.b16 %v97
  %v770 = vunpack.c.l.b16 %v98
  %v771 = vunpack.c.l.b16 %v99
  %v772 = vunpack.c.l.b16 %v100
  %v773 = vunpack.c.l.b16 %v101
  %v774 = vunpack.c.l.b16 %v102
  %v775 = vunpack.c.l.b16 %v103
  %v776 = vunpack.c.l.b16 %v104
  %v777 = vunpack.c.l.b16 %v105
  %v778 = vunpack.c.l.b16 %v106
  %v779 = vunpack.c.l.b16 %v107
  %v780 = vunpack.c.l.b16 %v108
  %v781 = vunpack.c.l.b16 %v109
  %v782 = vunpack.c.l.b16 %v110
  %v783 = vunpack.c.l.b16 %v111
  %v784 = vunpack.c.l.b16 %v112
  %v785 = vunpack.c.l.b16 %v113
  %v786 = vunpack.c.l.b16 %v114
  %v787 = vunpack.c.l.b16 %v115
  %v788 = vunpack.c.l.b16 %v116
  %v789 = vunpack.c.l.b16 %v117
  %v790 = vunpack.c.l.b16 %v118
  %v791 = vunpack.c.l.b16 %v119
  %v792 = vunpack.c.l.b16 %v120
  %v793 = vunpack.c.l.b16 %v121
  %v794 = vunpack.c.l.b16 %v122
  %v795 = vunpack.c.l.b16 %v123
  %v796 = vunpack.c.l.b16 %v124
  %v797 = vunpack.c.l.b16 %v125
  %v798 = vunpack.c.l.b16 %v126
  %v799 = vunpack.c.l.b16 %v127
  %v800 = vunpack.c.l.b16 %v128
  %v801 = vunpack.c.l.b16 %v129
  %v802 = vunpack.c.l.b16 %v130
  %v803 = vunpack.c.l.b16 %v131
  %v804 = vunpack.c.l.b16 %v132
  %v805 = vunpack.c.l.b16 %v133
  %v806 = vunpack.c.l.b16 %v134
  %v807 = vunpack.c.l.b16 %v135
  %v808 = vunpack.c.l.b16 %v136
  %v809 = vunpack.c.l.b16 %v137
  %v810 = vunpack.c.l.b16 %v138
  %v811 = vunpack.c.l.b16 %v139
  %v812 = vunpack.c.l.b16 %v140
  %v813 = vunpack.c.l.b16 %v141
  %v814 = vunpack.c.l.b16 %v142
  %v815 = vunpack.c.l.b16 %v143
  %v816 = vunpack.c.l.b16 %v144
  %v817 = vunpack.c.l.b16 %v145
  %v818 = vunpack.c.l.b16 %v146
  %v819 = vunpack.c.l.b16 %v147
  %v820 = vunpack.c.l.b16 %v148
  %v821 = vunpack.c.l.b16 %v149
  %v822 = vunpack.c.l.b16 %v150
  %v823 = vunpack.c.l.b16 %v151
  %v824 = vunpack.c.l.b16 %v152
  %v825 = vunpack.c.l.b16 %v153
  %v826 = vunpack.c.l.b16 %v154
  %v827 = vunpack.c.l.b16 %v155
  %v828 = vunpack.c.l.b16 %v156
  %v829 = vunpack.c.l.b16 %v157
  %v830 = vunpack.c.l.b16 %v158
  %v831 = vunpack.c.l.b16 %v159
  %v832 = vunpack.c.l.b16 %v160
  %v833 = vunpack.c.l.b16 %v161
  %v834 = vunpack.c.l.b16 %v162
  %v835 = vunpack.c.l.b16 %v163
  %v836 = vunpack.c.l.b16 %v164
  %v837 = vunpack.c.l.b16 %v165
  %v838 = vunpack.c.l.b16 %v166
  %v839 = vunpack.c.l.b16 %v167
  %v840 = vunpack.c.l.b16 %v168
  %v841 = vunpack.c.l.b16 %v169
  %v842 = vunpack.c.l.b16 %v170
  %v843 = vunpack.c.l.b16 %v171
  %v844 = vunpack.c.l.b16 %v172
  %v845 = vunpack.c.l.b16 %v173
  %v846 = vunpack.c.l.b16 %v174
  %v847 = vunpack.c.l.b16 %v175
  %v848 = vunpack.c.l.b16 %v176
  %v849 = vunpack.c.l.b16 %v177
  %v850 = vunpack.c.l.b16 %v178
  %v851 = vunpack.c.l.b16 %v179
  %v852 = vunpack.c.l.b16 %v180
  %v853 = vunpack.c.l.b16 %v181
  %v854 = vunpack.c.l.b16 %v182
  %v855 = vunpack.c.l.b16 %v183
  %v856 = vunpack.c.l.b16 %v184
  %v857 = vunpack.c.l.b16 %v185
  %v858 = vunpack.c.l.b16 %v186
  %v859 = vunpack.c.l.b16 %v187
  %v860 = vunpack.c.l.b16 %v188
  %v861 = vunpack.c.l.b16 %v189
  %v862 = vunpack.c.l.b16 %v190
  %v863 = vunpack.c.l.b16 %v191
  %v864 = vunpack.c.l.b16 %v192
  %v865 = vunpack.c.l.b16 %v193
  %v866 = vunpack.c.l.b16 %v194
  %v867 = vunpack.c.l.b16 %v195
  %v868 = vunpack.c.l.b16 %v196
  %v869 = vunpack.c.l.b16 %v197
  %v870 = vunpack.c.l.b16 %v198
  %v871 = vunpack.c.l.b16 %v199
  %v872 = vunpack.c.l.b16 %v200
  %v873 = vunpack.c.l.b16 %v201
  %v874 = vunpack.c.l.b16 %v202
  %v875 = vunpack.c.l.b16 %v203
  %v876 = vunpack.c.l.b16 %v204
  %v877 = vunpack.c.l.b16 %v205
  %v878 = vunpack.c.l.b16 %v206
  %v879 = vunpack.c.l.b16 %v207
  %v880 = vunpack.c.l.b16 %v208
  %v881 = vunpack.c.l.b16 %v209
  %v882 = vunpack.c.l.b16 %v210
  %v883 = vunpack.c.l.b16 %v211
  %v884 = vunpack.c.l.b16 %v212
  %v885 = vunpack.c.l.b16 %v213
  %v886 = vunpack.c.l.b16 %v214
  %v887 = vunpack.c.l.b16 %v215
  %v888 = vunpack.c.l.b16 %v216
  %v889 = vunpack.c.l.b16 %v217
  %v890 = vunpack.c.l.b16 %v218
  %v891 = vunpack.c.l.b16 %v219
  %v892 = vunpack.c.l.b16 %v220
  %v893 = vunpack.c.l.b16 %v221
  %v894 = vunpack.c.l.b16 %v222
  %v895 = vunpack.c.l.b16 %v223
  %v896 = vunpack.c.l.b16 %v224
  %v897 = vunpack.c.l.b16 %v225
  %v898 = vunpack.c.l.b16 %v226
  %v899 = vunpack.c.l.b16 %v227
  %v900 = vunpack.c.l.b16 %v228
  %v901 = vunpack.c.l.b16 %v229
  %v902 = vunpack.c.l.b16 %v230
  %v903 = vunpack.c.l.b16 %v231
  %v904 = vunpack.c.l.b16 %v232
  %v905 = vunpack.c.l.b16 %v233
  %v906 = vunpack.c.l.b16 %v234
  %v907 = vunpack.c.l.b16 %v235
  %v908 = vunpack.c.l.b16 %v236
  %v909 = vunpack.c.l.b16 %v237
  %v910 = vunpack.c.l.b16 %v238
  %v911 = vunpack.c.l.b16 %v239
  %v912 = vunpack.c.l.b16 %v240
  %v913 = vunpack.c.l.b16 %v241
  %v914 = vunpack.c.l.b16 %v242
  %v915 = vunpack.c.l.b16 %v243
  %v916 = vunpack.c.l.b16 %v244
  %v917 = vunpack.c.l.b16 %v245
  %v918 = vunpack.c.l.b16 %v246
  %v919 = vunpack.c.l.b16 %v247
  %v920 = vunpack.c.l.b16 %v248
  %v921 = vunpack.c.l.b16 %v249
  %v922 = vunpack.c.l.b16 %v250
  %v923 = vunpack.c.l.b16 %v251
  %v924 = vunpack.c.l.b16 %v252
  %v925 = vunpack.c.l.b16 %v253
  %v926 = vunpack.c.l.b16 %v254
  %v927 = vunpack.c.l.b16 %v255
  %v928 = vunpack.c.l.b16 %v256
  %v929 = vunpack.c.l.b16 %v257
  %v930 = vunpack.c.l.b16 %v258
  %v931 = vunpack.c.l.b16 %v259
  %v932 = vunpack.c.l.b16 %v260
  %v933 = vunpack.c.l.b16 %v261
  %v934 = vunpack.c.l.b16 %v262
  %v935 = vunpack.c.l.b16 %v263
  %v936 = vunpack.c.l.b16 %v264
  %v937 = vunpack.c.l.b16 %v265
  %v938 = vunpack.c.l.b16 %v266
  %v939 = vunpack.c.l.b16 %v267
  %v940 = vunpack.c.l.b16 %v268
  %v941 = vunpack.c.l.b16 %v269
  %v942 = vunpack.c.l.b16 %v270
  %v943 = vunpack.c.l.b16 %v271
  %v944 = vunpack.c.l.b16 %v272
  %v945 = vunpack.c.l.b16 %v273
  %v946 = vunpack.c.l.b16 %v274
  %v947 = vunpack.c.l.b16 %v275
  %v948 = vunpack.c.l.b16 %v276
  %v949 = vunpack.c.l.b16 %v277
  %v950 = vunpack.c.l.b16 %v278
  %v951 = vunpack.c.l.b16 %v279
  %v952 = vunpack.c.l.b16 %v280
  %v953 = vunpack.c.l.b16 %v281
  %v954 = vunpack.c.l.b16 %v282
  %v955 = vunpack.c.l.b16 %v283
  %v956 = vunpack.c.l.b16 %v284
  %v957 = vunpack.c.l.b16 %v285
  %v958 = vunpack.c.l.b16 %v286
  %v959 = vunpack.c.l.b16 %v287
  %v960 = vunpack.c.l.b16 %v288
  %v961 = vunpack.c.l.b16 %v289
  %v962 = vunpack.c.l.b16 %v290
  %v963 = vunpack.c.l.b16 %v291
  %v964 = vunpack.c.l.b16 %v292
  %v965 = vunpack.c.l.b16 %v293
  %v966 = vunpack.c.l.b16 %v294
  %v967 = vunpack.c.l.b16 %v295
  %v968 = vunpack.c.l.b16 %v296
  %v969 = vunpack.c.l.b16 %v297
  %v970 = vunpack.c.l.b16 %v298
  %v971 = vunpack.c.l.b16 %v299
  %v972 = vunpack.c.l.b16 %v300
  %v973 = vunpack.c.l.b16 %v301
  %v974 = vunpack.c.l.b16 %v302
  %v975 = vunpack.c.l.b16 %v303
  %v976 = vunpack.c.l.b16 %v304
  %v977 = vunpack.c.l.b16 %v305
  %v978 = vpack.c.b16 %v723, %v722
  %v979 = vpack.c.b16 %v725, %v724
  %v980 = vpack.c.b16 %v727, %v726
  %v981 = vpack.c.b16 %v729, %v728
  %v982 = vpack.c.b16 %v731, %v730
  %v983 = vpack.c.b16 %v733, %v732
  %v984 = vpack.c.b16 %v735, %v734
  %v985 = vpack.c.b16 %v737, %v736
  %v986 = vpack.c.b16 %v739, %v738
  %v987 = vpack.c.b16 %v741, %v740
  %v988 = vpack.c.b16 %v743, %v742
  %v989 = vpack.c.b16 %v745, %v744
  %v990 = vpack.c.b16 %v747, %v746
  %v991 = vpack.c.b16 %v749, %v748
  %v992 = vpack.c.b16 %v751, %v750
  %v993 = vpack.c.b16 %v753, %v752
  %v994 = vpack.c.b16 %v755, %v754
  %v995 = vpack.c.b16 %v757, %v756
  %v996 = vpack.c.b16 %v759, %v758
  %v997 = vpack.c.b16 %v761, %v760
  %v998 = vpack.c.b16 %v763, %v762
  %v999 = vpack.c.b16 %v765, %v764
  %v1000 = vpack.c.b16 %v767, %v766
  %v1001 = vpack.c.b16 %v769, %v768
  %v1002 = vpack.c.b16 %v771, %v770
  %v1003 = vpack.c.b16 %v773, %v772
  %v1004 = vpack.c.b16 %v775, %v774
  %v1005 = vpack.c.b16 %v777, %v776
  %v1006 = vpack.c.b16 %v779, %v778
  %v1007 = vpack.c.b16 %v781, %v780
  %v1008 = vpack.c.b16 %v783, %v782
  %v1009 = vpack.c.b16 %v785, %v784
  %v1010 = vpack.c.b16 %v787, %v786
  %v1011 = vpack.c.b16 %v789, %v788
  %v1012 = vpack.c.b16 %v791, %v790
  %v1013 = vpack.c.b16 %v793, %v792
  %v1014 = vpack.c.b16 %v795, %v794
  %v1015 = vpack.c.b16 %v797, %v796
  %v1016 = vpack.c.b16 %v799, %v798
  %v1017 = vpack.c.b16 %v801, %v800
  %v1018 = vpack.c.b16 %v803, %v802
  %v1019 = vpack.c.b16 %v805, %v804
  %v1020 = vpack.c.b16 %v807, %v806
  %v1021 = vpack.c.b16 %v809, %v808
  %v1022 = vpack.c.b16 %v811, %v810
  %v1023 = vpack.c.b16 %v813, %v812
  %v1024 = vpack.c.b16 %v815, %v814
  %v1025 = vpack.c.b16 %v817, %v816
  %v1026 = vpack.c.b16 %v819, %v818
  %v1027 = vpack.c.b16 %v821, %v820
  %v1028 = vpack.c.b16 %v823, %v822
  %v1029 = vpack.c.b16 %v825, %v824
  %v1030 = vpack.c.b16 %v827, %v826
  %v1031 = vpack.c.b16 %v829, %v828
  %v1032 = vpack.c.b16 %v831, %v830
  %v1033 = vpack.c.b16 %v833, %v832
  %v1034 = vpack.c.b16 %v835, %v834
  %v1035 = vpack.c.b16 %v837, %v836
  %v1036 = vpack.c.b16 %v839, %v838
  %v1037 = vpack.c.b16 %v841, %v840
  %v1038 = vpack.c.b16 %v843, %v842
  %v1039 = vpack.c.b16 %v845, %v844
  %v1040 = vpack.c.b16 %v847, %v846
  %v1041 = vpack.c.b16 %v849, %v848
  %v1042 = vpack.c.b16 %v851, %v850
  %v1043 = vpack.c.b16 %v853, %v852
  %v1044 = vpack.c.b16 %v855, %v854
  %v1045 = vpack.c.b16 %v857, %v856
  %v1046 = vpack.c.b16 %v859, %v858
  %v1047 = vpack.c.b16 %v861, %v860
  %v1048 = vpack.c.b16 %v863, %v862
  %v1049 = vpack.c.b16 %v865, %v864
  %v1050 = vpack.c.b16 %v867, %v866
  %v1051 = vpack.c.b16 %v869, %v868
  %v1052 = vpack.c.b16 %v871, %v870
  %v1053 = vpack.c.b16 %v873, %v872
  %v1054 = vpack.c.b16 %v875, %v874
  %v1055 = vpack.c.b16 %v877, %v876
  %v1056 = vpack.c.b16 %v879, %v878
  %v1057 = vpack.c.b16 %v881, %v880
  %v1058 = vpack.c.b16 %v883, %v882
  %v1059 = vpack.c.b16 %v885, %v884
  %v1060 = vpack.c.b16 %v887, %v886
  %v1061 = vpack.c.b16 %v889, %v888
  %v1062 = vpack.c.b16 %v891, %v890
  %v1063 = vpack.c.b16 %v893, %v892
  %v1064 = vpack.c.b16 %v895, %v894
  %v1065 = vpack.c.b16 %v897, %v896
  %v1066 = vpack.c.b16 %v899, %v898
  %v1067 = vpack.c.b16 %v901, %v900
  %v1068 = vpack.c.b16 %v903, %v902
  %v1069 = vpack.c.b16 %v905, %v904
  %v1070 = vpack.c.b16 %v907, %v906
  %v1071 = vpack.c.b16 %v909, %v908
  %v1072 = vpack.c.b16 %v911, %v910
  %v1073 = vpack.c.b16 %v913, %v912
  %v1074 = vpack.c.b16 %v915, %v914
  %v1075 = vpack.c.b16 %v917, %v916
  %v1076 = vpack.c.b16 %v919, %v918
  %v1077 = vpack.c.b16 %v921, %v920
  %v1078 = vpack.c.b16 %v923, %v922
  %v1079 = vpack.c.b16 %v925, %v924
  %v1080 = vpack.c.b16 %v927, %v926
  %v1081 = vpack.c.b16 %v929, %v928
  %v1082 = vpack.c.b16 %v931, %v930
  %v1083 = vpack.c.b16 %v933, %v932
  %v1084 = vpack.c.b16 %v935, %v934
  %v1085 = vpack.c.b16 %v937, %v936
  %v1086 = vpack.c.b16 %v939, %v938
  %v1087 = vpack.c.b16 %v941, %v940
  %v1088 = vpack.c.b16 %v943, %v942
  %v1089 = vpack.c.b16 %v945, %v944
  %v1090 = vpack.c.b16 %v947, %v946
  %v1091 = vpack.c.b16 %v949, %v948
  %v1092 = vpack.c.b16 %v951, %v950
  %v1093 = vpack.c.b16 %v953, %v952
  %v1094 = vpack.c.b16 %v955, %v954
  %v1095 = vpack.c.b16 %v957, %v956
  %v1096 = vpack.c.b16 %v959, %v958
  %v1097 = vpack.c.b16 %v961, %v960
  %v1098 = vpack.c.b16 %v963, %v962
  %v1099 = vpack.c.b16 %v965, %v964
  %v1100 = vpack.c.b16 %v967, %v966
  %v1101 = vpack.c.b16 %v969, %v968
  %v1102 = vpack.c.b16 %v971, %v970
  %v1103 = vpack.c.b16 %v973, %v972
  %v1104 = vpack.c.b16 %v975, %v974
  %v1105 = vpack.c.b16 %v977, %v976
  %1234 = vmatprep.subr.bf16.mxu0 0
  %1235 = vmatpush1.bf16.msra.mxu0 %v978
  %1236 = vmatprep.subr.bf16.mxu0 0
  %1237 = vmatpush1.bf16.msra.mxu0 %v979
  %1238 = vmatprep.subr.bf16.mxu0 0
  %1239 = vmatpush1.bf16.msra.mxu0 %v980
  %1240 = vmatprep.subr.bf16.mxu0 0
  %1241 = vmatpush1.bf16.msra.mxu0 %v981
  %1242 = vmatprep.subr.bf16.mxu0 0
  %1243 = vmatpush1.bf16.msra.mxu0 %v982
  %1244 = vmatprep.subr.bf16.mxu0 0
  %1245 = vmatpush1.bf16.msra.mxu0 %v983
  %1246 = vmatprep.subr.bf16.mxu0 0
  %1247 = vmatpush1.bf16.msra.mxu0 %v984
  %1248 = vmatprep.subr.bf16.mxu0 0
  %1249 = vmatpush1.bf16.msra.mxu0 %v985
  %1250 = vmatprep.subr.bf16.mxu0 0
  %1251 = vmatpush1.bf16.msra.mxu0 %v986
  %1252 = vmatprep.subr.bf16.mxu0 0
  %1253 = vmatpush1.bf16.msra.mxu0 %v987
  %1254 = vmatprep.subr.bf16.mxu0 0
  %1255 = vmatpush1.bf16.msra.mxu0 %v988
  %1256 = vmatprep.subr.bf16.mxu0 0
  %1257 = vmatpush1.bf16.msra.mxu0 %v989
  %1258 = vmatprep.subr.bf16.mxu0 0
  %1259 = vmatpush1.bf16.msra.mxu0 %v990
  %1260 = vmatprep.subr.bf16.mxu0 0
  %1261 = vmatpush1.bf16.msra.mxu0 %v991
  %1262 = vmatprep.subr.bf16.mxu0 0
  %1263 = vmatpush1.bf16.msra.mxu0 %v992
  %1264 = vmatprep.subr.bf16.mxu0 0
  %1265 = vmatpush1.bf16.msra.mxu0 %v993
  %1266 = vmatprep.mubr.bf16.mxu0 %v403
  %1267 = vmatmul.mubr.bf16.gmra.mrb[0].mxu0 %v402
  %v1268 = vpop.f32.mrb[0].mxu0
  %v1269 = vadd.f32 0.0, %v1268
  %v1270 = vpop.f32.mrb[0].mxu0
  %v1271 = vpop.f32.mrb[0].mxu0
  %v1272 = vadd.f32 0.0, %v1271
  %v1273 = vpop.f32.mrb[0].mxu0
  %1274 = vmatprep.mubr.bf16.mxu0 %v419
  %1275 = vmatmul.mubr.bf16.gmra.mrb[0].mxu0 %v418
  %v1276 = vpop.f32.mrb[0].mxu0
  %v1277 = vadd.f32 0.0, %v1276
  %v1278 = vpop.f32.mrb[0].mxu0
  %v1279 = vpop.f32.mrb[0].mxu0
  %v1280 = vadd.f32 0.0, %v1279
  %v1281 = vpop.f32.mrb[0].mxu0
  %1282 = vdwg.mxu0
  %1283 = vmatprep.subr.bf16.mxu0 0
  %1284 = vmatpush1.bf16.msra.mxu0 %v994
  %1285 = vmatprep.subr.bf16.mxu0 0
  %1286 = vmatpush1.bf16.msra.mxu0 %v995
  %1287 = vmatprep.subr.bf16.mxu0 0
  %1288 = vmatpush1.bf16.msra.mxu0 %v996
  %1289 = vmatprep.subr.bf16.mxu0 0
  %1290 = vmatpush1.bf16.msra.mxu0 %v997
  %1291 = vmatprep.subr.bf16.mxu0 0
  %1292 = vmatpush1.bf16.msra.mxu0 %v998
  %1293 = vmatprep.subr.bf16.mxu0 0
  %1294 = vmatpush1.bf16.msra.mxu0 %v999
  %1295 = vmatprep.subr.bf16.mxu0 0
  %1296 = vmatpush1.bf16.msra.mxu0 %v1000
  %1297 = vmatprep.subr.bf16.mxu0 0
  %1298 = vmatpush1.bf16.msra.mxu0 %v1001
  %1299 = vmatprep.subr.bf16.mxu0 0
  %1300 = vmatpush1.bf16.msra.mxu0 %v1002
  %1301 = vmatprep.subr.bf16.mxu0 0
  %1302 = vmatpush1.bf16.msra.mxu0 %v1003
  %1303 = vmatprep.subr.bf16.mxu0 0
  %1304 = vmatpush1.bf16.msra.mxu0 %v1004
  %1305 = vmatprep.subr.bf16.mxu0 0
  %1306 = vmatpush1.bf16.msra.mxu0 %v1005
  %1307 = vmatprep.subr.bf16.mxu0 0
  %1308 = vmatpush1.bf16.msra.mxu0 %v1006
  %1309 = vmatprep.subr.bf16.mxu0 0
  %1310 = vmatpush1.bf16.msra.mxu0 %v1007
  %1311 = vmatprep.subr.bf16.mxu0 0
  %1312 = vmatpush1.bf16.msra.mxu0 %v1008
  %1313 = vmatprep.subr.bf16.mxu0 0
  %1314 = vmatpush1.bf16.msra.mxu0 %v1009
  %1315 = vmatprep.mubr.bf16.mxu0 %v405
  %1316 = vmatmul.mubr.bf16.gmra.mrb[0].mxu0 %v404
  %v1317 = vpop.f32.mrb[0].mxu0
  %v1318 = vadd.f32 %v1269, %v1317
  %v1319 = vpop.f32.mrb[0].mxu0
  %v1320 = vpop.f32.mrb[0].mxu0
  %v1321 = vadd.f32 %v1272, %v1320
  %v1322 = vpop.f32.mrb[0].mxu0
  %1323 = vmatprep.mubr.bf16.mxu0 %v421
  %1324 = vmatmul.mubr.bf16.gmra.mrb[0].mxu0 %v420
  %v1325 = vpop.f32.mrb[0].mxu0
  %v1326 = vadd.f32 %v1277, %v1325
  %v1327 = vpop.f32.mrb[0].mxu0
  %v1328 = vpop.f32.mrb[0].mxu0
  %v1329 = vadd.f32 %v1280, %v1328
  %v1330 = vpop.f32.mrb[0].mxu0
  %1331 = vdwg.mxu0
  %1332 = vmatprep.subr.bf16.mxu0 0
  %1333 = vmatpush1.bf16.msra.mxu0 %v1010
  %1334 = vmatprep.subr.bf16.mxu0 0
  %1335 = vmatpush1.bf16.msra.mxu0 %v1011
  %1336 = vmatprep.subr.bf16.mxu0 0
  %1337 = vmatpush1.bf16.msra.mxu0 %v1012
  %1338 = vmatprep.subr.bf16.mxu0 0
  %1339 = vmatpush1.bf16.msra.mxu0 %v1013
  %1340 = vmatprep.subr.bf16.mxu0 0
  %1341 = vmatpush1.bf16.msra.mxu0 %v1014
  %1342 = vmatprep.subr.bf16.mxu0 0
  %1343 = vmatpush1.bf16.msra.mxu0 %v1015
  %1344 = vmatprep.subr.bf16.mxu0 0
  %1345 = vmatpush1.bf16.msra.mxu0 %v1016
  %1346 = vmatprep.subr.bf16.mxu0 0
  %1347 = vmatpush1.bf16.msra.mxu0 %v1017
  %1348 = vmatprep.subr.bf16.mxu0 0
  %1349 = vmatpush1.bf16.msra.mxu0 %v1018
  %1350 = vmatprep.subr.bf16.mxu0 0
  %1351 = vmatpush1.bf16.msra.mxu0 %v1019
  %1352 = vmatprep.subr.bf16.mxu0 0
  %1353 = vmatpush1.bf16.msra.mxu0 %v1020
  %1354 = vmatprep.subr.bf16.mxu0 0
  %1355 = vmatpush1.bf16.msra.mxu0 %v1021
  %1356 = vmatprep.subr.bf16.mxu0 0
  %1357 = vmatpush1.bf16.msra.mxu0 %v1022
  %1358 = vmatprep.subr.bf16.mxu0 0
  %1359 = vmatpush1.bf16.msra.mxu0 %v1023
  %1360 = vmatprep.subr.bf16.mxu0 0
  %1361 = vmatpush1.bf16.msra.mxu0 %v1024
  %1362 = vmatprep.subr.bf16.mxu0 0
  %1363 = vmatpush1.bf16.msra.mxu0 %v1025
  %1364 = vmatprep.mubr.bf16.mxu0 %v407
  %1365 = vmatmul.mubr.bf16.gmra.mrb[0].mxu0 %v406
  %v1366 = vpop.f32.mrb[0].mxu0
  %v1367 = vadd.f32 %v1318, %v1366
  %v1368 = vpop.f32.mrb[0].mxu0
  %v1369 = vpop.f32.mrb[0].mxu0
  %v1370 = vadd.f32 %v1321, %v1369
  %v1371 = vpop.f32.mrb[0].mxu0
  %1372 = vmatprep.mubr.bf16.mxu0 %v423
  %1373 = vmatmul.mubr.bf16.gmra.mrb[0].mxu0 %v422
  %v1374 = vpop.f32.mrb[0].mxu0
  %v1375 = vadd.f32 %v1326, %v1374
  %v1376 = vpop.f32.mrb[0].mxu0
  %v1377 = vpop.f32.mrb[0].mxu0
  %v1378 = vadd.f32 %v1329, %v1377
  %v1379 = vpop.f32.mrb[0].mxu0
  %1380 = vdwg.mxu0
  %1381 = vmatprep.subr.bf16.mxu0 0
  %1382 = vmatpush1.bf16.msra.mxu0 %v1026
  %1383 = vmatprep.subr.bf16.mxu0 0
  %1384 = vmatpush1.bf16.msra.mxu0 %v1027
  %1385 = vmatprep.subr.bf16.mxu0 0
  %1386 = vmatpush1.bf16.msra.mxu0 %v1028
  %1387 = vmatprep.subr.bf16.mxu0 0
  %1388 = vmatpush1.bf16.msra.mxu0 %v1029
  %1389 = vmatprep.subr.bf16.mxu0 0
  %1390 = vmatpush1.bf16.msra.mxu0 %v1030
  %1391 = vmatprep.subr.bf16.mxu0 0
  %1392 = vmatpush1.bf16.msra.mxu0 %v1031
  %1393 = vmatprep.subr.bf16.mxu0 0
  %1394 = vmatpush1.bf16.msra.mxu0 %v1032
  %1395 = vmatprep.subr.bf16.mxu0 0
  %1396 = vmatpush1.bf16.msra.mxu0 %v1033
  %1397 = vmatprep.subr.bf16.mxu0 0
  %1398 = vmatpush1.bf16.msra.mxu0 %v1034
  %1399 = vmatprep.subr.bf16.mxu0 0
  %1400 = vmatpush1.bf16.msra.mxu0 %v1035
  %1401 = vmatprep.subr.bf16.mxu0 0
  %1402 = vmatpush1.bf16.msra.mxu0 %v1036
  %1403 = vmatprep.subr.bf16.mxu0 0
  %1404 = vmatpush1.bf16.msra.mxu0 %v1037
  %1405 = vmatprep.subr.bf16.mxu0 0
  %1406 = vmatpush1.bf16.msra.mxu0 %v1038
  %1407 = vmatprep.subr.bf16.mxu0 0
  %1408 = vmatpush1.bf16.msra.mxu0 %v1039
  %1409 = vmatprep.subr.bf16.mxu0 0
  %1410 = vmatpush1.bf16.msra.mxu0 %v1040
  %1411 = vmatprep.subr.bf16.mxu0 0
  %1412 = vmatpush1.bf16.msra.mxu0 %v1041
  %1413 = vmatprep.mubr.bf16.mxu0 %v409
  %1414 = vmatmul.mubr.bf16.gmra.mrb[0].mxu0 %v408
  %v1415 = vpop.f32.mrb[0].mxu0
  %v1416 = vadd.f32 %v1367, %v1415
  %v1417 = vpop.f32.mrb[0].mxu0
  %v1418 = vpop.f32.mrb[0].mxu0
  %v1419 = vadd.f32 %v1370, %v1418
  %v1420 = vpop.f32.mrb[0].mxu0
  %1421 = vmatprep.mubr.bf16.mxu0 %v425
  %1422 = vmatmul.mubr.bf16.gmra.mrb[0].mxu0 %v424
  %v1423 = vpop.f32.mrb[0].mxu0
  %v1424 = vadd.f32 %v1375, %v1423
  %v1425 = vpop.f32.mrb[0].mxu0
  %v1426 = vpop.f32.mrb[0].mxu0
  %v1427 = vadd.f32 %v1378, %v1426
  %v1428 = vpop.f32.mrb[0].mxu0
  %1429 = vdwg.mxu0
  %1430 = vmatprep.subr.bf16.mxu0 0
  %1431 = vmatpush1.bf16.msra.mxu0 %v1042
  %1432 = vmatprep.subr.bf16.mxu0 0
  %1433 = vmatpush1.bf16.msra.mxu0 %v1043
  %1434 = vmatprep.subr.bf16.mxu0 0
  %1435 = vmatpush1.bf16.msra.mxu0 %v1044
  %1436 = vmatprep.subr.bf16.mxu0 0
  %1437 = vmatpush1.bf16.msra.mxu0 %v1045
  %1438 = vmatprep.subr.bf16.mxu0 0
  %1439 = vmatpush1.bf16.msra.mxu0 %v1046
  %1440 = vmatprep.subr.bf16.mxu0 0
  %1441 = vmatpush1.bf16.msra.mxu0 %v1047
  %1442 = vmatprep.subr.bf16.mxu0 0
  %1443 = vmatpush1.bf16.msra.mxu0 %v1048
  %1444 = vmatprep.subr.bf16.mxu0 0
  %1445 = vmatpush1.bf16.msra.mxu0 %v1049
  %1446 = vmatprep.subr.bf16.mxu0 0
  %1447 = vmatpush1.bf16.msra.mxu0 %v1050
  %1448 = vmatprep.subr.bf16.mxu0 0
  %1449 = vmatpush1.bf16.msra.mxu0 %v1051
  %1450 = vmatprep.subr.bf16.mxu0 0
  %1451 = vmatpush1.bf16.msra.mxu0 %v1052
  %1452 = vmatprep.subr.bf16.mxu0 0
  %1453 = vmatpush1.bf16.msra.mxu0 %v1053
  %1454 = vmatprep.subr.bf16.mxu0 0
  %1455 = vmatpush1.bf16.msra.mxu0 %v1054
  %1456 = vmatprep.subr.bf16.mxu0 0
  %1457 = vmatpush1.bf16.msra.mxu0 %v1055
  %1458 = vmatprep.subr.bf16.mxu0 0
  %1459 = vmatpush1.bf16.msra.mxu0 %v1056
  %1460 = vmatprep.subr.bf16.mxu0 0
  %1461 = vmatpush1.bf16.msra.mxu0 %v1057
  %1462 = vmatprep.mubr.bf16.mxu0 %v411
  %1463 = vmatmul.mubr.bf16.gmra.mrb[0].mxu0 %v410
  %v1464 = vpop.f32.mrb[0].mxu0
  %v1465 = vadd.f32 %v1416, %v1464
  %v1466 = vpop.f32.mrb[0].mxu0
  %v1467 = vpop.f32.mrb[0].mxu0
  %v1468 = vadd.f32 %v1419, %v1467
  %v1469 = vpop.f32.mrb[0].mxu0
  %1470 = vmatprep.mubr.bf16.mxu0 %v427
  %1471 = vmatmul.mubr.bf16.gmra.mrb[0].mxu0 %v426
  %v1472 = vpop.f32.mrb[0].mxu0
  %v1473 = vadd.f32 %v1424, %v1472
  %v1474 = vpop.f32.mrb[0].mxu0
  %v1475 = vpop.f32.mrb[0].mxu0
  %v1476 = vadd.f32 %v1427, %v1475
  %v1477 = vpop.f32.mrb[0].mxu0
  %1478 = vdwg.mxu0
  %1479 = vmatprep.subr.bf16.mxu0 0
  %1480 = vmatpush1.bf16.msra.mxu0 %v1058
  %1481 = vmatprep.subr.bf16.mxu0 0
  %1482 = vmatpush1.bf16.msra.mxu0 %v1059
  %1483 = vmatprep.subr.bf16.mxu0 0
  %1484 = vmatpush1.bf16.msra.mxu0 %v1060
  %1485 = vmatprep.subr.bf16.mxu0 0
  %1486 = vmatpush1.bf16.msra.mxu0 %v1061
  %1487 = vmatprep.subr.bf16.mxu0 0
  %1488 = vmatpush1.bf16.msra.mxu0 %v1062
  %1489 = vmatprep.subr.bf16.mxu0 0
  %1490 = vmatpush1.bf16.msra.mxu0 %v1063
  %1491 = vmatprep.subr.bf16.mxu0 0
  %1492 = vmatpush1.bf16.msra.mxu0 %v1064
  %1493 = vmatprep.subr.bf16.mxu0 0
  %1494 = vmatpush1.bf16.msra.mxu0 %v1065
  %1495 = vmatprep.subr.bf16.mxu0 0
  %1496 = vmatpush1.bf16.msra.mxu0 %v1066
  %1497 = vmatprep.subr.bf16.mxu0 0
  %1498 = vmatpush1.bf16.msra.mxu0 %v1067
  %1499 = vmatprep.subr.bf16.mxu0 0
  %1500 = vmatpush1.bf16.msra.mxu0 %v1068
  %1501 = vmatprep.subr.bf16.mxu0 0
  %1502 = vmatpush1.bf16.msra.mxu0 %v1069
  %1503 = vmatprep.subr.bf16.mxu0 0
  %1504 = vmatpush1.bf16.msra.mxu0 %v1070
  %1505 = vmatprep.subr.bf16.mxu0 0
  %1506 = vmatpush1.bf16.msra.mxu0 %v1071
  %1507 = vmatprep.subr.bf16.mxu0 0
  %1508 = vmatpush1.bf16.msra.mxu0 %v1072
  %1509 = vmatprep.subr.bf16.mxu0 0
  %1510 = vmatpush1.bf16.msra.mxu0 %v1073
  %1511 = vmatprep.mubr.bf16.mxu0 %v413
  %1512 = vmatmul.mubr.bf16.gmra.mrb[0].mxu0 %v412
  %v1513 = vpop.f32.mrb[0].mxu0
  %v1514 = vadd.f32 %v1465, %v1513
  %v1515 = vpop.f32.mrb[0].mxu0
  %v1516 = vpop.f32.mrb[0].mxu0
  %v1517 = vadd.f32 %v1468, %v1516
  %v1518 = vpop.f32.mrb[0].mxu0
  %1519 = vmatprep.mubr.bf16.mxu0 %v429
  %1520 = vmatmul.mubr.bf16.gmra.mrb[0].mxu0 %v428
  %v1521 = vpop.f32.mrb[0].mxu0
  %v1522 = vadd.f32 %v1473, %v1521
  %v1523 = vpop.f32.mrb[0].mxu0
  %v1524 = vpop.f32.mrb[0].mxu0
  %v1525 = vadd.f32 %v1476, %v1524
  %v1526 = vpop.f32.mrb[0].mxu0
  %1527 = vdwg.mxu0
  %1528 = vmatprep.subr.bf16.mxu0 0
  %1529 = vmatpush1.bf16.msra.mxu0 %v1074
  %1530 = vmatprep.subr.bf16.mxu0 0
  %1531 = vmatpush1.bf16.msra.mxu0 %v1075
  %1532 = vmatprep.subr.bf16.mxu0 0
  %1533 = vmatpush1.bf16.msra.mxu0 %v1076
  %1534 = vmatprep.subr.bf16.mxu0 0
  %1535 = vmatpush1.bf16.msra.mxu0 %v1077
  %1536 = vmatprep.subr.bf16.mxu0 0
  %1537 = vmatpush1.bf16.msra.mxu0 %v1078
  %1538 = vmatprep.subr.bf16.mxu0 0
  %1539 = vmatpush1.bf16.msra.mxu0 %v1079
  %1540 = vmatprep.subr.bf16.mxu0 0
  %1541 = vmatpush1.bf16.msra.mxu0 %v1080
  %1542 = vmatprep.subr.bf16.mxu0 0
  %1543 = vmatpush1.bf16.msra.mxu0 %v1081
  %1544 = vmatprep.subr.bf16.mxu0 0
  %1545 = vmatpush1.bf16.msra.mxu0 %v1082
  %1546 = vmatprep.subr.bf16.mxu0 0
  %1547 = vmatpush1.bf16.msra.mxu0 %v1083
  %1548 = vmatprep.subr.bf16.mxu0 0
  %1549 = vmatpush1.bf16.msra.mxu0 %v1084
  %1550 = vmatprep.subr.bf16.mxu0 0
  %1551 = vmatpush1.bf16.msra.mxu0 %v1085
  %1552 = vmatprep.subr.bf16.mxu0 0
  %1553 = vmatpush1.bf16.msra.mxu0 %v1086
  %1554 = vmatprep.subr.bf16.mxu0 0
  %1555 = vmatpush1.bf16.msra.mxu0 %v1087
  %1556 = vmatprep.subr.bf16.mxu0 0
  %1557 = vmatpush1.bf16.msra.mxu0 %v1088
  %1558 = vmatprep.subr.bf16.mxu0 0
  %1559 = vmatpush1.bf16.msra.mxu0 %v1089
  %1560 = vmatprep.mubr.bf16.mxu0 %v415
  %1561 = vmatmul.mubr.bf16.gmra.mrb[0].mxu0 %v414
  %v1562 = vpop.f32.mrb[0].mxu0
  %v1563 = vadd.f32 %v1514, %v1562
  %v1564 = vpop.f32.mrb[0].mxu0
  %v1565 = vpop.f32.mrb[0].mxu0
  %v1566 = vadd.f32 %v1517, %v1565
  %v1567 = vpop.f32.mrb[0].mxu0
  %1568 = vmatprep.mubr.bf16.mxu0 %v431
  %1569 = vmatmul.mubr.bf16.gmra.mrb[0].mxu0 %v430
  %v1570 = vpop.f32.mrb[0].mxu0
  %v1571 = vadd.f32 %v1522, %v1570
  %v1572 = vpop.f32.mrb[0].mxu0
  %v1573 = vpop.f32.mrb[0].mxu0
  %v1574 = vadd.f32 %v1525, %v1573
  %v1575 = vpop.f32.mrb[0].mxu0
  %1576 = vdwg.mxu0
  %1577 = vmatprep.subr.bf16.mxu0 0
  %1578 = vmatpush1.bf16.msra.mxu0 %v1090
  %1579 = vmatprep.subr.bf16.mxu0 0
  %1580 = vmatpush1.bf16.msra.mxu0 %v1091
  %1581 = vmatprep.subr.bf16.mxu0 0
  %1582 = vmatpush1.bf16.msra.mxu0 %v1092
  %1583 = vmatprep.subr.bf16.mxu0 0
  %1584 = vmatpush1.bf16.msra.mxu0 %v1093
  %1585 = vmatprep.subr.bf16.mxu0 0
  %1586 = vmatpush1.bf16.msra.mxu0 %v1094
  %1587 = vmatprep.subr.bf16.mxu0 0
  %1588 = vmatpush1.bf16.msra.mxu0 %v1095
  %1589 = vmatprep.subr.bf16.mxu0 0
  %1590 = vmatpush1.bf16.msra.mxu0 %v1096
  %1591 = vmatprep.subr.bf16.mxu0 0
  %1592 = vmatpush1.bf16.msra.mxu0 %v1097
  %1593 = vmatprep.subr.bf16.mxu0 0
  %1594 = vmatpush1.bf16.msra.mxu0 %v1098
  %1595 = vmatprep.subr.bf16.mxu0 0
  %1596 = vmatpush1.bf16.msra.mxu0 %v1099
  %1597 = vmatprep.subr.bf16.mxu0 0
  %1598 = vmatpush1.bf16.msra.mxu0 %v1100
  %1599 = vmatprep.subr.bf16.mxu0 0
  %1600 = vmatpush1.bf16.msra.mxu0 %v1101
  %1601 = vmatprep.subr.bf16.mxu0 0
  %1602 = vmatpush1.bf16.msra.mxu0 %v1102
  %1603 = vmatprep.subr.bf16.mxu0 0
  %1604 = vmatpush1.bf16.msra.mxu0 %v1103
  %1605 = vmatprep.subr.bf16.mxu0 0
  %1606 = vmatpush1.bf16.msra.mxu0 %v1104
  %1607 = vmatprep.subr.bf16.mxu0 0
  %1608 = vmatpush1.bf16.msra.mxu0 %v1105
  %1609 = vmatprep.mubr.bf16.mxu0 %v417
  %1610 = vmatmul.mubr.bf16.gmra.mrb[0].mxu0 %v416
  %v1611 = vpop.f32.mrb[0].mxu0
  %v1612 = vadd.f32 %v1563, %v1611
  %v1613 = vpop.f32.mrb[0].mxu0
  %v1614 = vpop.f32.mrb[0].mxu0
  %v1615 = vadd.f32 %v1566, %v1614
  %v1616 = vpop.f32.mrb[0].mxu0
  %1617 = vmatprep.mubr.bf16.mxu0 %v433
  %1618 = vmatmul.mubr.bf16.gmra.mrb[0].mxu0 %v432
  %v1619 = vpop.f32.mrb[0].mxu0
  %v1620 = vadd.f32 %v1571, %v1619
  %v1621 = vpop.f32.mrb[0].mxu0
  %v1622 = vpop.f32.mrb[0].mxu0
  %v1623 = vadd.f32 %v1574, %v1622
  %v1624 = vpop.f32.mrb[0].mxu0
  %1625 = vdwg.mxu0
  %v1626 = vadd.f32 %v1612, %v1615
  %v1627 = vadd.f32 %v1626, %v1620
  %v1628 = vadd.f32 %v1627, %v1623
  %v1629 = vrot.slane %v1628, 4
  %v1630 = vadd.f32 %v1628, %v1629
  %v1631 = vrot.slane %v1630, 2
  %v1632 = vadd.f32 %v1630, %v1631
  %v1633 = vrot.slane %v1632, 1
  %v1634 = vadd.f32 %v1632, %v1633
  %v1635 = vrcp.pop 32.0
  %v1636 = vmul.f32 %v1634, %v1635
  %v1637 = vsub.f32 %v1612, %v1636
  %v1638 = vsub.f32 %v1615, %v1636
  %v1639 = vsub.f32 %v1620, %v1636
  %v1640 = vsub.f32 %v1623, %v1636
  %v1641 = vmul.f32 %v1637, %v1637
  %v1642 = vmul.f32 %v1638, %v1638
  %v1643 = vmul.f32 %v1639, %v1639
  %v1644 = vmul.f32 %v1640, %v1640
  %v1645 = vadd.f32 %v1641, %v1642
  %v1646 = vadd.f32 %v1645, %v1643
  %v1647 = vadd.f32 %v1646, %v1644
  %v1648 = vrot.slane %v1647, 4
  %v1649 = vadd.f32 %v1647, %v1648
  %v1650 = vrot.slane %v1649, 2
  %v1651 = vadd.f32 %v1649, %v1650
  %v1652 = vrot.slane %v1651, 1
  %v1653 = vadd.f32 %v1651, %v1652
  %v1654 = vmul.f32 %v1653, %v1635
  %v1655 = vld [vmem:[%s2] sm:$0x1]
  %v1656 = vadd.f32 %v1654, 1e-05
  %v1657 = vrsqrt.pop %v1656
  %v1658 = vmul.f32 %v1655, %v1657
  %v1659 = vld [vmem:[%s3] sm:$0x1]
  %v1660 = vmul.f32 %v1636, %v1658
  %v1661 = vsub.f32 %v1659, %v1660
  %v1663 = vlaneseq
  %v1664 = vshrl.u32 %v1663, 7
  %v1665 = vsub.s32 0, %v1664
  %v1666 = vrot.slane %v1658, %v1665
  %v1668 = vmul.f32 %v1612, %v1666
  %v1669 = vmul.f32 %v1615, %v1666
  %v1670 = vmul.f32 %v1620, %v1666
  %v1671 = vmul.f32 %v1623, %v1666
  %v1673 = vlaneseq
  %v1674 = vshrl.u32 %v1673, 7
  %v1675 = vsub.s32 0, %v1674
  %v1676 = vrot.slane %v1661, %v1675
  %v1678 = vadd.f32 %v1668, %v1676
  %v1679 = vadd.f32 %v1669, %v1676
  %v1680 = vadd.f32 %v1670, %v1676
  %v1681 = vadd.f32 %v1671, %v1676
  %vm1682 = vcmp.gt.f32.partialorder %v1678, 0.0
  %vm1683 = vcmp.gt.f32.partialorder %v1679, 0.0
  %vm1684 = vcmp.gt.f32.partialorder %v1680, 0.0
  %vm1685 = vcmp.gt.f32.partialorder %v1681, 0.0
  %v1686 = vmul.f32 %v1678, 0.2
  %v1687 = vmul.f32 %v1679, 0.2
  %v1688 = vmul.f32 %v1680, 0.2
  %v1689 = vmul.f32 %v1681, 0.2
  %v1690 = vsel %vm1682, %v1678, %v1686
  %v1691 = vsel %vm1683, %v1679, %v1687
  %v1692 = vsel %vm1684, %v1680, %v1688
  %v1693 = vsel %vm1685, %v1681, %v1689
  %v1694 = vpack.c.bf16 %v1691, %v1690
  %v1695 = vpack.c.bf16 %v1693, %v1692
  %v1698 = vunpack.c.l.b16 %v1694
  %v1699 = vunpack.c.h.b16 %v1694
  %v1700 = vunpack.c.l.b16 %v1695
  %v1701 = vunpack.c.h.b16 %v1695
  %v1702 = vpack.c.b16 %v1698, %v1698
  %v1703 = vpack.c.b16 %v1699, %v1699
  %v1704 = vpack.c.b16 %v1700, %v1700
  %v1705 = vpack.c.b16 %v1701, %v1701
  %1710 = vst [vmem:[%s4] sm:$0xf] %v1702
  %1711 = vst [vmem:[%s4 + $0x4] sm:$0xf] %v1703
  %1712 = vst [vmem:[%s4 + $0x8] sm:$0xf] %v1704
  %1713 = vst [vmem:[%s4 + $0xc] sm:$0xf] %v1705
  // Predicated region
  $region18: #{discriminator_forward.6} parent=0 // pred_check
    _
  $region19: #{discriminator_forward.6} parent=0 // pred_check_branch
    %1715 = sbr.rel (0) target = $region21
  $region20: #{discriminator_forward.6} parent=0 // pred_region
    _
  $region21: #{discriminator_forward.6} parent=0 // pred_fallthru
    _
  // Predicated region
  $region22: #{discriminator_forward.6} parent=0 // pred_check
    _
  $region23: #{discriminator_forward.6} parent=0 // pred_check_branch
    %1717 = sbr.rel (0) target = $region25
  $region24: #{discriminator_forward.6} parent=0 // pred_region
    _
  $region25: #{discriminator_forward.6} parent=0 // pred_fallthru
    _

// kernel: discriminator_forward.7
$region0: #{discriminator_forward.7}
  #allocation0 [shape = 'u32[]', space=smem, size = 0x4, offset = 0x4, fixed_abs, tag = 'smem constant byte address 0x4 - core index']
  #allocation1 [shape = 'u32[144,128]{1,0:T(1,128)}', space=vmem, size = 0x12000, scoped, tag = 'internal scratch']
  %s0 = inlined_call_operand.vmem [shape: bf16[2,2048], index: 0, kind: input, shape index: {}]
  %s1 = inlined_call_operand.vmem [shape: bf16[2048,128], index: 1, kind: input, shape index: {}]
  %s2 = inlined_call_operand.vmem [shape: f32[1,128], index: 2, kind: input, shape index: {}]
  %s3 = inlined_call_operand.vmem [shape: f32[2,128], index: 3, kind: output, shape index: {}]
  %s4 = sld [smem:[#allocation0]]
  $region22: #{discriminator_forward.7} parent=0
    _
  %s6 = ssub.s32 1, %s4
  %s7 = scalar_select 0, %s6, %s4
  // Predicated region
  $region2: #{discriminator_forward.7} parent=0 // pred_check
    _
  $region3: #{discriminator_forward.7} parent=0 // pred_check_branch
    %9 = sbr.rel (0) target = $region5
  $region4: #{discriminator_forward.7} parent=0 // pred_region
    _
  $region5: #{discriminator_forward.7} parent=0 // pred_fallthru
    _
  // Predicated region
  $region6: #{discriminator_forward.7} parent=0 // pred_check
    _
  $region7: #{discriminator_forward.7} parent=0 // pred_check_branch
    %11 = sbr.rel (0) target = $region9
  $region8: #{discriminator_forward.7} parent=0 // pred_region
    _
  $region9: #{discriminator_forward.7} parent=0 // pred_fallthru
    _
  // Predicated region
  $region10: #{discriminator_forward.7} parent=0 // pred_check
    _
  $region11: #{discriminator_forward.7} parent=0 // pred_check_branch
    %13 = sbr.rel (0) target = $region13
  $region12: #{discriminator_forward.7} parent=0 // pred_region
    _
  $region13: #{discriminator_forward.7} parent=0 // pred_fallthru
    _
  %v15 = vld [vmem:[%s0] sm:$0xff]
  %v16 = vld [vmem:[%s0 + $0x8] sm:$0xff]
  %v17 = vld [vmem:[%s1] sm:$0xf]
  %v18 = vld [vmem:[%s1 + $0x4] sm:$0xf]
  %v19 = vld [vmem:[%s1 + $0x8] sm:$0xf]
  %v20 = vld [vmem:[%s1 + $0xc] sm:$0xf]
  %v21 = vld [vmem:[%s1 + $0x10] sm:$0xf]
  %v22 = vld [vmem:[%s1 + $0x14] sm:$0xf]
  %v23 = vld [vmem:[%s1 + $0x18] sm:$0xf]
  %v24 = vld [vmem:[%s1 + $0x1c] sm:$0xf]
  %v25 = vld [vmem:[%s1 + $0x20] sm:$0xf]
  %v26 = vld [vmem:[%s1 + $0x24] sm:$0xf]
  %v27 = vld [vmem:[%s1 + $0x28] sm:$0xf]
  %v28 = vld [vmem:[%s1 + $0x2c] sm:$0xf]
  %v29 = vld [vmem:[%s1 + $0x30] sm:$0xf]
  %v30 = vld [vmem:[%s1 + $0x34] sm:$0xf]
  %v31 = vld [vmem:[%s1 + $0x38] sm:$0xf]
  %v32 = vld [vmem:[%s1 + $0x3c] sm:$0xf]
  %v33 = vld [vmem:[%s1 + $0x40] sm:$0xf]
  %v34 = vld [vmem:[%s1 + $0x44] sm:$0xf]
  %v35 = vld [vmem:[%s1 + $0x48] sm:$0xf]
  %v36 = vld [vmem:[%s1 + $0x4c] sm:$0xf]
  %v37 = vld [vmem:[%s1 + $0x50] sm:$0xf]
  %v38 = vld [vmem:[%s1 + $0x54] sm:$0xf]
  %v39 = vld [vmem:[%s1 + $0x58] sm:$0xf]
  %v40 = vld [vmem:[%s1 + $0x5c] sm:$0xf]
  %v41 = vld [vmem:[%s1 + $0x60] sm:$0xf]
  %v42 = vld [vmem:[%s1 + $0x64] sm:$0xf]
  %v43 = vld [vmem:[%s1 + $0x68] sm:$0xf]
  %v44 = vld [vmem:[%s1 + $0x6c] sm:$0xf]
  %v45 = vld [vmem:[%s1 + $0x70] sm:$0xf]
  %v46 = vld [vmem:[%s1 + $0x74] sm:$0xf]
  %v47 = vld [vmem:[%s1 + $0x78] sm:$0xf]
  %v48 = vld [vmem:[%s1 + $0x7c] sm:$0xf]
  %v49 = vld [vmem:[%s1 + $0x80] sm:$0xf]
  %v50 = vld [vmem:[%s1 + $0x84] sm:$0xf]
  %v51 = vld [vmem:[%s1 + $0x88] sm:$0xf]
  %v52 = vld [vmem:[%s1 + $0x8c] sm:$0xf]
  %v53 = vld [vmem:[%s1 + $0x90] sm:$0xf]
  %v54 = vld [vmem:[%s1 + $0x94] sm:$0xf]
  %v55 = vld [vmem:[%s1 + $0x98] sm:$0xf]
  %v56 = vld [vmem:[%s1 + $0x9c] sm:$0xf]
  %v57 = vld [vmem:[%s1 + $0xa0] sm:$0xf]
  %v58 = vld [vmem:[%s1 + $0xa4] sm:$0xf]
  %v59 = vld [vmem:[%s1 + $0xa8] sm:$0xf]
  %v60 = vld [vmem:[%s1 + $0xac] sm:$0xf]
  %v61 = vld [vmem:[%s1 + $0xb0] sm:$0xf]
  %v62 = vld [vmem:[%s1 + $0xb4] sm:$0xf]
  %v63 = vld [vmem:[%s1 + $0xb8] sm:$0xf]
  %v64 = vld [vmem:[%s1 + $0xbc] sm:$0xf]
  %v65 = vld [vmem:[%s1 + $0xc0] sm:$0xf]
  %v66 = vld [vmem:[%s1 + $0xc4] sm:$0xf]
  %v67 = vld [vmem:[%s1 + $0xc8] sm:$0xf]
  %v68 = vld [vmem:[%s1 + $0xcc] sm:$0xf]
  %v69 = vld [vmem:[%s1 + $0xd0] sm:$0xf]
  %v70 = vld [vmem:[%s1 + $0xd4] sm:$0xf]
  %v71 = vld [vmem:[%s1 + $0xd8] sm:$0xf]
  %v72 = vld [vmem:[%s1 + $0xdc] sm:$0xf]
  %v73 = vld [vmem:[%s1 + $0xe0] sm:$0xf]
  %v74 = vld [vmem:[%s1 + $0xe4] sm:$0xf]
  %v75 = vld [vmem:[%s1 + $0xe8] sm:$0xf]
  %v76 = vld [vmem:[%s1 + $0xec] sm:$0xf]
  %v77 = vld [vmem:[%s1 + $0xf0] sm:$0xf]
  %v78 = vld [vmem:[%s1 + $0xf4] sm:$0xf]
  %v79 = vld [vmem:[%s1 + $0xf8] sm:$0xf]
  %v80 = vld [vmem:[%s1 + $0xfc] sm:$0xf]
  %v81 = vld [vmem:[%s1 + $0x100] sm:$0xf]
  %v82 = vld [vmem:[%s1 + $0x104] sm:$0xf]
  %v83 = vld [vmem:[%s1 + $0x108] sm:$0xf]
  %v84 = vld [vmem:[%s1 + $0x10c] sm:$0xf]
  %v85 = vld [vmem:[%s1 + $0x110] sm:$0xf]
  %v86 = vld [vmem:[%s1 + $0x114] sm:$0xf]
  %v87 = vld [vmem:[%s1 + $0x118] sm:$0xf]
  %v88 = vld [vmem:[%s1 + $0x11c] sm:$0xf]
  %v89 = vld [vmem:[%s1 + $0x120] sm:$0xf]
  %v90 = vld [vmem:[%s1 + $0x124] sm:$0xf]
  %v91 = vld [vmem:[%s1 + $0x128] sm:$0xf]
  %v92 = vld [vmem:[%s1 + $0x12c] sm:$0xf]
  %v93 = vld [vmem:[%s1 + $0x130] sm:$0xf]
  %v94 = vld [vmem:[%s1 + $0x134] sm:$0xf]
  %v95 = vld [vmem:[%s1 + $0x138] sm:$0xf]
  %v96 = vld [vmem:[%s1 + $0x13c] sm:$0xf]
  %v97 = vld [vmem:[%s1 + $0x140] sm:$0xf]
  %v98 = vld [vmem:[%s1 + $0x144] sm:$0xf]
  %v99 = vld [vmem:[%s1 + $0x148] sm:$0xf]
  %v100 = vld [vmem:[%s1 + $0x14c] sm:$0xf]
  %v101 = vld [vmem:[%s1 + $0x150] sm:$0xf]
  %v102 = vld [vmem:[%s1 + $0x154] sm:$0xf]
  %v103 = vld [vmem:[%s1 + $0x158] sm:$0xf]
  %v104 = vld [vmem:[%s1 + $0x15c] sm:$0xf]
  %v105 = vld [vmem:[%s1 + $0x160] sm:$0xf]
  %v106 = vld [vmem:[%s1 + $0x164] sm:$0xf]
  %v107 = vld [vmem:[%s1 + $0x168] sm:$0xf]
  %v108 = vld [vmem:[%s1 + $0x16c] sm:$0xf]
  %v109 = vld [vmem:[%s1 + $0x170] sm:$0xf]
  %v110 = vld [vmem:[%s1 + $0x174] sm:$0xf]
  %v111 = vld [vmem:[%s1 + $0x178] sm:$0xf]
  %v112 = vld [vmem:[%s1 + $0x17c] sm:$0xf]
  %v113 = vld [vmem:[%s1 + $0x180] sm:$0xf]
  %v114 = vld [vmem:[%s1 + $0x184] sm:$0xf]
  %v115 = vld [vmem:[%s1 + $0x188] sm:$0xf]
  %v116 = vld [vmem:[%s1 + $0x18c] sm:$0xf]
  %v117 = vld [vmem:[%s1 + $0x190] sm:$0xf]
  %v118 = vld [vmem:[%s1 + $0x194] sm:$0xf]
  %v119 = vld [vmem:[%s1 + $0x198] sm:$0xf]
  %v120 = vld [vmem:[%s1 + $0x19c] sm:$0xf]
  %v121 = vld [vmem:[%s1 + $0x1a0] sm:$0xf]
  %v122 = vld [vmem:[%s1 + $0x1a4] sm:$0xf]
  %v123 = vld [vmem:[%s1 + $0x1a8] sm:$0xf]
  %v124 = vld [vmem:[%s1 + $0x1ac] sm:$0xf]
  %v125 = vld [vmem:[%s1 + $0x1b0] sm:$0xf]
  %v126 = vld [vmem:[%s1 + $0x1b4] sm:$0xf]
  %v127 = vld [vmem:[%s1 + $0x1b8] sm:$0xf]
  %v128 = vld [vmem:[%s1 + $0x1bc] sm:$0xf]
  %v129 = vld [vmem:[%s1 + $0x1c0] sm:$0xf]
  %v130 = vld [vmem:[%s1 + $0x1c4] sm:$0xf]
  %v131 = vld [vmem:[%s1 + $0x1c8] sm:$0xf]
  %v132 = vld [vmem:[%s1 + $0x1cc] sm:$0xf]
  %v133 = vld [vmem:[%s1 + $0x1d0] sm:$0xf]
  %v134 = vld [vmem:[%s1 + $0x1d4] sm:$0xf]
  %v135 = vld [vmem:[%s1 + $0x1d8] sm:$0xf]
  %v136 = vld [vmem:[%s1 + $0x1dc] sm:$0xf]
  %v137 = vld [vmem:[%s1 + $0x1e0] sm:$0xf]
  %v138 = vld [vmem:[%s1 + $0x1e4] sm:$0xf]
  %v139 = vld [vmem:[%s1 + $0x1e8] sm:$0xf]
  %v140 = vld [vmem:[%s1 + $0x1ec] sm:$0xf]
  %v141 = vld [vmem:[%s1 + $0x1f0] sm:$0xf]
  %v142 = vld [vmem:[%s1 + $0x1f4] sm:$0xf]
  %v143 = vld [vmem:[%s1 + $0x1f8] sm:$0xf]
  %v144 = vld [vmem:[%s1 + $0x1fc] sm:$0xf]
  %v145 = vld [vmem:[%s1 + $0x200] sm:$0xf]
  %v146 = vld [vmem:[%s1 + $0x204] sm:$0xf]
  %v147 = vld [vmem:[%s1 + $0x208] sm:$0xf]
  %v148 = vld [vmem:[%s1 + $0x20c] sm:$0xf]
  %v149 = vld [vmem:[%s1 + $0x210] sm:$0xf]
  %v150 = vld [vmem:[%s1 + $0x214] sm:$0xf]
  %v151 = vld [vmem:[%s1 + $0x218] sm:$0xf]
  %v152 = vld [vmem:[%s1 + $0x21c] sm:$0xf]
  %v153 = vld [vmem:[%s1 + $0x220] sm:$0xf]
  %v154 = vld [vmem:[%s1 + $0x224] sm:$0xf]
  %v155 = vld [vmem:[%s1 + $0x228] sm:$0xf]
  %v156 = vld [vmem:[%s1 + $0x22c] sm:$0xf]
  %v157 = vld [vmem:[%s1 + $0x230] sm:$0xf]
  %v158 = vld [vmem:[%s1 + $0x234] sm:$0xf]
  %v159 = vld [vmem:[%s1 + $0x238] sm:$0xf]
  %v160 = vld [vmem:[%s1 + $0x23c] sm:$0xf]
  %v161 = vld [vmem:[%s1 + $0x240] sm:$0xf]
  %v162 = vld [vmem:[%s1 + $0x244] sm:$0xf]
  %v163 = vld [vmem:[%s1 + $0x248] sm:$0xf]
  %v164 = vld [vmem:[%s1 + $0x24c] sm:$0xf]
  %v165 = vld [vmem:[%s1 + $0x250] sm:$0xf]
  %v166 = vld [vmem:[%s1 + $0x254] sm:$0xf]
  %v167 = vld [vmem:[%s1 + $0x258] sm:$0xf]
  %v168 = vld [vmem:[%s1 + $0x25c] sm:$0xf]
  %v169 = vld [vmem:[%s1 + $0x260] sm:$0xf]
  %v170 = vld [vmem:[%s1 + $0x264] sm:$0xf]
  %v171 = vld [vmem:[%s1 + $0x268] sm:$0xf]
  %v172 = vld [vmem:[%s1 + $0x26c] sm:$0xf]
  %v173 = vld [vmem:[%s1 + $0x270] sm:$0xf]
  %v174 = vld [vmem:[%s1 + $0x274] sm:$0xf]
  %v175 = vld [vmem:[%s1 + $0x278] sm:$0xf]
  %v176 = vld [vmem:[%s1 + $0x27c] sm:$0xf]
  %v177 = vld [vmem:[%s1 + $0x280] sm:$0xf]
  %v178 = vld [vmem:[%s1 + $0x284] sm:$0xf]
  %v179 = vld [vmem:[%s1 + $0x288] sm:$0xf]
  %v180 = vld [vmem:[%s1 + $0x28c] sm:$0xf]
  %v181 = vld [vmem:[%s1 + $0x290] sm:$0xf]
  %v182 = vld [vmem:[%s1 + $0x294] sm:$0xf]
  %v183 = vld [vmem:[%s1 + $0x298] sm:$0xf]
  %v184 = vld [vmem:[%s1 + $0x29c] sm:$0xf]
  %v185 = vld [vmem:[%s1 + $0x2a0] sm:$0xf]
  %v186 = vld [vmem:[%s1 + $0x2a4] sm:$0xf]
  %v187 = vld [vmem:[%s1 + $0x2a8] sm:$0xf]
  %v188 = vld [vmem:[%s1 + $0x2ac] sm:$0xf]
  %v189 = vld [vmem:[%s1 + $0x2b0] sm:$0xf]
  %v190 = vld [vmem:[%s1 + $0x2b4] sm:$0xf]
  %v191 = vld [vmem:[%s1 + $0x2b8] sm:$0xf]
  %v192 = vld [vmem:[%s1 + $0x2bc] sm:$0xf]
  %v193 = vld [vmem:[%s1 + $0x2c0] sm:$0xf]
  %v194 = vld [vmem:[%s1 + $0x2c4] sm:$0xf]
  %v195 = vld [vmem:[%s1 + $0x2c8] sm:$0xf]
  %v196 = vld [vmem:[%s1 + $0x2cc] sm:$0xf]
  %v197 = vld [vmem:[%s1 + $0x2d0] sm:$0xf]
  %v198 = vld [vmem:[%s1 + $0x2d4] sm:$0xf]
  %v199 = vld [vmem:[%s1 + $0x2d8] sm:$0xf]
  %v200 = vld [vmem:[%s1 + $0x2dc] sm:$0xf]
  %v201 = vld [vmem:[%s1 + $0x2e0] sm:$0xf]
  %v202 = vld [vmem:[%s1 + $0x2e4] sm:$0xf]
  %v203 = vld [vmem:[%s1 + $0x2e8] sm:$0xf]
  %v204 = vld [vmem:[%s1 + $0x2ec] sm:$0xf]
  %v205 = vld [vmem:[%s1 + $0x2f0] sm:$0xf]
  %v206 = vld [vmem:[%s1 + $0x2f4] sm:$0xf]
  %v207 = vld [vmem:[%s1 + $0x2f8] sm:$0xf]
  %v208 = vld [vmem:[%s1 + $0x2fc] sm:$0xf]
  %v209 = vld [vmem:[%s1 + $0x300] sm:$0xf]
  %v210 = vld [vmem:[%s1 + $0x304] sm:$0xf]
  %v211 = vld [vmem:[%s1 + $0x308] sm:$0xf]
  %v212 = vld [vmem:[%s1 + $0x30c] sm:$0xf]
  %v213 = vld [vmem:[%s1 + $0x310] sm:$0xf]
  %v214 = vld [vmem:[%s1 + $0x314] sm:$0xf]
  %v215 = vld [vmem:[%s1 + $0x318] sm:$0xf]
  %v216 = vld [vmem:[%s1 + $0x31c] sm:$0xf]
  %v217 = vld [vmem:[%s1 + $0x320] sm:$0xf]
  %v218 = vld [vmem:[%s1 + $0x324] sm:$0xf]
  %v219 = vld [vmem:[%s1 + $0x328] sm:$0xf]
  %v220 = vld [vmem:[%s1 + $0x32c] sm:$0xf]
  %v221 = vld [vmem:[%s1 + $0x330] sm:$0xf]
  %v222 = vld [vmem:[%s1 + $0x334] sm:$0xf]
  %v223 = vld [vmem:[%s1 + $0x338] sm:$0xf]
  %v224 = vld [vmem:[%s1 + $0x33c] sm:$0xf]
  %v225 = vld [vmem:[%s1 + $0x340] sm:$0xf]
  %v226 = vld [vmem:[%s1 + $0x344] sm:$0xf]
  %v227 = vld [vmem:[%s1 + $0x348] sm:$0xf]
  %v228 = vld [vmem:[%s1 + $0x34c] sm:$0xf]
  %v229 = vld [vmem:[%s1 + $0x350] sm:$0xf]
  %v230 = vld [vmem:[%s1 + $0x354] sm:$0xf]
  %v231 = vld [vmem:[%s1 + $0x358] sm:$0xf]
  %v232 = vld [vmem:[%s1 + $0x35c] sm:$0xf]
  %v233 = vld [vmem:[%s1 + $0x360] sm:$0xf]
  %v234 = vld [vmem:[%s1 + $0x364] sm:$0xf]
  %v235 = vld [vmem:[%s1 + $0x368] sm:$0xf]
  %v236 = vld [vmem:[%s1 + $0x36c] sm:$0xf]
  %v237 = vld [vmem:[%s1 + $0x370] sm:$0xf]
  %v238 = vld [vmem:[%s1 + $0x374] sm:$0xf]
  %v239 = vld [vmem:[%s1 + $0x378] sm:$0xf]
  %v240 = vld [vmem:[%s1 + $0x37c] sm:$0xf]
  %v241 = vld [vmem:[%s1 + $0x380] sm:$0xf]
  %v242 = vld [vmem:[%s1 + $0x384] sm:$0xf]
  %v243 = vld [vmem:[%s1 + $0x388] sm:$0xf]
  %v244 = vld [vmem:[%s1 + $0x38c] sm:$0xf]
  %v245 = vld [vmem:[%s1 + $0x390] sm:$0xf]
  %v246 = vld [vmem:[%s1 + $0x394] sm:$0xf]
  %v247 = vld [vmem:[%s1 + $0x398] sm:$0xf]
  %v248 = vld [vmem:[%s1 + $0x39c] sm:$0xf]
  %v249 = vld [vmem:[%s1 + $0x3a0] sm:$0xf]
  %v250 = vld [vmem:[%s1 + $0x3a4] sm:$0xf]
  %v251 = vld [vmem:[%s1 + $0x3a8] sm:$0xf]
  %v252 = vld [vmem:[%s1 + $0x3ac] sm:$0xf]
  %v253 = vld [vmem:[%s1 + $0x3b0] sm:$0xf]
  %v254 = vld [vmem:[%s1 + $0x3b4] sm:$0xf]
  %v255 = vld [vmem:[%s1 + $0x3b8] sm:$0xf]
  %v256 = vld [vmem:[%s1 + $0x3bc] sm:$0xf]
  %v257 = vld [vmem:[%s1 + $0x3c0] sm:$0xf]
  %v258 = vld [vmem:[%s1 + $0x3c4] sm:$0xf]
  %v259 = vld [vmem:[%s1 + $0x3c8] sm:$0xf]
  %v260 = vld [vmem:[%s1 + $0x3cc] sm:$0xf]
  %v261 = vld [vmem:[%s1 + $0x3d0] sm:$0xf]
  %v262 = vld [vmem:[%s1 + $0x3d4] sm:$0xf]
  %v263 = vld [vmem:[%s1 + $0x3d8] sm:$0xf]
  %v264 = vld [vmem:[%s1 + $0x3dc] sm:$0xf]
  %v265 = vld [vmem:[%s1 + $0x3e0] sm:$0xf]
  %v266 = vld [vmem:[%s1 + $0x3e4] sm:$0xf]
  %v267 = vld [vmem:[%s1 + $0x3e8] sm:$0xf]
  %v268 = vld [vmem:[%s1 + $0x3ec] sm:$0xf]
  %v269 = vld [vmem:[%s1 + $0x3f0] sm:$0xf]
  %v270 = vld [vmem:[%s1 + $0x3f4] sm:$0xf]
  %v271 = vld [vmem:[%s1 + $0x3f8] sm:$0xf]
  %v272 = vld [vmem:[%s1 + $0x3fc] sm:$0xf]
  %v273 = vld [vmem:[%s2] sm:$0x1]
  %v275 = vlaneseq
  %v276 = vshrl.u32 %v275, 7
  %v277 = vsub.s32 0, %v276
  %v278 = vrot.slane %v273, %v277
  %v282 = vcombine.high %v15, %v15
  %v284 = vunpack.c.l.s4 1966171168
  %v285 = vunpack.c.0.s8 %v284
  %v286 = vlaneseq
  %v287 = vshrl.u32 %v286, 7
  %v288 = vsub.s32 %v285, %v287
  %v289 = vrot.slane %v15, %v288
  %v291 = vunpack.c.l.s4 1966171168
  %v292 = vunpack.c.0.s8 %v291
  %v293 = vlaneseq
  %v294 = vshrl.u32 %v293, 7
  %v295 = vsub.s32 %v292, %v294
  %v296 = vrot.slane %v282, %v295
  %v297 = vcombine.high %v289, %v289
  %v298 = vcombine.high %v296, %v296
  %v300 = vunpack.c.l.s4 1966171168
  %v301 = vunpack.c.0.s8 %v300
  %v302 = vlaneseq
  %v303 = vshrl.u32 %v302, 7
  %v304 = vsub.s32 %v301, %v303
  %v305 = vrot.slane %v289, %v304
  %v307 = vunpack.c.l.s4 1966171168
  %v308 = vunpack.c.0.s8 %v307
  %v309 = vlaneseq
  %v310 = vshrl.u32 %v309, 7
  %v311 = vsub.s32 %v308, %v310
  %v312 = vrot.slane %v296, %v311
  %v314 = vunpack.c.l.s4 1966171168
  %v315 = vunpack.c.0.s8 %v314
  %v316 = vlaneseq
  %v317 = vshrl.u32 %v316, 7
  %v318 = vsub.s32 %v315, %v317
  %v319 = vrot.slane %v297, %v318
  %v321 = vunpack.c.l.s4 1966171168
  %v322 = vunpack.c.0.s8 %v321
  %v323 = vlaneseq
  %v324 = vshrl.u32 %v323, 7
  %v325 = vsub.s32 %v322, %v324
  %v326 = vrot.slane %v298, %v325
  %v327 = vcombine.high %v305, %v305
  %v328 = vcombine.high %v312, %v312
  %v329 = vcombine.high %v319, %v319
  %v330 = vcombine.high %v326, %v326
  %v331 = vcombine.high %v16, %v16
  %v333 = vunpack.c.l.s4 1966171168
  %v334 = vunpack.c.0.s8 %v333
  %v335 = vlaneseq
  %v336 = vshrl.u32 %v335, 7
  %v337 = vsub.s32 %v334, %v336
  %v338 = vrot.slane %v16, %v337
  %v340 = vunpack.c.l.s4 1966171168
  %v341 = vunpack.c.0.s8 %v340
  %v342 = vlaneseq
  %v343 = vshrl.u32 %v342, 7
  %v344 = vsub.s32 %v341, %v343
  %v345 = vrot.slane %v331, %v344
  %v346 = vcombine.high %v338, %v338
  %v347 = vcombine.high %v345, %v345
  %v349 = vunpack.c.l.s4 1966171168
  %v350 = vunpack.c.0.s8 %v349
  %v351 = vlaneseq
  %v352 = vshrl.u32 %v351, 7
  %v353 = vsub.s32 %v350, %v352
  %v354 = vrot.slane %v338, %v353
  %v356 = vunpack.c.l.s4 1966171168
  %v357 = vunpack.c.0.s8 %v356
  %v358 = vlaneseq
  %v359 = vshrl.u32 %v358, 7
  %v360 = vsub.s32 %v357, %v359
  %v361 = vrot.slane %v345, %v360
  %v363 = vunpack.c.l.s4 1966171168
  %v364 = vunpack.c.0.s8 %v363
  %v365 = vlaneseq
  %v366 = vshrl.u32 %v365, 7
  %v367 = vsub.s32 %v364, %v366
  %v368 = vrot.slane %v346, %v367
  %v370 = vunpack.c.l.s4 1966171168
  %v371 = vunpack.c.0.s8 %v370
  %v372 = vlaneseq
  %v373 = vshrl.u32 %v372, 7
  %v374 = vsub.s32 %v371, %v373
  %v375 = vrot.slane %v347, %v374
  %v376 = vcombine.high %v354, %v354
  %v377 = vcombine.high %v361, %v361
  %v378 = vcombine.high %v368, %v368
  %v379 = vcombine.high %v375, %v375
  %v652 = vunpack.c.l.b16 %v17
  %v653 = vunpack.c.l.b16 %v18
  %v654 = vunpack.c.l.b16 %v19
  %v655 = vunpack.c.l.b16 %v20
  %v656 = vunpack.c.l.b16 %v21
  %v657 = vunpack.c.l.b16 %v22
  %v658 = vunpack.c.l.b16 %v23
  %v659 = vunpack.c.l.b16 %v24
  %v660 = vunpack.c.l.b16 %v25
  %v661 = vunpack.c.l.b16 %v26
  %v662 = vunpack.c.l.b16 %v27
  %v663 = vunpack.c.l.b16 %v28
  %v664 = vunpack.c.l.b16 %v29
  %v665 = vunpack.c.l.b16 %v30
  %v666 = vunpack.c.l.b16 %v31
  %v667 = vunpack.c.l.b16 %v32
  %v668 = vunpack.c.l.b16 %v33
  %v669 = vunpack.c.l.b16 %v34
  %v670 = vunpack.c.l.b16 %v35
  %v671 = vunpack.c.l.b16 %v36
  %v672 = vunpack.c.l.b16 %v37
  %v673 = vunpack.c.l.b16 %v38
  %v674 = vunpack.c.l.b16 %v39
  %v675 = vunpack.c.l.b16 %v40
  %v676 = vunpack.c.l.b16 %v41
  %v677 = vunpack.c.l.b16 %v42
  %v678 = vunpack.c.l.b16 %v43
  %v679 = vunpack.c.l.b16 %v44
  %v680 = vunpack.c.l.b16 %v45
  %v681 = vunpack.c.l.b16 %v46
  %v682 = vunpack.c.l.b16 %v47
  %v683 = vunpack.c.l.b16 %v48
  %v684 = vunpack.c.l.b16 %v49
  %v685 = vunpack.c.l.b16 %v50
  %v686 = vunpack.c.l.b16 %v51
  %v687 = vunpack.c.l.b16 %v52
  %v688 = vunpack.c.l.b16 %v53
  %v689 = vunpack.c.l.b16 %v54
  %v690 = vunpack.c.l.b16 %v55
  %v691 = vunpack.c.l.b16 %v56
  %v692 = vunpack.c.l.b16 %v57
  %v693 = vunpack.c.l.b16 %v58
  %v694 = vunpack.c.l.b16 %v59
  %v695 = vunpack.c.l.b16 %v60
  %v696 = vunpack.c.l.b16 %v61
  %v697 = vunpack.c.l.b16 %v62
  %v698 = vunpack.c.l.b16 %v63
  %v699 = vunpack.c.l.b16 %v64
  %v700 = vunpack.c.l.b16 %v65
  %v701 = vunpack.c.l.b16 %v66
  %v702 = vunpack.c.l.b16 %v67
  %v703 = vunpack.c.l.b16 %v68
  %v704 = vunpack.c.l.b16 %v69
  %v705 = vunpack.c.l.b16 %v70
  %v706 = vunpack.c.l.b16 %v71
  %v707 = vunpack.c.l.b16 %v72
  %v708 = vunpack.c.l.b16 %v73
  %v709 = vunpack.c.l.b16 %v74
  %v710 = vunpack.c.l.b16 %v75
  %v711 = vunpack.c.l.b16 %v76
  %v712 = vunpack.c.l.b16 %v77
  %v713 = vunpack.c.l.b16 %v78
  %v714 = vunpack.c.l.b16 %v79
  %v715 = vunpack.c.l.b16 %v80
  %v716 = vunpack.c.l.b16 %v81
  %v717 = vunpack.c.l.b16 %v82
  %v718 = vunpack.c.l.b16 %v83
  %v719 = vunpack.c.l.b16 %v84
  %v720 = vunpack.c.l.b16 %v85
  %v721 = vunpack.c.l.b16 %v86
  %v722 = vunpack.c.l.b16 %v87
  %v723 = vunpack.c.l.b16 %v88
  %v724 = vunpack.c.l.b16 %v89
  %v725 = vunpack.c.l.b16 %v90
  %v726 = vunpack.c.l.b16 %v91
  %v727 = vunpack.c.l.b16 %v92
  %v728 = vunpack.c.l.b16 %v93
  %v729 = vunpack.c.l.b16 %v94
  %v730 = vunpack.c.l.b16 %v95
  %v731 = vunpack.c.l.b16 %v96
  %v732 = vunpack.c.l.b16 %v97
  %v733 = vunpack.c.l.b16 %v98
  %v734 = vunpack.c.l.b16 %v99
  %v735 = vunpack.c.l.b16 %v100
  %v736 = vunpack.c.l.b16 %v101
  %v737 = vunpack.c.l.b16 %v102
  %v738 = vunpack.c.l.b16 %v103
  %v739 = vunpack.c.l.b16 %v104
  %v740 = vunpack.c.l.b16 %v105
  %v741 = vunpack.c.l.b16 %v106
  %v742 = vunpack.c.l.b16 %v107
  %v743 = vunpack.c.l.b16 %v108
  %v744 = vunpack.c.l.b16 %v109
  %v745 = vunpack.c.l.b16 %v110
  %v746 = vunpack.c.l.b16 %v111
  %v747 = vunpack.c.l.b16 %v112
  %v748 = vunpack.c.l.b16 %v113
  %v749 = vunpack.c.l.b16 %v114
  %v750 = vunpack.c.l.b16 %v115
  %v751 = vunpack.c.l.b16 %v116
  %v752 = vunpack.c.l.b16 %v117
  %v753 = vunpack.c.l.b16 %v118
  %v754 = vunpack.c.l.b16 %v119
  %v755 = vunpack.c.l.b16 %v120
  %v756 = vunpack.c.l.b16 %v121
  %v757 = vunpack.c.l.b16 %v122
  %v758 = vunpack.c.l.b16 %v123
  %v759 = vunpack.c.l.b16 %v124
  %v760 = vunpack.c.l.b16 %v125
  %v761 = vunpack.c.l.b16 %v126
  %v762 = vunpack.c.l.b16 %v127
  %v763 = vunpack.c.l.b16 %v128
  %v764 = vunpack.c.l.b16 %v129
  %v765 = vunpack.c.l.b16 %v130
  %v766 = vunpack.c.l.b16 %v131
  %v767 = vunpack.c.l.b16 %v132
  %v768 = vunpack.c.l.b16 %v133
  %v769 = vunpack.c.l.b16 %v134
  %v770 = vunpack.c.l.b16 %v135
  %v771 = vunpack.c.l.b16 %v136
  %v772 = vunpack.c.l.b16 %v137
  %v773 = vunpack.c.l.b16 %v138
  %v774 = vunpack.c.l.b16 %v139
  %v775 = vunpack.c.l.b16 %v140
  %v776 = vunpack.c.l.b16 %v141
  %v777 = vunpack.c.l.b16 %v142
  %v778 = vunpack.c.l.b16 %v143
  %v779 = vunpack.c.l.b16 %v144
  %v780 = vunpack.c.l.b16 %v145
  %v781 = vunpack.c.l.b16 %v146
  %v782 = vunpack.c.l.b16 %v147
  %v783 = vunpack.c.l.b16 %v148
  %v784 = vunpack.c.l.b16 %v149
  %v785 = vunpack.c.l.b16 %v150
  %v786 = vunpack.c.l.b16 %v151
  %v787 = vunpack.c.l.b16 %v152
  %v788 = vunpack.c.l.b16 %v153
  %v789 = vunpack.c.l.b16 %v154
  %v790 = vunpack.c.l.b16 %v155
  %v791 = vunpack.c.l.b16 %v156
  %v792 = vunpack.c.l.b16 %v157
  %v793 = vunpack.c.l.b16 %v158
  %v794 = vunpack.c.l.b16 %v159
  %v795 = vunpack.c.l.b16 %v160
  %v796 = vunpack.c.l.b16 %v161
  %v797 = vunpack.c.l.b16 %v162
  %v798 = vunpack.c.l.b16 %v163
  %v799 = vunpack.c.l.b16 %v164
  %v800 = vunpack.c.l.b16 %v165
  %v801 = vunpack.c.l.b16 %v166
  %v802 = vunpack.c.l.b16 %v167
  %v803 = vunpack.c.l.b16 %v168
  %v804 = vunpack.c.l.b16 %v169
  %v805 = vunpack.c.l.b16 %v170
  %v806 = vunpack.c.l.b16 %v171
  %v807 = vunpack.c.l.b16 %v172
  %v808 = vunpack.c.l.b16 %v173
  %v809 = vunpack.c.l.b16 %v174
  %v810 = vunpack.c.l.b16 %v175
  %v811 = vunpack.c.l.b16 %v176
  %v812 = vunpack.c.l.b16 %v177
  %v813 = vunpack.c.l.b16 %v178
  %v814 = vunpack.c.l.b16 %v179
  %v815 = vunpack.c.l.b16 %v180
  %v816 = vunpack.c.l.b16 %v181
  %v817 = vunpack.c.l.b16 %v182
  %v818 = vunpack.c.l.b16 %v183
  %v819 = vunpack.c.l.b16 %v184
  %v820 = vunpack.c.l.b16 %v185
  %v821 = vunpack.c.l.b16 %v186
  %v822 = vunpack.c.l.b16 %v187
  %v823 = vunpack.c.l.b16 %v188
  %v824 = vunpack.c.l.b16 %v189
  %v825 = vunpack.c.l.b16 %v190
  %v826 = vunpack.c.l.b16 %v191
  %v827 = vunpack.c.l.b16 %v192
  %v828 = vunpack.c.l.b16 %v193
  %v829 = vunpack.c.l.b16 %v194
  %v830 = vunpack.c.l.b16 %v195
  %v831 = vunpack.c.l.b16 %v196
  %v832 = vunpack.c.l.b16 %v197
  %v833 = vunpack.c.l.b16 %v198
  %v834 = vunpack.c.l.b16 %v199
  %v835 = vunpack.c.l.b16 %v200
  %v836 = vunpack.c.l.b16 %v201
  %v837 = vunpack.c.l.b16 %v202
  %v838 = vunpack.c.l.b16 %v203
  %v839 = vunpack.c.l.b16 %v204
  %v840 = vunpack.c.l.b16 %v205
  %v841 = vunpack.c.l.b16 %v206
  %v842 = vunpack.c.l.b16 %v207
  %v843 = vunpack.c.l.b16 %v208
  %v844 = vunpack.c.l.b16 %v209
  %v845 = vunpack.c.l.b16 %v210
  %v846 = vunpack.c.l.b16 %v211
  %v847 = vunpack.c.l.b16 %v212
  %v848 = vunpack.c.l.b16 %v213
  %v849 = vunpack.c.l.b16 %v214
  %v850 = vunpack.c.l.b16 %v215
  %v851 = vunpack.c.l.b16 %v216
  %v852 = vunpack.c.l.b16 %v217
  %v853 = vunpack.c.l.b16 %v218
  %v854 = vunpack.c.l.b16 %v219
  %v855 = vunpack.c.l.b16 %v220
  %v856 = vunpack.c.l.b16 %v221
  %v857 = vunpack.c.l.b16 %v222
  %v858 = vunpack.c.l.b16 %v223
  %v859 = vunpack.c.l.b16 %v224
  %v860 = vunpack.c.l.b16 %v225
  %v861 = vunpack.c.l.b16 %v226
  %v862 = vunpack.c.l.b16 %v227
  %v863 = vunpack.c.l.b16 %v228
  %v864 = vunpack.c.l.b16 %v229
  %v865 = vunpack.c.l.b16 %v230
  %v866 = vunpack.c.l.b16 %v231
  %v867 = vunpack.c.l.b16 %v232
  %v868 = vunpack.c.l.b16 %v233
  %v869 = vunpack.c.l.b16 %v234
  %v870 = vunpack.c.l.b16 %v235
  %v871 = vunpack.c.l.b16 %v236
  %v872 = vunpack.c.l.b16 %v237
  %v873 = vunpack.c.l.b16 %v238
  %v874 = vunpack.c.l.b16 %v239
  %v875 = vunpack.c.l.b16 %v240
  %v876 = vunpack.c.l.b16 %v241
  %v877 = vunpack.c.l.b16 %v242
  %v878 = vunpack.c.l.b16 %v243
  %v879 = vunpack.c.l.b16 %v244
  %v880 = vunpack.c.l.b16 %v245
  %v881 = vunpack.c.l.b16 %v246
  %v882 = vunpack.c.l.b16 %v247
  %v883 = vunpack.c.l.b16 %v248
  %v884 = vunpack.c.l.b16 %v249
  %v885 = vunpack.c.l.b16 %v250
  %v886 = vunpack.c.l.b16 %v251
  %v887 = vunpack.c.l.b16 %v252
  %v888 = vunpack.c.l.b16 %v253
  %v889 = vunpack.c.l.b16 %v254
  %v890 = vunpack.c.l.b16 %v255
  %v891 = vunpack.c.l.b16 %v256
  %v892 = vunpack.c.l.b16 %v257
  %v893 = vunpack.c.l.b16 %v258
  %v894 = vunpack.c.l.b16 %v259
  %v895 = vunpack.c.l.b16 %v260
  %v896 = vunpack.c.l.b16 %v261
  %v897 = vunpack.c.l.b16 %v262
  %v898 = vunpack.c.l.b16 %v263
  %v899 = vunpack.c.l.b16 %v264
  %v900 = vunpack.c.l.b16 %v265
  %v901 = vunpack.c.l.b16 %v266
  %v902 = vunpack.c.l.b16 %v267
  %v903 = vunpack.c.l.b16 %v268
  %v904 = vunpack.c.l.b16 %v269
  %v905 = vunpack.c.l.b16 %v270
  %v906 = vunpack.c.l.b16 %v271
  %v907 = vunpack.c.l.b16 %v272
  %v908 = vpack.c.b16 %v653, %v652
  %v909 = vpack.c.b16 %v655, %v654
  %v910 = vpack.c.b16 %v657, %v656
  %v911 = vpack.c.b16 %v659, %v658
  %v912 = vpack.c.b16 %v661, %v660
  %v913 = vpack.c.b16 %v663, %v662
  %v914 = vpack.c.b16 %v665, %v664
  %v915 = vpack.c.b16 %v667, %v666
  %v916 = vpack.c.b16 %v669, %v668
  %v917 = vpack.c.b16 %v671, %v670
  %v918 = vpack.c.b16 %v673, %v672
  %v919 = vpack.c.b16 %v675, %v674
  %v920 = vpack.c.b16 %v677, %v676
  %v921 = vpack.c.b16 %v679, %v678
  %v922 = vpack.c.b16 %v681, %v680
  %v923 = vpack.c.b16 %v683, %v682
  %v924 = vpack.c.b16 %v685, %v684
  %v925 = vpack.c.b16 %v687, %v686
  %v926 = vpack.c.b16 %v689, %v688
  %v927 = vpack.c.b16 %v691, %v690
  %v928 = vpack.c.b16 %v693, %v692
  %v929 = vpack.c.b16 %v695, %v694
  %v930 = vpack.c.b16 %v697, %v696
  %v931 = vpack.c.b16 %v699, %v698
  %v932 = vpack.c.b16 %v701, %v700
  %v933 = vpack.c.b16 %v703, %v702
  %v934 = vpack.c.b16 %v705, %v704
  %v935 = vpack.c.b16 %v707, %v706
  %v936 = vpack.c.b16 %v709, %v708
  %v937 = vpack.c.b16 %v711, %v710
  %v938 = vpack.c.b16 %v713, %v712
  %v939 = vpack.c.b16 %v715, %v714
  %v940 = vpack.c.b16 %v717, %v716
  %v941 = vpack.c.b16 %v719, %v718
  %v942 = vpack.c.b16 %v721, %v720
  %v943 = vpack.c.b16 %v723, %v722
  %v944 = vpack.c.b16 %v725, %v724
  %v945 = vpack.c.b16 %v727, %v726
  %v946 = vpack.c.b16 %v729, %v728
  %v947 = vpack.c.b16 %v731, %v730
  %v948 = vpack.c.b16 %v733, %v732
  %v949 = vpack.c.b16 %v735, %v734
  %v950 = vpack.c.b16 %v737, %v736
  %v951 = vpack.c.b16 %v739, %v738
  %v952 = vpack.c.b16 %v741, %v740
  %v953 = vpack.c.b16 %v743, %v742
  %v954 = vpack.c.b16 %v745, %v744
  %v955 = vpack.c.b16 %v747, %v746
  %v956 = vpack.c.b16 %v749, %v748
  %v957 = vpack.c.b16 %v751, %v750
  %v958 = vpack.c.b16 %v753, %v752
  %v959 = vpack.c.b16 %v755, %v754
  %v960 = vpack.c.b16 %v757, %v756
  %v961 = vpack.c.b16 %v759, %v758
  %v962 = vpack.c.b16 %v761, %v760
  %v963 = vpack.c.b16 %v763, %v762
  %v964 = vpack.c.b16 %v765, %v764
  %v965 = vpack.c.b16 %v767, %v766
  %v966 = vpack.c.b16 %v769, %v768
  %v967 = vpack.c.b16 %v771, %v770
  %v968 = vpack.c.b16 %v773, %v772
  %v969 = vpack.c.b16 %v775, %v774
  %v970 = vpack.c.b16 %v777, %v776
  %v971 = vpack.c.b16 %v779, %v778
  %v972 = vpack.c.b16 %v781, %v780
  %v973 = vpack.c.b16 %v783, %v782
  %v974 = vpack.c.b16 %v785, %v784
  %v975 = vpack.c.b16 %v787, %v786
  %v976 = vpack.c.b16 %v789, %v788
  %v977 = vpack.c.b16 %v791, %v790
  %v978 = vpack.c.b16 %v793, %v792
  %v979 = vpack.c.b16 %v795, %v794
  %v980 = vpack.c.b16 %v797, %v796
  %v981 = vpack.c.b16 %v799, %v798
  %v982 = vpack.c.b16 %v801, %v800
  %v983 = vpack.c.b16 %v803, %v802
  %v984 = vpack.c.b16 %v805, %v804
  %v985 = vpack.c.b16 %v807, %v806
  %v986 = vpack.c.b16 %v809, %v808
  %v987 = vpack.c.b16 %v811, %v810
  %v988 = vpack.c.b16 %v813, %v812
  %v989 = vpack.c.b16 %v815, %v814
  %v990 = vpack.c.b16 %v817, %v816
  %v991 = vpack.c.b16 %v819, %v818
  %v992 = vpack.c.b16 %v821, %v820
  %v993 = vpack.c.b16 %v823, %v822
  %v994 = vpack.c.b16 %v825, %v824
  %v995 = vpack.c.b16 %v827, %v826
  %v996 = vpack.c.b16 %v829, %v828
  %v997 = vpack.c.b16 %v831, %v830
  %v998 = vpack.c.b16 %v833, %v832
  %v999 = vpack.c.b16 %v835, %v834
  %v1000 = vpack.c.b16 %v837, %v836
  %v1001 = vpack.c.b16 %v839, %v838
  %v1002 = vpack.c.b16 %v841, %v840
  %v1003 = vpack.c.b16 %v843, %v842
  %v1004 = vpack.c.b16 %v845, %v844
  %v1005 = vpack.c.b16 %v847, %v846
  %v1006 = vpack.c.b16 %v849, %v848
  %v1007 = vpack.c.b16 %v851, %v850
  %v1008 = vpack.c.b16 %v853, %v852
  %v1009 = vpack.c.b16 %v855, %v854
  %v1010 = vpack.c.b16 %v857, %v856
  %v1011 = vpack.c.b16 %v859, %v858
  %v1012 = vpack.c.b16 %v861, %v860
  %v1013 = vpack.c.b16 %v863, %v862
  %v1014 = vpack.c.b16 %v865, %v864
  %v1015 = vpack.c.b16 %v867, %v866
  %v1016 = vpack.c.b16 %v869, %v868
  %v1017 = vpack.c.b16 %v871, %v870
  %v1018 = vpack.c.b16 %v873, %v872
  %v1019 = vpack.c.b16 %v875, %v874
  %v1020 = vpack.c.b16 %v877, %v876
  %v1021 = vpack.c.b16 %v879, %v878
  %v1022 = vpack.c.b16 %v881, %v880
  %v1023 = vpack.c.b16 %v883, %v882
  %v1024 = vpack.c.b16 %v885, %v884
  %v1025 = vpack.c.b16 %v887, %v886
  %v1026 = vpack.c.b16 %v889, %v888
  %v1027 = vpack.c.b16 %v891, %v890
  %v1028 = vpack.c.b16 %v893, %v892
  %v1029 = vpack.c.b16 %v895, %v894
  %v1030 = vpack.c.b16 %v897, %v896
  %v1031 = vpack.c.b16 %v899, %v898
  %v1032 = vpack.c.b16 %v901, %v900
  %v1033 = vpack.c.b16 %v903, %v902
  %v1034 = vpack.c.b16 %v905, %v904
  %v1035 = vpack.c.b16 %v907, %v906
  %1164 = vmatprep.subr.bf16.mxu0 0
  %1165 = vmatpush1.bf16.msra.mxu0 %v908
  %1166 = vmatprep.subr.bf16.mxu0 0
  %1167 = vmatpush1.bf16.msra.mxu0 %v909
  %1168 = vmatprep.subr.bf16.mxu0 0
  %1169 = vmatpush1.bf16.msra.mxu0 %v910
  %1170 = vmatprep.subr.bf16.mxu0 0
  %1171 = vmatpush1.bf16.msra.mxu0 %v911
  %1172 = vmatprep.subr.bf16.mxu0 0
  %1173 = vmatpush1.bf16.msra.mxu0 %v912
  %1174 = vmatprep.subr.bf16.mxu0 0
  %1175 = vmatpush1.bf16.msra.mxu0 %v913
  %1176 = vmatprep.subr.bf16.mxu0 0
  %1177 = vmatpush1.bf16.msra.mxu0 %v914
  %1178 = vmatprep.subr.bf16.mxu0 0
  %1179 = vmatpush1.bf16.msra.mxu0 %v915
  %1180 = vmatprep.subr.bf16.mxu0 0
  %1181 = vmatpush1.bf16.msra.mxu0 %v916
  %1182 = vmatprep.subr.bf16.mxu0 0
  %1183 = vmatpush1.bf16.msra.mxu0 %v917
  %1184 = vmatprep.subr.bf16.mxu0 0
  %1185 = vmatpush1.bf16.msra.mxu0 %v918
  %1186 = vmatprep.subr.bf16.mxu0 0
  %1187 = vmatpush1.bf16.msra.mxu0 %v919
  %1188 = vmatprep.subr.bf16.mxu0 0
  %1189 = vmatpush1.bf16.msra.mxu0 %v920
  %1190 = vmatprep.subr.bf16.mxu0 0
  %1191 = vmatpush1.bf16.msra.mxu0 %v921
  %1192 = vmatprep.subr.bf16.mxu0 0
  %1193 = vmatpush1.bf16.msra.mxu0 %v922
  %1194 = vmatprep.subr.bf16.mxu0 0
  %1195 = vmatpush1.bf16.msra.mxu0 %v923
  %1196 = vmatprep.mubr.bf16.mxu0 %v319
  %1197 = vmatmul.mubr.bf16.gmra.mrb[0].mxu0 %v305
  %v1198 = vpop.f32.mrb[0].mxu0
  %v1199 = vadd.f32 %v278, %v1198
  %v1200 = vpop.f32.mrb[0].mxu0
  %v1201 = vpop.f32.mrb[0].mxu0
  %v1202 = vpop.f32.mrb[0].mxu0
  %1203 = vdwg.mxu0
  %1204 = vmatprep.subr.bf16.mxu0 0
  %1205 = vmatpush1.bf16.msra.mxu0 %v924
  %1206 = vmatprep.subr.bf16.mxu0 0
  %1207 = vmatpush1.bf16.msra.mxu0 %v925
  %1208 = vmatprep.subr.bf16.mxu0 0
  %1209 = vmatpush1.bf16.msra.mxu0 %v926
  %1210 = vmatprep.subr.bf16.mxu0 0
  %1211 = vmatpush1.bf16.msra.mxu0 %v927
  %1212 = vmatprep.subr.bf16.mxu0 0
  %1213 = vmatpush1.bf16.msra.mxu0 %v928
  %1214 = vmatprep.subr.bf16.mxu0 0
  %1215 = vmatpush1.bf16.msra.mxu0 %v929
  %1216 = vmatprep.subr.bf16.mxu0 0
  %1217 = vmatpush1.bf16.msra.mxu0 %v930
  %1218 = vmatprep.subr.bf16.mxu0 0
  %1219 = vmatpush1.bf16.msra.mxu0 %v931
  %1220 = vmatprep.subr.bf16.mxu0 0
  %1221 = vmatpush1.bf16.msra.mxu0 %v932
  %1222 = vmatprep.subr.bf16.mxu0 0
  %1223 = vmatpush1.bf16.msra.mxu0 %v933
  %1224 = vmatprep.subr.bf16.mxu0 0
  %1225 = vmatpush1.bf16.msra.mxu0 %v934
  %1226 = vmatprep.subr.bf16.mxu0 0
  %1227 = vmatpush1.bf16.msra.mxu0 %v935
  %1228 = vmatprep.subr.bf16.mxu0 0
  %1229 = vmatpush1.bf16.msra.mxu0 %v936
  %1230 = vmatprep.subr.bf16.mxu0 0
  %1231 = vmatpush1.bf16.msra.mxu0 %v937
  %1232 = vmatprep.subr.bf16.mxu0 0
  %1233 = vmatpush1.bf16.msra.mxu0 %v938
  %1234 = vmatprep.subr.bf16.mxu0 0
  %1235 = vmatpush1.bf16.msra.mxu0 %v939
  %1236 = vmatprep.mubr.bf16.mxu0 %v329
  %1237 = vmatmul.mubr.bf16.gmra.mrb[0].mxu0 %v327
  %v1238 = vpop.f32.mrb[0].mxu0
  %v1239 = vadd.f32 %v1199, %v1238
  %v1240 = vpop.f32.mrb[0].mxu0
  %v1241 = vpop.f32.mrb[0].mxu0
  %v1242 = vpop.f32.mrb[0].mxu0
  %1243 = vdwg.mxu0
  %1244 = vmatprep.subr.bf16.mxu0 0
  %1245 = vmatpush1.bf16.msra.mxu0 %v940
  %1246 = vmatprep.subr.bf16.mxu0 0
  %1247 = vmatpush1.bf16.msra.mxu0 %v941
  %1248 = vmatprep.subr.bf16.mxu0 0
  %1249 = vmatpush1.bf16.msra.mxu0 %v942
  %1250 = vmatprep.subr.bf16.mxu0 0
  %1251 = vmatpush1.bf16.msra.mxu0 %v943
  %1252 = vmatprep.subr.bf16.mxu0 0
  %1253 = vmatpush1.bf16.msra.mxu0 %v944
  %1254 = vmatprep.subr.bf16.mxu0 0
  %1255 = vmatpush1.bf16.msra.mxu0 %v945
  %1256 = vmatprep.subr.bf16.mxu0 0
  %1257 = vmatpush1.bf16.msra.mxu0 %v946
  %1258 = vmatprep.subr.bf16.mxu0 0
  %1259 = vmatpush1.bf16.msra.mxu0 %v947
  %1260 = vmatprep.subr.bf16.mxu0 0
  %1261 = vmatpush1.bf16.msra.mxu0 %v948
  %1262 = vmatprep.subr.bf16.mxu0 0
  %1263 = vmatpush1.bf16.msra.mxu0 %v949
  %1264 = vmatprep.subr.bf16.mxu0 0
  %1265 = vmatpush1.bf16.msra.mxu0 %v950
  %1266 = vmatprep.subr.bf16.mxu0 0
  %1267 = vmatpush1.bf16.msra.mxu0 %v951
  %1268 = vmatprep.subr.bf16.mxu0 0
  %1269 = vmatpush1.bf16.msra.mxu0 %v952
  %1270 = vmatprep.subr.bf16.mxu0 0
  %1271 = vmatpush1.bf16.msra.mxu0 %v953
  %1272 = vmatprep.subr.bf16.mxu0 0
  %1273 = vmatpush1.bf16.msra.mxu0 %v954
  %1274 = vmatprep.subr.bf16.mxu0 0
  %1275 = vmatpush1.bf16.msra.mxu0 %v955
  %1276 = vmatprep.mubr.bf16.mxu0 %v326
  %1277 = vmatmul.mubr.bf16.gmra.mrb[0].mxu0 %v312
  %v1278 = vpop.f32.mrb[0].mxu0
  %v1279 = vadd.f32 %v1239, %v1278
  %v1280 = vpop.f32.mrb[0].mxu0
  %v1281 = vpop.f32.mrb[0].mxu0
  %v1282 = vpop.f32.mrb[0].mxu0
  %1283 = vdwg.mxu0
  %1284 = vmatprep.subr.bf16.mxu0 0
  %1285 = vmatpush1.bf16.msra.mxu0 %v956
  %1286 = vmatprep.subr.bf16.mxu0 0
  %1287 = vmatpush1.bf16.msra.mxu0 %v957
  %1288 = vmatprep.subr.bf16.mxu0 0
  %1289 = vmatpush1.bf16.msra.mxu0 %v958
  %1290 = vmatprep.subr.bf16.mxu0 0
  %1291 = vmatpush1.bf16.msra.mxu0 %v959
  %1292 = vmatprep.subr.bf16.mxu0 0
  %1293 = vmatpush1.bf16.msra.mxu0 %v960
  %1294 = vmatprep.subr.bf16.mxu0 0
  %1295 = vmatpush1.bf16.msra.mxu0 %v961
  %1296 = vmatprep.subr.bf16.mxu0 0
  %1297 = vmatpush1.bf16.msra.mxu0 %v962
  %1298 = vmatprep.subr.bf16.mxu0 0
  %1299 = vmatpush1.bf16.msra.mxu0 %v963
  %1300 = vmatprep.subr.bf16.mxu0 0
  %1301 = vmatpush1.bf16.msra.mxu0 %v964
  %1302 = vmatprep.subr.bf16.mxu0 0
  %1303 = vmatpush1.bf16.msra.mxu0 %v965
  %1304 = vmatprep.subr.bf16.mxu0 0
  %1305 = vmatpush1.bf16.msra.mxu0 %v966
  %1306 = vmatprep.subr.bf16.mxu0 0
  %1307 = vmatpush1.bf16.msra.mxu0 %v967
  %1308 = vmatprep.subr.bf16.mxu0 0
  %1309 = vmatpush1.bf16.msra.mxu0 %v968
  %1310 = vmatprep.subr.bf16.mxu0 0
  %1311 = vmatpush1.bf16.msra.mxu0 %v969
  %1312 = vmatprep.subr.bf16.mxu0 0
  %1313 = vmatpush1.bf16.msra.mxu0 %v970
  %1314 = vmatprep.subr.bf16.mxu0 0
  %1315 = vmatpush1.bf16.msra.mxu0 %v971
  %1316 = vmatprep.mubr.bf16.mxu0 %v330
  %1317 = vmatmul.mubr.bf16.gmra.mrb[0].mxu0 %v328
  %v1318 = vpop.f32.mrb[0].mxu0
  %v1319 = vadd.f32 %v1279, %v1318
  %v1320 = vpop.f32.mrb[0].mxu0
  %v1321 = vpop.f32.mrb[0].mxu0
  %v1322 = vpop.f32.mrb[0].mxu0
  %1323 = vdwg.mxu0
  %1324 = vmatprep.subr.bf16.mxu0 0
  %1325 = vmatpush1.bf16.msra.mxu0 %v972
  %1326 = vmatprep.subr.bf16.mxu0 0
  %1327 = vmatpush1.bf16.msra.mxu0 %v973
  %1328 = vmatprep.subr.bf16.mxu0 0
  %1329 = vmatpush1.bf16.msra.mxu0 %v974
  %1330 = vmatprep.subr.bf16.mxu0 0
  %1331 = vmatpush1.bf16.msra.mxu0 %v975
  %1332 = vmatprep.subr.bf16.mxu0 0
  %1333 = vmatpush1.bf16.msra.mxu0 %v976
  %1334 = vmatprep.subr.bf16.mxu0 0
  %1335 = vmatpush1.bf16.msra.mxu0 %v977
  %1336 = vmatprep.subr.bf16.mxu0 0
  %1337 = vmatpush1.bf16.msra.mxu0 %v978
  %1338 = vmatprep.subr.bf16.mxu0 0
  %1339 = vmatpush1.bf16.msra.mxu0 %v979
  %1340 = vmatprep.subr.bf16.mxu0 0
  %1341 = vmatpush1.bf16.msra.mxu0 %v980
  %1342 = vmatprep.subr.bf16.mxu0 0
  %1343 = vmatpush1.bf16.msra.mxu0 %v981
  %1344 = vmatprep.subr.bf16.mxu0 0
  %1345 = vmatpush1.bf16.msra.mxu0 %v982
  %1346 = vmatprep.subr.bf16.mxu0 0
  %1347 = vmatpush1.bf16.msra.mxu0 %v983
  %1348 = vmatprep.subr.bf16.mxu0 0
  %1349 = vmatpush1.bf16.msra.mxu0 %v984
  %1350 = vmatprep.subr.bf16.mxu0 0
  %1351 = vmatpush1.bf16.msra.mxu0 %v985
  %1352 = vmatprep.subr.bf16.mxu0 0
  %1353 = vmatpush1.bf16.msra.mxu0 %v986
  %1354 = vmatprep.subr.bf16.mxu0 0
  %1355 = vmatpush1.bf16.msra.mxu0 %v987
  %1356 = vmatprep.mubr.bf16.mxu0 %v368
  %1357 = vmatmul.mubr.bf16.gmra.mrb[0].mxu0 %v354
  %v1358 = vpop.f32.mrb[0].mxu0
  %v1359 = vadd.f32 %v1319, %v1358
  %v1360 = vpop.f32.mrb[0].mxu0
  %v1361 = vpop.f32.mrb[0].mxu0
  %v1362 = vpop.f32.mrb[0].mxu0
  %1363 = vdwg.mxu0
  %1364 = vmatprep.subr.bf16.mxu0 0
  %1365 = vmatpush1.bf16.msra.mxu0 %v988
  %1366 = vmatprep.subr.bf16.mxu0 0
  %1367 = vmatpush1.bf16.msra.mxu0 %v989
  %1368 = vmatprep.subr.bf16.mxu0 0
  %1369 = vmatpush1.bf16.msra.mxu0 %v990
  %1370 = vmatprep.subr.bf16.mxu0 0
  %1371 = vmatpush1.bf16.msra.mxu0 %v991
  %1372 = vmatprep.subr.bf16.mxu0 0
  %1373 = vmatpush1.bf16.msra.mxu0 %v992
  %1374 = vmatprep.subr.bf16.mxu0 0
  %1375 = vmatpush1.bf16.msra.mxu0 %v993
  %1376 = vmatprep.subr.bf16.mxu0 0
  %1377 = vmatpush1.bf16.msra.mxu0 %v994
  %1378 = vmatprep.subr.bf16.mxu0 0
  %1379 = vmatpush1.bf16.msra.mxu0 %v995
  %1380 = vmatprep.subr.bf16.mxu0 0
  %1381 = vmatpush1.bf16.msra.mxu0 %v996
  %1382 = vmatprep.subr.bf16.mxu0 0
  %1383 = vmatpush1.bf16.msra.mxu0 %v997
  %1384 = vmatprep.subr.bf16.mxu0 0
  %1385 = vmatpush1.bf16.msra.mxu0 %v998
  %1386 = vmatprep.subr.bf16.mxu0 0
  %1387 = vmatpush1.bf16.msra.mxu0 %v999
  %1388 = vmatprep.subr.bf16.mxu0 0
  %1389 = vmatpush1.bf16.msra.mxu0 %v1000
  %1390 = vmatprep.subr.bf16.mxu0 0
  %1391 = vmatpush1.bf16.msra.mxu0 %v1001
  %1392 = vmatprep.subr.bf16.mxu0 0
  %1393 = vmatpush1.bf16.msra.mxu0 %v1002
  %1394 = vmatprep.subr.bf16.mxu0 0
  %1395 = vmatpush1.bf16.msra.mxu0 %v1003
  %1396 = vmatprep.mubr.bf16.mxu0 %v378
  %1397 = vmatmul.mubr.bf16.gmra.mrb[0].mxu0 %v376
  %v1398 = vpop.f32.mrb[0].mxu0
  %v1399 = vadd.f32 %v1359, %v1398
  %v1400 = vpop.f32.mrb[0].mxu0
  %v1401 = vpop.f32.mrb[0].mxu0
  %v1402 = vpop.f32.mrb[0].mxu0
  %1403 = vdwg.mxu0
  %1404 = vmatprep.subr.bf16.mxu0 0
  %1405 = vmatpush1.bf16.msra.mxu0 %v1004
  %1406 = vmatprep.subr.bf16.mxu0 0
  %1407 = vmatpush1.bf16.msra.mxu0 %v1005
  %1408 = vmatprep.subr.bf16.mxu0 0
  %1409 = vmatpush1.bf16.msra.mxu0 %v1006
  %1410 = vmatprep.subr.bf16.mxu0 0
  %1411 = vmatpush1.bf16.msra.mxu0 %v1007
  %1412 = vmatprep.subr.bf16.mxu0 0
  %1413 = vmatpush1.bf16.msra.mxu0 %v1008
  %1414 = vmatprep.subr.bf16.mxu0 0
  %1415 = vmatpush1.bf16.msra.mxu0 %v1009
  %1416 = vmatprep.subr.bf16.mxu0 0
  %1417 = vmatpush1.bf16.msra.mxu0 %v1010
  %1418 = vmatprep.subr.bf16.mxu0 0
  %1419 = vmatpush1.bf16.msra.mxu0 %v1011
  %1420 = vmatprep.subr.bf16.mxu0 0
  %1421 = vmatpush1.bf16.msra.mxu0 %v1012
  %1422 = vmatprep.subr.bf16.mxu0 0
  %1423 = vmatpush1.bf16.msra.mxu0 %v1013
  %1424 = vmatprep.subr.bf16.mxu0 0
  %1425 = vmatpush1.bf16.msra.mxu0 %v1014
  %1426 = vmatprep.subr.bf16.mxu0 0
  %1427 = vmatpush1.bf16.msra.mxu0 %v1015
  %1428 = vmatprep.subr.bf16.mxu0 0
  %1429 = vmatpush1.bf16.msra.mxu0 %v1016
  %1430 = vmatprep.subr.bf16.mxu0 0
  %1431 = vmatpush1.bf16.msra.mxu0 %v1017
  %1432 = vmatprep.subr.bf16.mxu0 0
  %1433 = vmatpush1.bf16.msra.mxu0 %v1018
  %1434 = vmatprep.subr.bf16.mxu0 0
  %1435 = vmatpush1.bf16.msra.mxu0 %v1019
  %1436 = vmatprep.mubr.bf16.mxu0 %v375
  %1437 = vmatmul.mubr.bf16.gmra.mrb[0].mxu0 %v361
  %v1438 = vpop.f32.mrb[0].mxu0
  %v1439 = vadd.f32 %v1399, %v1438
  %v1440 = vpop.f32.mrb[0].mxu0
  %v1441 = vpop.f32.mrb[0].mxu0
  %v1442 = vpop.f32.mrb[0].mxu0
  %1443 = vdwg.mxu0
  %1444 = vmatprep.subr.bf16.mxu0 0
  %1445 = vmatpush1.bf16.msra.mxu0 %v1020
  %1446 = vmatprep.subr.bf16.mxu0 0
  %1447 = vmatpush1.bf16.msra.mxu0 %v1021
  %1448 = vmatprep.subr.bf16.mxu0 0
  %1449 = vmatpush1.bf16.msra.mxu0 %v1022
  %1450 = vmatprep.subr.bf16.mxu0 0
  %1451 = vmatpush1.bf16.msra.mxu0 %v1023
  %1452 = vmatprep.subr.bf16.mxu0 0
  %1453 = vmatpush1.bf16.msra.mxu0 %v1024
  %1454 = vmatprep.subr.bf16.mxu0 0
  %1455 = vmatpush1.bf16.msra.mxu0 %v1025
  %1456 = vmatprep.subr.bf16.mxu0 0
  %1457 = vmatpush1.bf16.msra.mxu0 %v1026
  %1458 = vmatprep.subr.bf16.mxu0 0
  %1459 = vmatpush1.bf16.msra.mxu0 %v1027
  %1460 = vmatprep.subr.bf16.mxu0 0
  %1461 = vmatpush1.bf16.msra.mxu0 %v1028
  %1462 = vmatprep.subr.bf16.mxu0 0
  %1463 = vmatpush1.bf16.msra.mxu0 %v1029
  %1464 = vmatprep.subr.bf16.mxu0 0
  %1465 = vmatpush1.bf16.msra.mxu0 %v1030
  %1466 = vmatprep.subr.bf16.mxu0 0
  %1467 = vmatpush1.bf16.msra.mxu0 %v1031
  %1468 = vmatprep.subr.bf16.mxu0 0
  %1469 = vmatpush1.bf16.msra.mxu0 %v1032
  %1470 = vmatprep.subr.bf16.mxu0 0
  %1471 = vmatpush1.bf16.msra.mxu0 %v1033
  %1472 = vmatprep.subr.bf16.mxu0 0
  %1473 = vmatpush1.bf16.msra.mxu0 %v1034
  %1474 = vmatprep.subr.bf16.mxu0 0
  %1475 = vmatpush1.bf16.msra.mxu0 %v1035
  %1476 = vmatprep.mubr.bf16.mxu0 %v379
  %1477 = vmatmul.mubr.bf16.gmra.mrb[0].mxu0 %v377
  %v1478 = vpop.f32.mrb[0].mxu0
  %v1479 = vadd.f32 %v1439, %v1478
  %v1480 = vpop.f32.mrb[0].mxu0
  %v1481 = vpop.f32.mrb[0].mxu0
  %v1482 = vpop.f32.mrb[0].mxu0
  %1483 = vdwg.mxu0
  %v1484 = vand.u32 2147483647, %v1479
  %v1485 = vsub.f32 0.0, %v1484
  %v1486 = vmul.f32 %v1485, 1.442695
  %v1487 = vpow.pop %v1486
  %v1488 = vadd.f32 %v1487, 1.0
  %v1489 = vrcp.pop %v1488
  %vm1490 = vcmp.ge.f32.partialorder %v1479, 0.0
  %v1491 = vmul.f32 %v1487, %v1489
  %v1492 = vsel %vm1490, %v1489, %v1491
  %1493 = vst [vmem:[%s3] sm:$0x3] %v1492
  // Predicated region
  $region14: #{discriminator_forward.7} parent=0 // pred_check
    _
  $region15: #{discriminator_forward.7} parent=0 // pred_check_branch
    %1495 = sbr.rel (0) target = $region17
  $region16: #{discriminator_forward.7} parent=0 // pred_region
    _
  $region17: #{discriminator_forward.7} parent=0 // pred_fallthru
    _
  // Predicated region
  $region18: #{discriminator_forward.7} parent=0 // pred_check
    _
  $region19: #{discriminator_forward.7} parent=0 // pred_check_branch
    %1497 = sbr.rel (0) target = $region21
  $region20: #{discriminator_forward.7} parent=0 // pred_region
    _
  $region21: #{discriminator_forward.7} parent=0 // pred_fallthru
    _

</llo_original>
